<compile_context>
chip_gen: v6e
topology: v6e:2x2x1
jax: 0.10.0
libtpu: 0.0.40
codegen_flags: <defaults>
</compile_context>

<pallas_src>
import functools
import math

import jax
import jax.numpy as jnp
from jax.experimental import pallas as pl
from jax.experimental.pallas import tpu as pltpu

BN_EPS = 1e-5
VMEM_LIMIT = 48 * 1024 * 1024  # fits under v7x's 64 MiB per-TC VMEM; plenty for v5e/v6e


# ----------------------------------------------------------------------------
# small helpers
# ----------------------------------------------------------------------------
def _round_up(x, m):
    return ((x + m - 1) // m) * m


def _choose_tile(dim, max_tile, align):
    """Return (tile, padded_dim) with tile | padded_dim and tile % align == 0."""
    padded = _round_up(dim, align)
    if padded <= max_tile:
        return padded, padded
    return max_tile, _round_up(dim, max_tile)


def _divisor_tile(dim, max_tile):
    """Largest multiple of 128 dividing `dim` (dim is a multiple of 128), <= max_tile."""
    t = min(max_tile, dim)
    t -= t % 128
    while dim % t:
        t -= 128
    return t


def _pad2(a, rows, cols):
    r, c = a.shape
    if r == rows and c == cols:
        return a
    return jnp.pad(a, ((0, rows - r), (0, cols - c)))


# in-kernel activations: single EUP op (tanh) per sigmoid instead of exp + reciprocal
def _k_sigmoid(x):
    return 0.5 * (jnp.tanh(0.5 * x) + 1.0)


def _k_silu(x):
    return x * _k_sigmoid(x)


# ----------------------------------------------------------------------------
# Tiled matmul + bias/BN + activation (+ optional fused residual)
# ----------------------------------------------------------------------------
def _mm_body(a_ref, w_ref, b_ref, r_ref, o_ref, acc_ref, act, nk):
    k = pl.program_id(2)

    @pl.when(k == 0)
    def _init():
        acc_ref[...] = jnp.zeros_like(acc_ref)

    acc_ref[...] += jnp.dot(a_ref[...], w_ref[...],
                            preferred_element_type=jnp.float32)

    @pl.when(k == nk - 1)
    def _fin():
        out = acc_ref[...] + b_ref[...]
        if act == "silu":
            out = _k_silu(out)
        elif act == "sigmoid":
            out = _k_sigmoid(out)
        if r_ref is not None:
            out = out + r_ref[...]          # residual added after activation (torch order)
        o_ref[...] = out.astype(o_ref.dtype)


def _mm_kernel(a_ref, w_ref, b_ref, o_ref, acc_ref, *, act, nk):
    _mm_body(a_ref, w_ref, b_ref, None, o_ref, acc_ref, act, nk)


def _mm_res_kernel(a_ref, w_ref, b_ref, r_ref, o_ref, acc_ref, *, act, nk):
    _mm_body(a_ref, w_ref, b_ref, r_ref, o_ref, acc_ref, act, nk)


def matmul_bias_act(a, w, b, act=None, residual=None, out_dtype=jnp.bfloat16):
    """out = act(a @ w + b) [+ residual];  a:(M,K), w:(K,N), b:(N,)."""
    M, K = a.shape
    K2, N = w.shape
    assert K == K2
    TM, Mp = _choose_tile(M, 512, 16)     # 16-sublane alignment for bf16 operands
    TK, Kp = _choose_tile(K, 512, 128)
    TN, Np = _choose_tile(N, 512, 128)    # lane-dense stores

    a_p = _pad2(a.astype(jnp.bfloat16), Mp, Kp)   # cast BEFORE pad -> bf16 HBM traffic
    w_p = _pad2(w.astype(jnp.bfloat16), Kp, Np)
    b_p = jnp.pad(b.astype(jnp.float32), (0, Np - N)).reshape(1, Np)

    grid = (Mp // TM, Np // TN, Kp // TK)
    in_specs = [
        pl.BlockSpec((TM, TK), lambda i, j, k: (i, k)),
        pl.BlockSpec((TK, TN), lambda i, j, k: (k, j)),
        pl.BlockSpec((1, TN), lambda i, j, k: (0, j)),
    ]
    args = [a_p, w_p, b_p]
    if residual is not None:
        r_p = _pad2(residual.astype(jnp.bfloat16), Mp, Np)
        in_specs.append(pl.BlockSpec((TM, TN), lambda i, j, k: (i, j)))
        args.append(r_p)
        kern = functools.partial(_mm_res_kernel, act=act, nk=grid[2])
    else:
        kern = functools.partial(_mm_kernel, act=act, nk=grid[2])

    out = pl.pallas_call(
        kern,
        out_shape=jax.ShapeDtypeStruct((Mp, Np), out_dtype),
        grid=grid,
        in_specs=in_specs,
        out_specs=pl.BlockSpec((TM, TN), lambda i, j, k: (i, j)),
        scratch_shapes=[pltpu.VMEM((TM, TN), jnp.float32)],
        compiler_params=pltpu.CompilerParams(
            dimension_semantics=("parallel", "parallel", "arbitrary"),
            vmem_limit_bytes=VMEM_LIMIT),
    )(*args)
    return out[:M, :N]


# ----------------------------------------------------------------------------
# 1x1 conv + BN + act (matmul over flattened spatial positions)
# ----------------------------------------------------------------------------
def conv1x1_bn_act(x, w2d, bn_scale, bn_shift, act, residual=None):
    """x: (N,H,W,Cp) bf16 lane-padded; w2d: (cin_logical, cout). Returns (N,H,W,CoutP) bf16."""
    N, H, W, Cp = x.shape
    cin, cout = w2d.shape
    CoutP = _round_up(cout, 128)
    wf = jnp.pad(w2d * bn_scale, ((0, Cp - cin), (0, CoutP - cout)))   # fold BN scale
    bv = jnp.pad(bn_shift, (0, CoutP - cout))
    a = x.reshape(N * H * W, Cp)
    r = None if residual is None else residual.reshape(N * H * W, CoutP)
    out = matmul_bias_act(a, wf, bv, act=act, residual=r)
    return out.reshape(N, H, W, CoutP)


# ----------------------------------------------------------------------------
# kxk conv + BN + act via wrapper-side im2col (used for strided convs / stem only)
# ----------------------------------------------------------------------------
def conv_kxk_im2col_bn_act(x, cin, w_hwio, bn_scale, bn_shift, stride, act,
                           residual=None):
    # TODO(synk): strided kxk convs still materialize a kh*kw patch matrix (bf16) in HBM.
    kh, kw, _, cout = w_hwio.shape
    N, H, W, _ = x.shape
    x = x[..., :cin]                       # drop lane padding before building patches
    pad = (kh - 1) // 2
    Ho = (H + 2 * pad - kh) // stride + 1
    Wo = (W + 2 * pad - kw) // stride + 1
    xp = jnp.pad(x, ((0, 0), (pad, pad), (pad, pad), (0, 0)))
    cols = [xp[:, i:i + (Ho - 1) * stride + 1:stride,
               j:j + (Wo - 1) * stride + 1:stride, :]
            for i in range(kh) for j in range(kw)]
    a = jnp.stack(cols, axis=3).reshape(N * Ho * Wo, kh * kw * cin)
    CoutP = _round_up(cout, 128)
    wf = jnp.pad((w_hwio * bn_scale).reshape(kh * kw * cin, cout),
                 ((0, 0), (0, CoutP - cout)))
    bv = jnp.pad(bn_shift, (0, CoutP - cout))
    r = None if residual is None else residual.reshape(N * Ho * Wo, CoutP)
    out = matmul_bias_act(a, wf, bv, act=act, residual=r)
    return out.reshape(N, Ho, Wo, CoutP)


# ----------------------------------------------------------------------------
# Stride-1 kxk conv + BN + act with in-kernel tap accumulation (no im2col)
# ----------------------------------------------------------------------------
def _conv_s1_body(x_ref, w_ref, b_ref, r_ref, o_ref, kh, kw, Ho, Wp, act):
    x = x_ref[...].astype(jnp.float32)      # (Hp*Wp, Cin); upcast once, slice in f32
    w = w_ref[...]                          # (kh*kw, Cin, TN) bf16 (BN scale folded)
    tn = o_ref.shape[-1]
    rows = Ho * Wp
    acc = jnp.zeros((rows, tn), jnp.float32)
    for i in range(kh):
        for j in range(kw):
            start = i * Wp + j
            patch = x[start:start + rows].astype(jnp.bfloat16)   # shifted row window
            acc = acc + jnp.dot(patch, w[i * kw + j],
                                preferred_element_type=jnp.float32)
    out = acc + b_ref[...]
    if act == "silu":
        out = _k_silu(out)
    if r_ref is not None:
        out = out + r_ref[...]              # residual after activation (torch order)
    o_ref[...] = out.astype(o_ref.dtype)


def _conv_s1_kernel(x_ref, w_ref, b_ref, o_ref, *, kh, kw, Ho, Wp, act):
    _conv_s1_body(x_ref, w_ref, b_ref, None, o_ref, kh, kw, Ho, Wp, act)


def _conv_s1_res_kernel(x_ref, w_ref, b_ref, r_ref, o_ref, *, kh, kw, Ho, Wp, act):
    _conv_s1_body(x_ref, w_ref, b_ref, r_ref, o_ref, kh, kw, Ho, Wp, act)


def conv_kxk_s1_bn_act(x, w_hwio, bn_scale, bn_shift, act, residual=None):
    """Stride-1 'same' kxk conv + BN (+act). The padded image stays flat in VMEM; each
    of the kh*kw taps is one MXU matmul into an f32 accumulator.  The kernel computes a
    'wide' output (Wp columns per row); the kw-1 junk columns are sliced off here."""
    N, H, W, Cp = x.shape
    kh, kw, cin, cout = w_hwio.shape
    pad = (kh - 1) // 2
    Ho, Wo = H, W
    Wp = W + 2 * pad
    Hp = Ho + kh            # one extra zero row so the last tap's window stays in range
    CoutP = _round_up(cout, 128)
    TN, Np = _choose_tile(CoutP, 512, 128)

    xp = jnp.pad(x, ((0, 0), (pad, pad + 1), (pad, pad), (0, 0)))
    xflat = xp.reshape(N, Hp * Wp, Cp)

    wf = (w_hwio * bn_scale).reshape(kh * kw, cin, cout)           # fold BN scale
    wf = jnp.pad(wf, ((0, 0), (0, Cp - cin), (0, Np - cout))).astype(jnp.bfloat16)
    bv = jnp.pad(bn_shift.astype(jnp.float32), (0, Np - cout)).reshape(1, Np)

    in_specs = [
        pl.BlockSpec((None, Hp * Wp, Cp), lambda n, j: (n, 0, 0)),
        pl.BlockSpec((kh * kw, Cp, TN), lambda n, j: (0, 0, j)),
        pl.BlockSpec((1, TN), lambda n, j: (0, j)),
    ]
    args = [xflat, wf, bv]
    if residual is not None:
        r = jnp.pad(residual, ((0, 0), (0, 0), (0, Wp - W), (0, Np - CoutP)))
        r = r.reshape(N, Ho * Wp, Np)
        in_specs.append(pl.BlockSpec((None, Ho * Wp, TN), lambda n, j: (n, 0, j)))
        args.append(r)
        kern = functools.partial(_conv_s1_res_kernel, kh=kh, kw=kw, Ho=Ho, Wp=Wp, act=act)
    else:
        kern = functools.partial(_conv_s1_kernel, kh=kh, kw=kw, Ho=Ho, Wp=Wp, act=act)

    out = pl.pallas_call(
        kern,
        out_shape=jax.ShapeDtypeStruct((N, Ho * Wp, Np), jnp.bfloat16),
        grid=(N, Np // TN),
        in_specs=in_specs,
        out_specs=pl.BlockSpec((None, Ho * Wp, TN), lambda n, j: (n, 0, j)),
        compiler_params=pltpu.CompilerParams(
            dimension_semantics=("parallel", "parallel"),
            vmem_limit_bytes=VMEM_LIMIT),
    )(*args)
    out = out.reshape(N, Ho, Wp, Np)[:, :, :Wo, :CoutP]
    return out


# ----------------------------------------------------------------------------
# Depthwise kxk conv + BN + SiLU (stride 1) with fused SE global-average-pool
# ----------------------------------------------------------------------------
def _dw_kernel(x_ref, w_ref, t_ref, o_ref, s_ref, *, k, Ho, Wo):
    x = x_ref[...].astype(jnp.float32)                # (Hp, Wp, C)
    w = w_ref[...]                                    # (k*k, C) f32, BN scale folded
    cols = [x[:, j:j + Wo, :] for j in range(k)]      # reuse column shifts across row taps
    acc = jnp.zeros((Ho, Wo, x.shape[-1]), jnp.float32)
    for i in range(k):
        for j in range(k):
            acc = acc + cols[j][i:i + Ho] * w[i * k + j]
    y = _k_silu(acc + t_ref[...])                     # folded BN shift + SiLU
    o_ref[...] = y.astype(o_ref.dtype)
    # fused SE squeeze: per-image channel sums, avoids re-reading y from HBM
    s_ref[...] = jnp.sum(jnp.sum(y, axis=0), axis=0, keepdims=True)


def depthwise_conv_bn_silu_pool(x, w_kkc, scale, shift, k):
    """Depthwise kxk conv (stride 1, 'same') + BN + SiLU, plus per-image channel sums.
    TODO(synk): stride==1 only; full-image accumulator (row-tile for big resolutions)."""
    N, H, W, Cp = x.shape
    pad = (k - 1) // 2
    xp = jnp.pad(x, ((0, 0), (pad, pad), (pad, pad), (0, 0)))       # bf16
    Hp, Wp = H + 2 * pad, W + 2 * pad
    wf = (w_kkc * scale).astype(jnp.float32)                        # fold BN scale
    t = shift.reshape(1, Cp).astype(jnp.float32)
    y, sums = pl.pallas_call(
        functools.partial(_dw_kernel, k=k, Ho=H, Wo=W),
        out_shape=(jax.ShapeDtypeStruct((N, H, W, Cp), jnp.bfloat16),
                   jax.ShapeDtypeStruct((N, 1, Cp), jnp.float32)),
        grid=(N,),
        in_specs=[
            pl.BlockSpec((None, Hp, Wp, Cp), lambda n: (n, 0, 0, 0)),
            pl.BlockSpec((k * k, Cp), lambda n: (0, 0)),
            pl.BlockSpec((1, Cp), lambda n: (0, 0)),
        ],
        out_specs=(pl.BlockSpec((None, H, W, Cp), lambda n: (n, 0, 0, 0)),
                   pl.BlockSpec((None, 1, Cp), lambda n: (n, 0, 0))),
        compiler_params=pltpu.CompilerParams(
            dimension_semantics=("parallel",),
            vmem_limit_bytes=VMEM_LIMIT),
    )(xp, wf, t)
    return y, sums.reshape(N, Cp)


# ----------------------------------------------------------------------------
# SE gate: tiny FC-only kernel on pre-pooled channel sums
# ----------------------------------------------------------------------------
def _se_fc_kernel(p_ref, w1_ref, b1_ref, w2_ref, b2_ref, g_ref, *, inv_hw):
    pooled = p_ref[...] * inv_hw
    h = jnp.dot(pooled, w1_ref[...], preferred_element_type=jnp.float32) + b1_ref[...]
    h = _k_silu(h)
    g = jnp.dot(h, w2_ref[...], preferred_element_type=jnp.float32) + b2_ref[...]
    g_ref[...] = _k_sigmoid(g).astype(g_ref.dtype)


def se_gate(pool_sums, inv_hw, w1, b1, w2, b2):
    """pool_sums: (N, Cp) f32 channel sums (HW reduction fused into the dw conv)."""
    N, Cp = pool_sums.shape
    sq = w1.shape[1]
    SQp = _round_up(sq, 128)
    w1p = _pad2(w1.astype(jnp.float32), Cp, SQp)
    b1p = jnp.pad(b1.astype(jnp.float32), (0, SQp - sq)).reshape(1, SQp)
    w2p = _pad2(w2.astype(jnp.float32), SQp, Cp)
    b2p = jnp.pad(b2.astype(jnp.float32), (0, Cp - w2.shape[1])).reshape(1, Cp)
    return pl.pallas_call(
        functools.partial(_se_fc_kernel, inv_hw=inv_hw),
        out_shape=jax.ShapeDtypeStruct((N, Cp), jnp.bfloat16),
        grid=(1,),
        in_specs=[
            pl.BlockSpec((N, Cp), lambda i: (0, 0)),
            pl.BlockSpec((Cp, SQp), lambda i: (0, 0)),
            pl.BlockSpec((1, SQp), lambda i: (0, 0)),
            pl.BlockSpec((SQp, Cp), lambda i: (0, 0)),
            pl.BlockSpec((1, Cp), lambda i: (0, 0)),
        ],
        out_specs=pl.BlockSpec((N, Cp), lambda i: (0, 0)),
        compiler_params=pltpu.CompilerParams(
            dimension_semantics=("arbitrary",),
            vmem_limit_bytes=VMEM_LIMIT),
    )(pool_sums, w1p, b1p, w2p, b2p)


# ----------------------------------------------------------------------------
# Fused SE-scale + 1x1 project conv + BN (+ residual)
# ----------------------------------------------------------------------------
def _se_proj_body(x_ref, g_ref, w_ref, b_ref, r_ref, o_ref, acc_ref, nk):
    k = pl.program_id(3)

    @pl.when(k == 0)
    def _init():
        acc_ref[...] = jnp.zeros_like(acc_ref)

    a = x_ref[...] * g_ref[...]                       # bf16 SE scaling on the MXU feed
    acc_ref[...] += jnp.dot(a, w_ref[...], preferred_element_type=jnp.float32)

    @pl.when(k == nk - 1)
    def _fin():
        out = acc_ref[...] + b_ref[...]
        if r_ref is not None:
            out = out + r_ref[...]                    # fused residual add
        o_ref[...] = out.astype(o_ref.dtype)


def _se_proj_kernel(x_ref, g_ref, w_ref, b_ref, o_ref, acc_ref, *, nk):
    _se_proj_body(x_ref, g_ref, w_ref, b_ref, None, o_ref, acc_ref, nk)


def _se_proj_res_kernel(x_ref, g_ref, w_ref, b_ref, r_ref, o_ref, acc_ref, *, nk):
    _se_proj_body(x_ref, g_ref, w_ref, b_ref, r_ref, o_ref, acc_ref, nk)


def se_scale_project_bn(x, gate, w2d, bn_scale, bn_shift, residual=None):
    """(x * gate) -> 1x1 conv + BN (no act) [+ residual]. x:(N,H,W,Cp) bf16, gate:(N,Cp) bf16."""
    N, H, W, Cp = x.shape
    HW = H * W
    cin, cout = w2d.shape
    CoutP = _round_up(cout, 128)
    TK = _divisor_tile(Cp, 512)
    TN, Np = _choose_tile(CoutP, 512, 128)
    THW, HWp = _choose_tile(HW, 512, 8)

    wf = jnp.pad(w2d * bn_scale, ((0, Cp - cin), (0, Np - cout))).astype(jnp.bfloat16)
    bv = jnp.pad(bn_shift.astype(jnp.float32), (0, Np - cout)).reshape(1, Np)

    x3 = x.reshape(N, HW, Cp)
    if HWp != HW:
        x3 = jnp.pad(x3, ((0, 0), (0, HWp - HW), (0, 0)))
    g3 = gate.reshape(N, 1, Cp)

    nk = Cp // TK
    grid = (N, HWp // THW, Np // TN, nk)
    in_specs = [
        pl.BlockSpec((None, THW, TK), lambda n, h, j, k: (n, h, k)),
        pl.BlockSpec((None, 1, TK), lambda n, h, j, k: (n, 0, k)),
        pl.BlockSpec((TK, TN), lambda n, h, j, k: (k, j)),
        pl.BlockSpec((1, TN), lambda n, h, j, k: (0, j)),
    ]
    args = [x3, g3, wf, bv]
    if residual is not None:
        r3 = residual.reshape(N, HW, CoutP)
        if HWp != HW or Np != CoutP:
            r3 = jnp.pad(r3, ((0, 0), (0, HWp - HW), (0, Np - CoutP)))
        in_specs.append(pl.BlockSpec((None, THW, TN), lambda n, h, j, k: (n, h, j)))
        args.append(r3)
        kern = functools.partial(_se_proj_res_kernel, nk=nk)
    else:
        kern = functools.partial(_se_proj_kernel, nk=nk)

    out = pl.pallas_call(
        kern,
        out_shape=jax.ShapeDtypeStruct((N, HWp, Np), jnp.bfloat16),
        grid=grid,
        in_specs=in_specs,
        out_specs=pl.BlockSpec((None, THW, TN), lambda n, h, j, k: (n, h, j)),
        scratch_shapes=[pltpu.VMEM((THW, TN), jnp.float32)],
        compiler_params=pltpu.CompilerParams(
            dimension_semantics=("parallel", "parallel", "parallel", "arbitrary"),
            vmem_limit_bytes=VMEM_LIMIT),
    )(*args)
    if HWp != HW or Np != CoutP:
        out = out[:, :HW, :CoutP]
    return out.reshape(N, H, W, CoutP)


# ----------------------------------------------------------------------------
# Fused head 1x1 conv + BN + SiLU + global average pool
# ----------------------------------------------------------------------------
def _head_pool_kernel(x_ref, w_ref, b_ref, o_ref, acc_ref, *, nk, inv_hw):
    k = pl.program_id(2)

    @pl.when(k == 0)
    def _init():
        acc_ref[...] = jnp.zeros_like(acc_ref)

    acc_ref[...] += jnp.dot(x_ref[...], w_ref[...],
                            preferred_element_type=jnp.float32)

    @pl.when(k == nk - 1)
    def _fin():
        y = _k_silu(acc_ref[...] + b_ref[...])
        o_ref[...] = jnp.sum(y, axis=0, keepdims=True) * inv_hw


def head_conv_pool(x, w2d, bn_scale, bn_shift):
    """Head Conv1x1 + BN + SiLU + AdaptiveAvgPool2d(1) fused: (N,H,W,Cp) -> (N, CoutP) f32."""
    N, H, W, Cp = x.shape
    HW = H * W
    cin, cout = w2d.shape
    CoutP = _round_up(cout, 128)
    TK = _divisor_tile(Cp, 512)
    TN, Np = _choose_tile(CoutP, 512, 128)
    wf = jnp.pad(w2d * bn_scale, ((0, Cp - cin), (0, Np - cout))).astype(jnp.bfloat16)
    bv = jnp.pad(bn_shift.astype(jnp.float32), (0, Np - cout)).reshape(1, Np)
    x3 = x.reshape(N, HW, Cp)
    nk = Cp // TK
    out = pl.pallas_call(
        functools.partial(_head_pool_kernel, nk=nk, inv_hw=1.0 / HW),
        out_shape=jax.ShapeDtypeStruct((N, 1, Np), jnp.float32),
        grid=(N, Np // TN, nk),
        in_specs=[
            pl.BlockSpec((None, HW, TK), lambda n, j, k: (n, 0, k)),
            pl.BlockSpec((TK, TN), lambda n, j, k: (k, j)),
            pl.BlockSpec((1, TN), lambda n, j, k: (0, j)),
        ],
        out_specs=pl.BlockSpec((None, 1, TN), lambda n, j, k: (n, 0, j)),
        scratch_shapes=[pltpu.VMEM((HW, TN), jnp.float32)],
        compiler_params=pltpu.CompilerParams(
            dimension_semantics=("parallel", "parallel", "arbitrary"),
            vmem_limit_bytes=VMEM_LIMIT),
    )(x3, wf, bv)
    return out.reshape(N, Np)[:, :CoutP]


# ----------------------------------------------------------------------------
# Parameter initialization (deterministic, mirrors the torch module's init)
# ----------------------------------------------------------------------------
def _make_divisible(v, divisor=8, min_value=None):
    if min_value is None:
        min_value = divisor
    new_v = max(min_value, int(v + divisor / 2) // divisor * divisor)
    if new_v < 0.9 * v:
        new_v += divisor
    return new_v


def _bn(cout):
    # eval-mode BN with fresh stats: y = x / sqrt(1 + eps)
    scale = jnp.full((cout,), 1.0 / math.sqrt(1.0 + BN_EPS), jnp.float32)
    shift = jnp.zeros((cout,), jnp.float32)
    return scale, shift


def _kaiming_conv(key, kh, kw, cin, cout):
    std = math.sqrt(2.0 / (cout * kh * kw))              # fan_out mode
    return jax.random.normal(key, (kh, kw, cin, cout), jnp.float32) * std


def init_params(key, settings, num_classes, last_channel=None):
    keys = iter(jax.random.split(key, 128))
    params = {}
    c0 = settings[0]["in_ch"]
    params["stem_w"] = _kaiming_conv(next(keys), 3, 3, 3, c0)
    params["stem_bn"] = _bn(c0)

    blocks = []
    for cnf in settings:
        for li in range(cnf["num_layers"]):
            in_ch = cnf["in_ch"] if li == 0 else cnf["out_ch"]
            stride = cnf["stride"] if li == 0 else 1
            out_ch, k = cnf["out_ch"], cnf["kernel"]
            exp = _make_divisible(in_ch * cnf["expand_ratio"])
            bp = dict(type=cnf["block"], in_ch=in_ch, out_ch=out_ch,
                      stride=stride, kernel=k, exp=exp)
            if cnf["block"] == "fused":
                if exp != in_ch:
                    bp["w_expand"] = _kaiming_conv(next(keys), k, k, in_ch, exp)
                    bp["bn_expand"] = _bn(exp)
                    bp["w_project"] = _kaiming_conv(next(keys), 1, 1, exp, out_ch)
                    bp["bn_project"] = _bn(out_ch)
                else:
                    bp["w_main"] = _kaiming_conv(next(keys), k, k, in_ch, out_ch)
                    bp["bn_main"] = _bn(out_ch)
            else:  # MBConv
                if exp != in_ch:
                    bp["w_expand"] = _kaiming_conv(next(keys), 1, 1, in_ch, exp)
                    bp["bn_expand"] = _bn(exp)
                std = math.sqrt(2.0 / (exp * k * k))
                bp["w_dw"] = jax.random.normal(next(keys), (k * k, exp), jnp.float32) * std
                bp["bn_dw"] = _bn(exp)
                sq = max(1, in_ch // 4)
                bp["se_w1"] = jax.random.normal(next(keys), (exp, sq), jnp.float32) * math.sqrt(2.0 / sq)
                bp["se_b1"] = jnp.zeros((sq,), jnp.float32)
                bp["se_w2"] = jax.random.normal(next(keys), (sq, exp), jnp.float32) * math.sqrt(2.0 / exp)
                bp["se_b2"] = jnp.zeros((exp,), jnp.float32)
                bp["w_project"] = _kaiming_conv(next(keys), 1, 1, exp, out_ch)
                bp["bn_project"] = _bn(out_ch)
            blocks.append(bp)
    params["blocks"] = blocks

    last_in = settings[-1]["out_ch"]
    last_out = last_channel if last_channel is not None else 4 * last_in
    params["head_w"] = _kaiming_conv(next(keys), 1, 1, last_in, last_out)
    params["head_bn"] = _bn(last_out)
    ir = 1.0 / math.sqrt(num_classes)
    params["fc_w"] = jax.random.uniform(next(keys), (last_out, num_classes),
                                        jnp.float32, -ir, ir)
    params["fc_b"] = jnp.zeros((num_classes,), jnp.float32)
    return params


# ----------------------------------------------------------------------------
# Forward pass
# ----------------------------------------------------------------------------
def efficientnet_forward(params, x_nchw):
    # NCHW -> NHWC; activations carried as bf16 with channels lane-padded to 128
    x = jnp.transpose(x_nchw, (0, 2, 3, 1)).astype(jnp.bfloat16)

    s, t = params["stem_bn"]
    x = conv_kxk_im2col_bn_act(x, 3, params["stem_w"], s, t, stride=2, act="silu")

    for bp in params["blocks"]:
        inp = x
        use_res = bp["stride"] == 1 and bp["in_ch"] == bp["out_ch"]
        if bp["type"] == "fused":
            if "w_main" in bp:
                s, t = bp["bn_main"]
                if bp["stride"] == 1:
                    x = conv_kxk_s1_bn_act(x, bp["w_main"], s, t, act="silu",
                                           residual=inp if use_res else None)
                else:
                    x = conv_kxk_im2col_bn_act(x, bp["in_ch"], bp["w_main"], s, t,
                                               stride=bp["stride"], act="silu")
            else:
                s, t = bp["bn_expand"]
                if bp["stride"] == 1:
                    x = conv_kxk_s1_bn_act(x, bp["w_expand"], s, t, act="silu")
                else:
                    x = conv_kxk_im2col_bn_act(x, bp["in_ch"], bp["w_expand"], s, t,
                                               stride=bp["stride"], act="silu")
                s, t = bp["bn_project"]
                x = conv1x1_bn_act(x, bp["w_project"].reshape(bp["exp"], bp["out_ch"]),
                                   s, t, act=None, residual=inp if use_res else None)
        else:  # MBConv: expand -> depthwise (+fused SE pool) -> SE FCs -> scale+project
            if "w_expand" in bp:
                s, t = bp["bn_expand"]
                x = conv1x1_bn_act(x, bp["w_expand"].reshape(bp["in_ch"], bp["exp"]),
                                   s, t, act="silu")
            Cp = x.shape[-1]
            exp = bp["exp"]
            s, t = bp["bn_dw"]
            wdw = jnp.pad(bp["w_dw"], ((0, 0), (0, Cp - exp)))
            sp = jnp.pad(s, (0, Cp - exp))
            tp = jnp.pad(t, (0, Cp - exp))
            # TODO(synk): depthwise kernel supports stride==1 only (true for this config)
            y, sums = depthwise_conv_bn_silu_pool(x, wdw, sp, tp, bp["kernel"])
            gate = se_gate(sums, 1.0 / (y.shape[1] * y.shape[2]),
                           bp["se_w1"], bp["se_b1"], bp["se_w2"], bp["se_b2"])
            s, t = bp["bn_project"]
            x = se_scale_project_bn(y, gate,
                                    bp["w_project"].reshape(exp, bp["out_ch"]),
                                    s, t, residual=inp if use_res else None)
        # StochasticDepth is identity at inference; residuals fused into epilogues.

    s, t = params["head_bn"]
    last_in, last_out = params["head_w"].shape[2], params["head_w"].shape[3]
    feat = head_conv_pool(x, params["head_w"].reshape(last_in, last_out), s, t)

    # classifier: Dropout (identity at eval) + Linear
    lastP = feat.shape[-1]
    fc_wp = jnp.pad(params["fc_w"], ((0, lastP - params["fc_w"].shape[0]), (0, 0)))
    logits = matmul_bias_act(feat, fc_wp, params["fc_b"], act=None,
                             out_dtype=jnp.float32)
    return logits


# ----------------------------------------------------------------------------
if __name__ == "__main__":
    # Small EfficientNet-V2-style config: FusedMBConv x2 stages + MBConv stage.
    settings = [
        dict(block="fused",  expand_ratio=1, kernel=3, stride=1, in_ch=8,  out_ch=8,  num_layers=1),
        dict(block="fused",  expand_ratio=4, kernel=3, stride=2, in_ch=8,  out_ch=16, num_layers=1),
        dict(block="mbconv", expand_ratio=4, kernel=3, stride=1, in_ch=16, out_ch=16, num_layers=1),
    ]
    num_classes = 10

    key = jax.random.PRNGKey(0)
    pkey, xkey = jax.random.split(key)
    params = init_params(pkey, settings, num_classes)

    x = jax.random.normal(xkey, (2, 3, 16, 16), jnp.float32)   # NCHW, like torch

    fwd = jax.jit(lambda inp: efficientnet_forward(params, inp))
    out = fwd(x)
    jax.block_until_ready(out)
    assert out.shape == (2, num_classes), out.shape
    print("KERNEL_OK")
</pallas_src>

<mosaic_0001>
module attributes {stable_mosaic.version = 11 : i64} {
  func.func @_mm_kernel(%arg0: i32, %arg1: i32, %arg2: i32, %arg3: memref<128x128xbf16, #tpu.memory_space<vmem>>, %arg4: memref<128x128xbf16, #tpu.memory_space<vmem>>, %arg5: memref<1x128xf32, #tpu.memory_space<vmem>>, %arg6: memref<128x128xbf16, #tpu.memory_space<vmem>>, %arg7: memref<128x128xf32, #tpu.memory_space<vmem>>) attributes {dimension_semantics = [#tpu.dimension_semantics<parallel>, #tpu.dimension_semantics<parallel>, #tpu.dimension_semantics<arbitrary>], iteration_bounds = array<i64: 1, 1, 1>, scalar_prefetch = 0 : i64, scratch_operands = 1 : i64, tpu.core_type = #tpu.core_type<tc>, window_params = [{transform_indices = @transform_0, window_bounds = array<i64: 128, 128>}, {transform_indices = @transform_1, window_bounds = array<i64: 128, 128>}, {transform_indices = @transform_2, window_bounds = array<i64: 1, 128>}, {transform_indices = @transform_3, window_bounds = array<i64: 128, 128>}]} {
    %c0_i32 = arith.constant 0 : i32
    %0 = arith.cmpi eq, %arg2, %c0_i32 : i32
    %1 = arith.extui %0 : i1 to i32
    %c0_i32_0 = arith.constant 0 : i32
    %2 = arith.cmpi ne, %1, %c0_i32_0 : i32
    scf.if %2 {
      %cst_10 = arith.constant 0.000000e+00 : f32
      %12 = vector.broadcast %cst_10 : f32 to vector<128x128xf32>
      %c0_11 = arith.constant 0 : index
      %c0_12 = arith.constant 0 : index
      %13 = vector.load %arg7[%c0_11, %c0_12] : memref<128x128xf32, #tpu.memory_space<vmem>>, vector<128x128xf32>
      tpu.vector_store %arg7[%c0_11, %c0_12], %12 {strides = array<i32>} : memref<128x128xf32, #tpu.memory_space<vmem>>, vector<128x128xf32>,
    } else {
    }
    %c0 = arith.constant 0 : index
    %c0_1 = arith.constant 0 : index
    %3 = vector.load %arg7[%c0, %c0_1] : memref<128x128xf32, #tpu.memory_space<vmem>>, vector<128x128xf32>
    %c0_2 = arith.constant 0 : index
    %c0_3 = arith.constant 0 : index
    %4 = vector.load %arg3[%c0_2, %c0_3] : memref<128x128xbf16, #tpu.memory_space<vmem>>, vector<128x128xbf16>
    %c0_4 = arith.constant 0 : index
    %c0_5 = arith.constant 0 : index
    %5 = vector.load %arg4[%c0_4, %c0_5] : memref<128x128xbf16, #tpu.memory_space<vmem>>, vector<128x128xbf16>
    %cst = arith.constant dense<0.000000e+00> : vector<128x128xf32>
    %6 = tpu.matmul %4, %5, %cst {dimension_numbers = #tpu.dot_dimension_numbers<[1], [0], [0], [1], [0, 0, 1, 1], [], []>} : vector<128x128xbf16>, vector<128x128xbf16>, vector<128x128xf32> -> vector<128x128xf32>
    %7 = arith.addf %3, %6 : vector<128x128xf32>
    %c0_6 = arith.constant 0 : index
    %c0_7 = arith.constant 0 : index
    %8 = vector.load %arg7[%c0_6, %c0_7] : memref<128x128xf32, #tpu.memory_space<vmem>>, vector<128x128xf32>
    tpu.vector_store %arg7[%c0_6, %c0_7], %7 {strides = array<i32>} : memref<128x128xf32, #tpu.memory_space<vmem>>, vector<128x128xf32>,
    %c0_i32_8 = arith.constant 0 : i32
    %9 = arith.cmpi eq, %arg2, %c0_i32_8 : i32
    %10 = arith.extui %9 : i1 to i32
    %c0_i32_9 = arith.constant 0 : i32
    %11 = arith.cmpi ne, %10, %c0_i32_9 : i32
    scf.if %11 {
      %c0_10 = arith.constant 0 : index
      %c0_11 = arith.constant 0 : index
      %12 = vector.load %arg7[%c0_10, %c0_11] : memref<128x128xf32, #tpu.memory_space<vmem>>, vector<128x128xf32>
      %c0_12 = arith.constant 0 : index
      %c0_13 = arith.constant 0 : index
      %13 = vector.load %arg5[%c0_12, %c0_13] : memref<1x128xf32, #tpu.memory_space<vmem>>, vector<1x128xf32>
      %14 = vector.broadcast %13 : vector<1x128xf32> to vector<128x128xf32>
      %15 = arith.addf %12, %14 : vector<128x128xf32>
      %cst_14 = arith.constant 5.000000e-01 : f32
      %16 = vector.broadcast %cst_14 : f32 to vector<128x128xf32>
      %17 = arith.mulf %16, %15 : vector<128x128xf32>
      %18 = math.tanh %17 : vector<128x128xf32>
      %cst_15 = arith.constant 1.000000e+00 : f32
      %19 = vector.broadcast %cst_15 : f32 to vector<128x128xf32>
      %20 = arith.addf %18, %19 : vector<128x128xf32>
      %cst_16 = arith.constant 5.000000e-01 : f32
      %21 = vector.broadcast %cst_16 : f32 to vector<128x128xf32>
      %22 = arith.mulf %21, %20 : vector<128x128xf32>
      %23 = arith.mulf %15, %22 : vector<128x128xf32>
      %24 = arith.truncf %23 : vector<128x128xf32> to vector<128x128xbf16>
      %c0_17 = arith.constant 0 : index
      %c0_18 = arith.constant 0 : index
      %25 = vector.load %arg6[%c0_17, %c0_18] : memref<128x128xbf16, #tpu.memory_space<vmem>>, vector<128x128xbf16>
      tpu.vector_store %arg6[%c0_17, %c0_18], %24 {strides = array<i32>} : memref<128x128xbf16, #tpu.memory_space<vmem>>, vector<128x128xbf16>,
    } else {
    }
    return
  }
  func.func @transform_0(%arg0: i32, %arg1: i32, %arg2: i32) -> (i32, i32) {
    %c0_i32 = arith.constant 0 : i32
    return %arg0, %arg2 : i32, i32
  }
  func.func @transform_1(%arg0: i32, %arg1: i32, %arg2: i32) -> (i32, i32) {
    %c0_i32 = arith.constant 0 : i32
    return %arg2, %arg1 : i32, i32
  }
  func.func @transform_2(%arg0: i32, %arg1: i32, %arg2: i32) -> (i32, i32) {
    %c0_i32 = arith.constant 0 : i32
    %c0_i32_0 = arith.constant 0 : i32
    return %c0_i32, %arg1 : i32, i32
  }
  func.func @transform_3(%arg0: i32, %arg1: i32, %arg2: i32) -> (i32, i32) {
    %c0_i32 = arith.constant 0 : i32
    return %arg0, %arg1 : i32, i32
  }
}

module attributes {stable_mosaic.version = 11 : i64} {
  func.func @_conv_s1_res_kernel(%arg0: i32, %arg1: i32, %arg2: memref<1x110x128xbf16, #tpu.memory_space<vmem>>, %arg3: memref<9x128x128xbf16, #tpu.memory_space<vmem>>, %arg4: memref<1x128xf32, #tpu.memory_space<vmem>>, %arg5: memref<1x80x128xbf16, #tpu.memory_space<vmem>>, %arg6: memref<1x80x128xbf16, #tpu.memory_space<vmem>>) attributes {dimension_semantics = [#tpu.dimension_semantics<parallel>, #tpu.dimension_semantics<parallel>], iteration_bounds = array<i64: 2, 1>, scalar_prefetch = 0 : i64, scratch_operands = 0 : i64, tpu.core_type = #tpu.core_type<tc>, window_params = [{transform_indices = @transform_0, window_bounds = array<i64: 1, 110, 128>}, {transform_indices = @transform_1, window_bounds = array<i64: 9, 128, 128>}, {transform_indices = @transform_2, window_bounds = array<i64: 1, 128>}, {transform_indices = @transform_3, window_bounds = array<i64: 1, 80, 128>}, {transform_indices = @transform_4, window_bounds = array<i64: 1, 80, 128>}]} {
    %c0 = arith.constant 0 : index
    %c0_0 = arith.constant 0 : index
    %c0_1 = arith.constant 0 : index
    %0 = vector.load %arg2[%c0, %c0_0, %c0_1] : memref<1x110x128xbf16, #tpu.memory_space<vmem>>, vector<1x110x128xbf16>
    %1 = vector.shape_cast %0 : vector<1x110x128xbf16> to vector<110x128xbf16>
    %2 = arith.extf %1 : vector<110x128xbf16> to vector<110x128xf32>
    %c0_2 = arith.constant 0 : index
    %c0_3 = arith.constant 0 : index
    %c0_4 = arith.constant 0 : index
    %3 = vector.load %arg3[%c0_2, %c0_3, %c0_4] : memref<9x128x128xbf16, #tpu.memory_space<vmem>>, vector<9x128x128xbf16>
    %cst = arith.constant 0.000000e+00 : f32
    %4 = vector.broadcast %cst : f32 to vector<80x128xf32>
    %5 = vector.extract_strided_slice %2 {offsets = [0, 0], sizes = [80, 128], strides = [1, 1]} : vector<110x128xf32> to vector<80x128xf32>
    %6 = arith.truncf %5 : vector<80x128xf32> to vector<80x128xbf16>
    %7 = vector.extract_strided_slice %3 {offsets = [0, 0, 0], sizes = [1, 128, 128], strides = [1, 1, 1]} : vector<9x128x128xbf16> to vector<1x128x128xbf16>
    %8 = vector.shape_cast %7 : vector<1x128x128xbf16> to vector<128x128xbf16>
    %cst_5 = arith.constant dense<0.000000e+00> : vector<80x128xf32>
    %9 = tpu.matmul %6, %8, %cst_5 {dimension_numbers = #tpu.dot_dimension_numbers<[1], [0], [0], [1], [0, 0, 1, 1], [], []>} : vector<80x128xbf16>, vector<128x128xbf16>, vector<80x128xf32> -> vector<80x128xf32>
    %10 = arith.addf %4, %9 : vector<80x128xf32>
    %11 = vector.extract_strided_slice %2 {offsets = [1, 0], sizes = [80, 128], strides = [1, 1]} : vector<110x128xf32> to vector<80x128xf32>
    %12 = arith.truncf %11 : vector<80x128xf32> to vector<80x128xbf16>
    %13 = vector.extract_strided_slice %3 {offsets = [1, 0, 0], sizes = [1, 128, 128], strides = [1, 1, 1]} : vector<9x128x128xbf16> to vector<1x128x128xbf16>
    %14 = vector.shape_cast %13 : vector<1x128x128xbf16> to vector<128x128xbf16>
    %cst_6 = arith.constant dense<0.000000e+00> : vector<80x128xf32>
    %15 = tpu.matmul %12, %14, %cst_6 {dimension_numbers = #tpu.dot_dimension_numbers<[1], [0], [0], [1], [0, 0, 1, 1], [], []>} : vector<80x128xbf16>, vector<128x128xbf16>, vector<80x128xf32> -> vector<80x128xf32>
    %16 = arith.addf %10, %15 : vector<80x128xf32>
    %17 = vector.extract_strided_slice %2 {offsets = [2, 0], sizes = [80, 128], strides = [1, 1]} : vector<110x128xf32> to vector<80x128xf32>
    %18 = arith.truncf %17 : vector<80x128xf32> to vector<80x128xbf16>
    %19 = vector.extract_strided_slice %3 {offsets = [2, 0, 0], sizes = [1, 128, 128], strides = [1, 1, 1]} : vector<9x128x128xbf16> to vector<1x128x128xbf16>
    %20 = vector.shape_cast %19 : vector<1x128x128xbf16> to vector<128x128xbf16>
    %cst_7 = arith.constant dense<0.000000e+00> : vector<80x128xf32>
    %21 = tpu.matmul %18, %20, %cst_7 {dimension_numbers = #tpu.dot_dimension_numbers<[1], [0], [0], [1], [0, 0, 1, 1], [], []>} : vector<80x128xbf16>, vector<128x128xbf16>, vector<80x128xf32> -> vector<80x128xf32>
    %22 = arith.addf %16, %21 : vector<80x128xf32>
    %23 = vector.extract_strided_slice %2 {offsets = [10, 0], sizes = [80, 128], strides = [1, 1]} : vector<110x128xf32> to vector<80x128xf32>
    %24 = arith.truncf %23 : vector<80x128xf32> to vector<80x128xbf16>
    %25 = vector.extract_strided_slice %3 {offsets = [3, 0, 0], sizes = [1, 128, 128], strides = [1, 1, 1]} : vector<9x128x128xbf16> to vector<1x128x128xbf16>
    %26 = vector.shape_cast %25 : vector<1x128x128xbf16> to vector<128x128xbf16>
    %cst_8 = arith.constant dense<0.000000e+00> : vector<80x128xf32>
    %27 = tpu.matmul %24, %26, %cst_8 {dimension_numbers = #tpu.dot_dimension_numbers<[1], [0], [0], [1], [0, 0, 1, 1], [], []>} : vector<80x128xbf16>, vector<128x128xbf16>, vector<80x128xf32> -> vector<80x128xf32>
    %28 = arith.addf %22, %27 : vector<80x128xf32>
    %29 = vector.extract_strided_slice %2 {offsets = [11, 0], sizes = [80, 128], strides = [1, 1]} : vector<110x128xf32> to vector<80x128xf32>
    %30 = arith.truncf %29 : vector<80x128xf32> to vector<80x128xbf16>
    %31 = vector.extract_strided_slice %3 {offsets = [4, 0, 0], sizes = [1, 128, 128], strides = [1, 1, 1]} : vector<9x128x128xbf16> to vector<1x128x128xbf16>
    %32 = vector.shape_cast %31 : vector<1x128x128xbf16> to vector<128x128xbf16>
    %cst_9 = arith.constant dense<0.000000e+00> : vector<80x128xf32>
    %33 = tpu.matmul %30, %32, %cst_9 {dimension_numbers = #tpu.dot_dimension_numbers<[1], [0], [0], [1], [0, 0, 1, 1], [], []>} : vector<80x128xbf16>, vector<128x128xbf16>, vector<80x128xf32> -> vector<80x128xf32>
    %34 = arith.addf %28, %33 : vector<80x128xf32>
    %35 = vector.extract_strided_slice %2 {offsets = [12, 0], sizes = [80, 128], strides = [1, 1]} : vector<110x128xf32> to vector<80x128xf32>
    %36 = arith.truncf %35 : vector<80x128xf32> to vector<80x128xbf16>
    %37 = vector.extract_strided_slice %3 {offsets = [5, 0, 0], sizes = [1, 128, 128], strides = [1, 1, 1]} : vector<9x128x128xbf16> to vector<1x128x128xbf16>
    %38 = vector.shape_cast %37 : vector<1x128x128xbf16> to vector<128x128xbf16>
    %cst_10 = arith.constant dense<0.000000e+00> : vector<80x128xf32>
    %39 = tpu.matmul %36, %38, %cst_10 {dimension_numbers = #tpu.dot_dimension_numbers<[1], [0], [0], [1], [0, 0, 1, 1], [], []>} : vector<80x128xbf16>, vector<128x128xbf16>, vector<80x128xf32> -> vector<80x128xf32>
    %40 = arith.addf %34, %39 : vector<80x128xf32>
    %41 = vector.extract_strided_slice %2 {offsets = [20, 0], sizes = [80, 128], strides = [1, 1]} : vector<110x128xf32> to vector<80x128xf32>
    %42 = arith.truncf %41 : vector<80x128xf32> to vector<80x128xbf16>
    %43 = vector.extract_strided_slice %3 {offsets = [6, 0, 0], sizes = [1, 128, 128], strides = [1, 1, 1]} : vector<9x128x128xbf16> to vector<1x128x128xbf16>
    %44 = vector.shape_cast %43 : vector<1x128x128xbf16> to vector<128x128xbf16>
    %cst_11 = arith.constant dense<0.000000e+00> : vector<80x128xf32>
    %45 = tpu.matmul %42, %44, %cst_11 {dimension_numbers = #tpu.dot_dimension_numbers<[1], [0], [0], [1], [0, 0, 1, 1], [], []>} : vector<80x128xbf16>, vector<128x128xbf16>, vector<80x128xf32> -> vector<80x128xf32>
    %46 = arith.addf %40, %45 : vector<80x128xf32>
    %47 = vector.extract_strided_slice %2 {offsets = [21, 0], sizes = [80, 128], strides = [1, 1]} : vector<110x128xf32> to vector<80x128xf32>
    %48 = arith.truncf %47 : vector<80x128xf32> to vector<80x128xbf16>
    %49 = vector.extract_strided_slice %3 {offsets = [7, 0, 0], sizes = [1, 128, 128], strides = [1, 1, 1]} : vector<9x128x128xbf16> to vector<1x128x128xbf16>
    %50 = vector.shape_cast %49 : vector<1x128x128xbf16> to vector<128x128xbf16>
    %cst_12 = arith.constant dense<0.000000e+00> : vector<80x128xf32>
    %51 = tpu.matmul %48, %50, %cst_12 {dimension_numbers = #tpu.dot_dimension_numbers<[1], [0], [0], [1], [0, 0, 1, 1], [], []>} : vector<80x128xbf16>, vector<128x128xbf16>, vector<80x128xf32> -> vector<80x128xf32>
    %52 = arith.addf %46, %51 : vector<80x128xf32>
    %53 = vector.extract_strided_slice %2 {offsets = [22, 0], sizes = [80, 128], strides = [1, 1]} : vector<110x128xf32> to vector<80x128xf32>
    %54 = arith.truncf %53 : vector<80x128xf32> to vector<80x128xbf16>
    %55 = vector.extract_strided_slice %3 {offsets = [8, 0, 0], sizes = [1, 128, 128], strides = [1, 1, 1]} : vector<9x128x128xbf16> to vector<1x128x128xbf16>
    %56 = vector.shape_cast %55 : vector<1x128x128xbf16> to vector<128x128xbf16>
    %cst_13 = arith.constant dense<0.000000e+00> : vector<80x128xf32>
    %57 = tpu.matmul %54, %56, %cst_13 {dimension_numbers = #tpu.dot_dimension_numbers<[1], [0], [0], [1], [0, 0, 1, 1], [], []>} : vector<80x128xbf16>, vector<128x128xbf16>, vector<80x128xf32> -> vector<80x128xf32>
    %58 = arith.addf %52, %57 : vector<80x128xf32>
    %c0_14 = arith.constant 0 : index
    %c0_15 = arith.constant 0 : index
    %59 = vector.load %arg4[%c0_14, %c0_15] : memref<1x128xf32, #tpu.memory_space<vmem>>, vector<1x128xf32>
    %60 = vector.broadcast %59 : vector<1x128xf32> to vector<80x128xf32>
    %61 = arith.addf %58, %60 : vector<80x128xf32>
    %cst_16 = arith.constant 5.000000e-01 : f32
    %62 = vector.broadcast %cst_16 : f32 to vector<80x128xf32>
    %63 = arith.mulf %62, %61 : vector<80x128xf32>
    %64 = math.tanh %63 : vector<80x128xf32>
    %cst_17 = arith.constant 1.000000e+00 : f32
    %65 = vector.broadcast %cst_17 : f32 to vector<80x128xf32>
    %66 = arith.addf %64, %65 : vector<80x128xf32>
    %cst_18 = arith.constant 5.000000e-01 : f32
    %67 = vector.broadcast %cst_18 : f32 to vector<80x128xf32>
    %68 = arith.mulf %67, %66 : vector<80x128xf32>
    %69 = arith.mulf %61, %68 : vector<80x128xf32>
    %c0_19 = arith.constant 0 : index
    %c0_20 = arith.constant 0 : index
    %c0_21 = arith.constant 0 : index
    %70 = vector.load %arg5[%c0_19, %c0_20, %c0_21] : memref<1x80x128xbf16, #tpu.memory_space<vmem>>, vector<1x80x128xbf16>
    %71 = vector.shape_cast %70 : vector<1x80x128xbf16> to vector<80x128xbf16>
    %72 = arith.extf %71 : vector<80x128xbf16> to vector<80x128xf32>
    %73 = arith.addf %69, %72 : vector<80x128xf32>
    %74 = arith.truncf %73 : vector<80x128xf32> to vector<80x128xbf16>
    %c0_22 = arith.constant 0 : index
    %c0_23 = arith.constant 0 : index
    %c0_24 = arith.constant 0 : index
    %75 = vector.load %arg6[%c0_22, %c0_23, %c0_24] : memref<1x80x128xbf16, #tpu.memory_space<vmem>>, vector<1x80x128xbf16>
    %76 = vector.shape_cast %75 : vector<1x80x128xbf16> to vector<80x128xbf16>
    %77 = vector.shape_cast %74 : vector<80x128xbf16> to vector<1x80x128xbf16>
    tpu.vector_store %arg6[%c0_22, %c0_23, %c0_24], %77 {strides = array<i32>} : memref<1x80x128xbf16, #tpu.memory_space<vmem>>, vector<1x80x128xbf16>,
    return
  }
  func.func @transform_0(%arg0: i32, %arg1: i32) -> (i32, i32, i32) {
    %c0_i32 = arith.constant 0 : i32
    %c0_i32_0 = arith.constant 0 : i32
    %c0_i32_1 = arith.constant 0 : i32
    return %arg0, %c0_i32, %c0_i32_0 : i32, i32, i32
  }
  func.func @transform_1(%arg0: i32, %arg1: i32) -> (i32, i32, i32) {
    %c0_i32 = arith.constant 0 : i32
    %c0_i32_0 = arith.constant 0 : i32
    %c0_i32_1 = arith.constant 0 : i32
    return %c0_i32, %c0_i32_0, %arg1 : i32, i32, i32
  }
  func.func @transform_2(%arg0: i32, %arg1: i32) -> (i32, i32) {
    %c0_i32 = arith.constant 0 : i32
    %c0_i32_0 = arith.constant 0 : i32
    return %c0_i32, %arg1 : i32, i32
  }
  func.func @transform_3(%arg0: i32, %arg1: i32) -> (i32, i32, i32) {
    %c0_i32 = arith.constant 0 : i32
    %c0_i32_0 = arith.constant 0 : i32
    return %arg0, %c0_i32, %arg1 : i32, i32, i32
  }
  func.func @transform_4(%arg0: i32, %arg1: i32) -> (i32, i32, i32) {
    %c0_i32 = arith.constant 0 : i32
    %c0_i32_0 = arith.constant 0 : i32
    return %arg0, %c0_i32, %arg1 : i32, i32, i32
  }
}

module attributes {stable_mosaic.version = 11 : i64} {
  func.func @_mm_kernel(%arg0: i32, %arg1: i32, %arg2: i32, %arg3: memref<32x128xbf16, #tpu.memory_space<vmem>>, %arg4: memref<128x128xbf16, #tpu.memory_space<vmem>>, %arg5: memref<1x128xf32, #tpu.memory_space<vmem>>, %arg6: memref<32x128xbf16, #tpu.memory_space<vmem>>, %arg7: memref<32x128xf32, #tpu.memory_space<vmem>>) attributes {dimension_semantics = [#tpu.dimension_semantics<parallel>, #tpu.dimension_semantics<parallel>, #tpu.dimension_semantics<arbitrary>], iteration_bounds = array<i64: 1, 1, 1>, scalar_prefetch = 0 : i64, scratch_operands = 1 : i64, tpu.core_type = #tpu.core_type<tc>, window_params = [{transform_indices = @transform_0, window_bounds = array<i64: 32, 128>}, {transform_indices = @transform_1, window_bounds = array<i64: 128, 128>}, {transform_indices = @transform_2, window_bounds = array<i64: 1, 128>}, {transform_indices = @transform_3, window_bounds = array<i64: 32, 128>}]} {
    %c0_i32 = arith.constant 0 : i32
    %0 = arith.cmpi eq, %arg2, %c0_i32 : i32
    %1 = arith.extui %0 : i1 to i32
    %c0_i32_0 = arith.constant 0 : i32
    %2 = arith.cmpi ne, %1, %c0_i32_0 : i32
    scf.if %2 {
      %cst_10 = arith.constant 0.000000e+00 : f32
      %12 = vector.broadcast %cst_10 : f32 to vector<32x128xf32>
      %c0_11 = arith.constant 0 : index
      %c0_12 = arith.constant 0 : index
      %13 = vector.load %arg7[%c0_11, %c0_12] : memref<32x128xf32, #tpu.memory_space<vmem>>, vector<32x128xf32>
      tpu.vector_store %arg7[%c0_11, %c0_12], %12 {strides = array<i32>} : memref<32x128xf32, #tpu.memory_space<vmem>>, vector<32x128xf32>,
    } else {
    }
    %c0 = arith.constant 0 : index
    %c0_1 = arith.constant 0 : index
    %3 = vector.load %arg7[%c0, %c0_1] : memref<32x128xf32, #tpu.memory_space<vmem>>, vector<32x128xf32>
    %c0_2 = arith.constant 0 : index
    %c0_3 = arith.constant 0 : index
    %4 = vector.load %arg3[%c0_2, %c0_3] : memref<32x128xbf16, #tpu.memory_space<vmem>>, vector<32x128xbf16>
    %c0_4 = arith.constant 0 : index
    %c0_5 = arith.constant 0 : index
    %5 = vector.load %arg4[%c0_4, %c0_5] : memref<128x128xbf16, #tpu.memory_space<vmem>>, vector<128x128xbf16>
    %cst = arith.constant dense<0.000000e+00> : vector<32x128xf32>
    %6 = tpu.matmul %4, %5, %cst {dimension_numbers = #tpu.dot_dimension_numbers<[1], [0], [0], [1], [0, 0, 1, 1], [], []>} : vector<32x128xbf16>, vector<128x128xbf16>, vector<32x128xf32> -> vector<32x128xf32>
    %7 = arith.addf %3, %6 : vector<32x128xf32>
    %c0_6 = arith.constant 0 : index
    %c0_7 = arith.constant 0 : index
    %8 = vector.load %arg7[%c0_6, %c0_7] : memref<32x128xf32, #tpu.memory_space<vmem>>, vector<32x128xf32>
    tpu.vector_store %arg7[%c0_6, %c0_7], %7 {strides = array<i32>} : memref<32x128xf32, #tpu.memory_space<vmem>>, vector<32x128xf32>,
    %c0_i32_8 = arith.constant 0 : i32
    %9 = arith.cmpi eq, %arg2, %c0_i32_8 : i32
    %10 = arith.extui %9 : i1 to i32
    %c0_i32_9 = arith.constant 0 : i32
    %11 = arith.cmpi ne, %10, %c0_i32_9 : i32
    scf.if %11 {
      %c0_10 = arith.constant 0 : index
      %c0_11 = arith.constant 0 : index
      %12 = vector.load %arg7[%c0_10, %c0_11] : memref<32x128xf32, #tpu.memory_space<vmem>>, vector<32x128xf32>
      %c0_12 = arith.constant 0 : index
      %c0_13 = arith.constant 0 : index
      %13 = vector.load %arg5[%c0_12, %c0_13] : memref<1x128xf32, #tpu.memory_space<vmem>>, vector<1x128xf32>
      %14 = vector.broadcast %13 : vector<1x128xf32> to vector<32x128xf32>
      %15 = arith.addf %12, %14 : vector<32x128xf32>
      %cst_14 = arith.constant 5.000000e-01 : f32
      %16 = vector.broadcast %cst_14 : f32 to vector<32x128xf32>
      %17 = arith.mulf %16, %15 : vector<32x128xf32>
      %18 = math.tanh %17 : vector<32x128xf32>
      %cst_15 = arith.constant 1.000000e+00 : f32
      %19 = vector.broadcast %cst_15 : f32 to vector<32x128xf32>
      %20 = arith.addf %18, %19 : vector<32x128xf32>
      %cst_16 = arith.constant 5.000000e-01 : f32
      %21 = vector.broadcast %cst_16 : f32 to vector<32x128xf32>
      %22 = arith.mulf %21, %20 : vector<32x128xf32>
      %23 = arith.mulf %15, %22 : vector<32x128xf32>
      %24 = arith.truncf %23 : vector<32x128xf32> to vector<32x128xbf16>
      %c0_17 = arith.constant 0 : index
      %c0_18 = arith.constant 0 : index
      %25 = vector.load %arg6[%c0_17, %c0_18] : memref<32x128xbf16, #tpu.memory_space<vmem>>, vector<32x128xbf16>
      tpu.vector_store %arg6[%c0_17, %c0_18], %24 {strides = array<i32>} : memref<32x128xbf16, #tpu.memory_space<vmem>>, vector<32x128xbf16>,
    } else {
    }
    return
  }
  func.func @transform_0(%arg0: i32, %arg1: i32, %arg2: i32) -> (i32, i32) {
    %c0_i32 = arith.constant 0 : i32
    return %arg0, %arg2 : i32, i32
  }
  func.func @transform_1(%arg0: i32, %arg1: i32, %arg2: i32) -> (i32, i32) {
    %c0_i32 = arith.constant 0 : i32
    return %arg2, %arg1 : i32, i32
  }
  func.func @transform_2(%arg0: i32, %arg1: i32, %arg2: i32) -> (i32, i32) {
    %c0_i32 = arith.constant 0 : i32
    %c0_i32_0 = arith.constant 0 : i32
    return %c0_i32, %arg1 : i32, i32
  }
  func.func @transform_3(%arg0: i32, %arg1: i32, %arg2: i32) -> (i32, i32) {
    %c0_i32 = arith.constant 0 : i32
    return %arg0, %arg1 : i32, i32
  }
}

module attributes {stable_mosaic.version = 11 : i64} {
  func.func @_mm_kernel(%arg0: i32, %arg1: i32, %arg2: i32, %arg3: memref<32x128xbf16, #tpu.memory_space<vmem>>, %arg4: memref<128x128xbf16, #tpu.memory_space<vmem>>, %arg5: memref<1x128xf32, #tpu.memory_space<vmem>>, %arg6: memref<32x128xbf16, #tpu.memory_space<vmem>>, %arg7: memref<32x128xf32, #tpu.memory_space<vmem>>) attributes {dimension_semantics = [#tpu.dimension_semantics<parallel>, #tpu.dimension_semantics<parallel>, #tpu.dimension_semantics<arbitrary>], iteration_bounds = array<i64: 1, 1, 1>, scalar_prefetch = 0 : i64, scratch_operands = 1 : i64, tpu.core_type = #tpu.core_type<tc>, window_params = [{transform_indices = @transform_0, window_bounds = array<i64: 32, 128>}, {transform_indices = @transform_1, window_bounds = array<i64: 128, 128>}, {transform_indices = @transform_2, window_bounds = array<i64: 1, 128>}, {transform_indices = @transform_3, window_bounds = array<i64: 32, 128>}]} {
    %c0_i32 = arith.constant 0 : i32
    %0 = arith.cmpi eq, %arg2, %c0_i32 : i32
    %1 = arith.extui %0 : i1 to i32
    %c0_i32_0 = arith.constant 0 : i32
    %2 = arith.cmpi ne, %1, %c0_i32_0 : i32
    scf.if %2 {
      %cst_10 = arith.constant 0.000000e+00 : f32
      %12 = vector.broadcast %cst_10 : f32 to vector<32x128xf32>
      %c0_11 = arith.constant 0 : index
      %c0_12 = arith.constant 0 : index
      %13 = vector.load %arg7[%c0_11, %c0_12] : memref<32x128xf32, #tpu.memory_space<vmem>>, vector<32x128xf32>
      tpu.vector_store %arg7[%c0_11, %c0_12], %12 {strides = array<i32>} : memref<32x128xf32, #tpu.memory_space<vmem>>, vector<32x128xf32>,
    } else {
    }
    %c0 = arith.constant 0 : index
    %c0_1 = arith.constant 0 : index
    %3 = vector.load %arg7[%c0, %c0_1] : memref<32x128xf32, #tpu.memory_space<vmem>>, vector<32x128xf32>
    %c0_2 = arith.constant 0 : index
    %c0_3 = arith.constant 0 : index
    %4 = vector.load %arg3[%c0_2, %c0_3] : memref<32x128xbf16, #tpu.memory_space<vmem>>, vector<32x128xbf16>
    %c0_4 = arith.constant 0 : index
    %c0_5 = arith.constant 0 : index
    %5 = vector.load %arg4[%c0_4, %c0_5] : memref<128x128xbf16, #tpu.memory_space<vmem>>, vector<128x128xbf16>
    %cst = arith.constant dense<0.000000e+00> : vector<32x128xf32>
    %6 = tpu.matmul %4, %5, %cst {dimension_numbers = #tpu.dot_dimension_numbers<[1], [0], [0], [1], [0, 0, 1, 1], [], []>} : vector<32x128xbf16>, vector<128x128xbf16>, vector<32x128xf32> -> vector<32x128xf32>
    %7 = arith.addf %3, %6 : vector<32x128xf32>
    %c0_6 = arith.constant 0 : index
    %c0_7 = arith.constant 0 : index
    %8 = vector.load %arg7[%c0_6, %c0_7] : memref<32x128xf32, #tpu.memory_space<vmem>>, vector<32x128xf32>
    tpu.vector_store %arg7[%c0_6, %c0_7], %7 {strides = array<i32>} : memref<32x128xf32, #tpu.memory_space<vmem>>, vector<32x128xf32>,
    %c0_i32_8 = arith.constant 0 : i32
    %9 = arith.cmpi eq, %arg2, %c0_i32_8 : i32
    %10 = arith.extui %9 : i1 to i32
    %c0_i32_9 = arith.constant 0 : i32
    %11 = arith.cmpi ne, %10, %c0_i32_9 : i32
    scf.if %11 {
      %c0_10 = arith.constant 0 : index
      %c0_11 = arith.constant 0 : index
      %12 = vector.load %arg7[%c0_10, %c0_11] : memref<32x128xf32, #tpu.memory_space<vmem>>, vector<32x128xf32>
      %c0_12 = arith.constant 0 : index
      %c0_13 = arith.constant 0 : index
      %13 = vector.load %arg5[%c0_12, %c0_13] : memref<1x128xf32, #tpu.memory_space<vmem>>, vector<1x128xf32>
      %14 = vector.broadcast %13 : vector<1x128xf32> to vector<32x128xf32>
      %15 = arith.addf %12, %14 : vector<32x128xf32>
      %16 = arith.truncf %15 : vector<32x128xf32> to vector<32x128xbf16>
      %c0_14 = arith.constant 0 : index
      %c0_15 = arith.constant 0 : index
      %17 = vector.load %arg6[%c0_14, %c0_15] : memref<32x128xbf16, #tpu.memory_space<vmem>>, vector<32x128xbf16>
      tpu.vector_store %arg6[%c0_14, %c0_15], %16 {strides = array<i32>} : memref<32x128xbf16, #tpu.memory_space<vmem>>, vector<32x128xbf16>,
    } else {
    }
    return
  }
  func.func @transform_0(%arg0: i32, %arg1: i32, %arg2: i32) -> (i32, i32) {
    %c0_i32 = arith.constant 0 : i32
    return %arg0, %arg2 : i32, i32
  }
  func.func @transform_1(%arg0: i32, %arg1: i32, %arg2: i32) -> (i32, i32) {
    %c0_i32 = arith.constant 0 : i32
    return %arg2, %arg1 : i32, i32
  }
  func.func @transform_2(%arg0: i32, %arg1: i32, %arg2: i32) -> (i32, i32) {
    %c0_i32 = arith.constant 0 : i32
    %c0_i32_0 = arith.constant 0 : i32
    return %c0_i32, %arg1 : i32, i32
  }
  func.func @transform_3(%arg0: i32, %arg1: i32, %arg2: i32) -> (i32, i32) {
    %c0_i32 = arith.constant 0 : i32
    return %arg0, %arg1 : i32, i32
  }
}

module attributes {stable_mosaic.version = 11 : i64} {
  func.func @_dw_kernel(%arg0: i32, %arg1: memref<1x6x6x128xbf16, #tpu.memory_space<vmem>>, %arg2: memref<9x128xf32, #tpu.memory_space<vmem>>, %arg3: memref<1x128xf32, #tpu.memory_space<vmem>>, %arg4: memref<1x4x4x128xbf16, #tpu.memory_space<vmem>>, %arg5: memref<1x1x128xf32, #tpu.memory_space<vmem>>) attributes {dimension_semantics = [#tpu.dimension_semantics<parallel>], iteration_bounds = array<i64: 2>, scalar_prefetch = 0 : i64, scratch_operands = 0 : i64, tpu.core_type = #tpu.core_type<tc>, window_params = [{transform_indices = @transform_0, window_bounds = array<i64: 1, 6, 6, 128>}, {pipeline_mode = #tpu.pipeline_mode<synchronous>, transform_indices = @transform_1, window_bounds = array<i64: 9, 128>}, {pipeline_mode = #tpu.pipeline_mode<synchronous>, transform_indices = @transform_2, window_bounds = array<i64: 1, 128>}, {transform_indices = @transform_3, window_bounds = array<i64: 1, 4, 4, 128>}, {transform_indices = @transform_4, window_bounds = array<i64: 1, 1, 128>}]} {
    %c0 = arith.constant 0 : index
    %c0_0 = arith.constant 0 : index
    %c0_1 = arith.constant 0 : index
    %c0_2 = arith.constant 0 : index
    %0 = vector.load %arg1[%c0, %c0_0, %c0_1, %c0_2] : memref<1x6x6x128xbf16, #tpu.memory_space<vmem>>, vector<1x6x6x128xbf16>
    %1 = vector.shape_cast %0 : vector<1x6x6x128xbf16> to vector<6x6x128xbf16>
    %2 = arith.extf %1 : vector<6x6x128xbf16> to vector<6x6x128xf32>
    %c0_3 = arith.constant 0 : index
    %c0_4 = arith.constant 0 : index
    %3 = vector.load %arg2[%c0_3, %c0_4] : memref<9x128xf32, #tpu.memory_space<vmem>>, vector<9x128xf32>
    %4 = vector.extract_strided_slice %2 {offsets = [0, 0, 0], sizes = [6, 4, 128], strides = [1, 1, 1]} : vector<6x6x128xf32> to vector<6x4x128xf32>
    %5 = vector.extract_strided_slice %2 {offsets = [0, 1, 0], sizes = [6, 4, 128], strides = [1, 1, 1]} : vector<6x6x128xf32> to vector<6x4x128xf32>
    %6 = vector.extract_strided_slice %2 {offsets = [0, 2, 0], sizes = [6, 4, 128], strides = [1, 1, 1]} : vector<6x6x128xf32> to vector<6x4x128xf32>
    %cst = arith.constant 0.000000e+00 : f32
    %7 = vector.broadcast %cst : f32 to vector<4x4x128xf32>
    %8 = vector.extract_strided_slice %4 {offsets = [0, 0, 0], sizes = [4, 4, 128], strides = [1, 1, 1]} : vector<6x4x128xf32> to vector<4x4x128xf32>
    %9 = vector.extract_strided_slice %3 {offsets = [0, 0], sizes = [1, 128], strides = [1, 1]} : vector<9x128xf32> to vector<1x128xf32>
    %10 = vector.shape_cast %9 : vector<1x128xf32> to vector<128xf32>
    %11 = vector.shape_cast %10 : vector<128xf32> to vector<1x1x128xf32>
    %12 = vector.broadcast %11 : vector<1x1x128xf32> to vector<4x4x128xf32>
    %13 = arith.mulf %8, %12 : vector<4x4x128xf32>
    %14 = arith.addf %7, %13 : vector<4x4x128xf32>
    %15 = vector.extract_strided_slice %5 {offsets = [0, 0, 0], sizes = [4, 4, 128], strides = [1, 1, 1]} : vector<6x4x128xf32> to vector<4x4x128xf32>
    %16 = vector.extract_strided_slice %3 {offsets = [1, 0], sizes = [1, 128], strides = [1, 1]} : vector<9x128xf32> to vector<1x128xf32>
    %17 = vector.shape_cast %16 : vector<1x128xf32> to vector<128xf32>
    %18 = vector.shape_cast %17 : vector<128xf32> to vector<1x1x128xf32>
    %19 = vector.broadcast %18 : vector<1x1x128xf32> to vector<4x4x128xf32>
    %20 = arith.mulf %15, %19 : vector<4x4x128xf32>
    %21 = arith.addf %14, %20 : vector<4x4x128xf32>
    %22 = vector.extract_strided_slice %6 {offsets = [0, 0, 0], sizes = [4, 4, 128], strides = [1, 1, 1]} : vector<6x4x128xf32> to vector<4x4x128xf32>
    %23 = vector.extract_strided_slice %3 {offsets = [2, 0], sizes = [1, 128], strides = [1, 1]} : vector<9x128xf32> to vector<1x128xf32>
    %24 = vector.shape_cast %23 : vector<1x128xf32> to vector<128xf32>
    %25 = vector.shape_cast %24 : vector<128xf32> to vector<1x1x128xf32>
    %26 = vector.broadcast %25 : vector<1x1x128xf32> to vector<4x4x128xf32>
    %27 = arith.mulf %22, %26 : vector<4x4x128xf32>
    %28 = arith.addf %21, %27 : vector<4x4x128xf32>
    %29 = vector.extract_strided_slice %4 {offsets = [1, 0, 0], sizes = [4, 4, 128], strides = [1, 1, 1]} : vector<6x4x128xf32> to vector<4x4x128xf32>
    %30 = vector.extract_strided_slice %3 {offsets = [3, 0], sizes = [1, 128], strides = [1, 1]} : vector<9x128xf32> to vector<1x128xf32>
    %31 = vector.shape_cast %30 : vector<1x128xf32> to vector<128xf32>
    %32 = vector.shape_cast %31 : vector<128xf32> to vector<1x1x128xf32>
    %33 = vector.broadcast %32 : vector<1x1x128xf32> to vector<4x4x128xf32>
    %34 = arith.mulf %29, %33 : vector<4x4x128xf32>
    %35 = arith.addf %28, %34 : vector<4x4x128xf32>
    %36 = vector.extract_strided_slice %5 {offsets = [1, 0, 0], sizes = [4, 4, 128], strides = [1, 1, 1]} : vector<6x4x128xf32> to vector<4x4x128xf32>
    %37 = vector.extract_strided_slice %3 {offsets = [4, 0], sizes = [1, 128], strides = [1, 1]} : vector<9x128xf32> to vector<1x128xf32>
    %38 = vector.shape_cast %37 : vector<1x128xf32> to vector<128xf32>
    %39 = vector.shape_cast %38 : vector<128xf32> to vector<1x1x128xf32>
    %40 = vector.broadcast %39 : vector<1x1x128xf32> to vector<4x4x128xf32>
    %41 = arith.mulf %36, %40 : vector<4x4x128xf32>
    %42 = arith.addf %35, %41 : vector<4x4x128xf32>
    %43 = vector.extract_strided_slice %6 {offsets = [1, 0, 0], sizes = [4, 4, 128], strides = [1, 1, 1]} : vector<6x4x128xf32> to vector<4x4x128xf32>
    %44 = vector.extract_strided_slice %3 {offsets = [5, 0], sizes = [1, 128], strides = [1, 1]} : vector<9x128xf32> to vector<1x128xf32>
    %45 = vector.shape_cast %44 : vector<1x128xf32> to vector<128xf32>
    %46 = vector.shape_cast %45 : vector<128xf32> to vector<1x1x128xf32>
    %47 = vector.broadcast %46 : vector<1x1x128xf32> to vector<4x4x128xf32>
    %48 = arith.mulf %43, %47 : vector<4x4x128xf32>
    %49 = arith.addf %42, %48 : vector<4x4x128xf32>
    %50 = vector.extract_strided_slice %4 {offsets = [2, 0, 0], sizes = [4, 4, 128], strides = [1, 1, 1]} : vector<6x4x128xf32> to vector<4x4x128xf32>
    %51 = vector.extract_strided_slice %3 {offsets = [6, 0], sizes = [1, 128], strides = [1, 1]} : vector<9x128xf32> to vector<1x128xf32>
    %52 = vector.shape_cast %51 : vector<1x128xf32> to vector<128xf32>
    %53 = vector.shape_cast %52 : vector<128xf32> to vector<1x1x128xf32>
    %54 = vector.broadcast %53 : vector<1x1x128xf32> to vector<4x4x128xf32>
    %55 = arith.mulf %50, %54 : vector<4x4x128xf32>
    %56 = arith.addf %49, %55 : vector<4x4x128xf32>
    %57 = vector.extract_strided_slice %5 {offsets = [2, 0, 0], sizes = [4, 4, 128], strides = [1, 1, 1]} : vector<6x4x128xf32> to vector<4x4x128xf32>
    %58 = vector.extract_strided_slice %3 {offsets = [7, 0], sizes = [1, 128], strides = [1, 1]} : vector<9x128xf32> to vector<1x128xf32>
    %59 = vector.shape_cast %58 : vector<1x128xf32> to vector<128xf32>
    %60 = vector.shape_cast %59 : vector<128xf32> to vector<1x1x128xf32>
    %61 = vector.broadcast %60 : vector<1x1x128xf32> to vector<4x4x128xf32>
    %62 = arith.mulf %57, %61 : vector<4x4x128xf32>
    %63 = arith.addf %56, %62 : vector<4x4x128xf32>
    %64 = vector.extract_strided_slice %6 {offsets = [2, 0, 0], sizes = [4, 4, 128], strides = [1, 1, 1]} : vector<6x4x128xf32> to vector<4x4x128xf32>
    %65 = vector.extract_strided_slice %3 {offsets = [8, 0], sizes = [1, 128], strides = [1, 1]} : vector<9x128xf32> to vector<1x128xf32>
    %66 = vector.shape_cast %65 : vector<1x128xf32> to vector<128xf32>
    %67 = vector.shape_cast %66 : vector<128xf32> to vector<1x1x128xf32>
    %68 = vector.broadcast %67 : vector<1x1x128xf32> to vector<4x4x128xf32>
    %69 = arith.mulf %64, %68 : vector<4x4x128xf32>
    %70 = arith.addf %63, %69 : vector<4x4x128xf32>
    %c0_5 = arith.constant 0 : index
    %c0_6 = arith.constant 0 : index
    %71 = vector.load %arg3[%c0_5, %c0_6] : memref<1x128xf32, #tpu.memory_space<vmem>>, vector<1x128xf32>
    %72 = vector.shape_cast %71 : vector<1x128xf32> to vector<1x1x128xf32>
    %73 = vector.broadcast %72 : vector<1x1x128xf32> to vector<4x4x128xf32>
    %74 = arith.addf %70, %73 : vector<4x4x128xf32>
    %cst_7 = arith.constant 5.000000e-01 : f32
    %75 = vector.broadcast %cst_7 : f32 to vector<4x4x128xf32>
    %76 = arith.mulf %75, %74 : vector<4x4x128xf32>
    %77 = math.tanh %76 : vector<4x4x128xf32>
    %cst_8 = arith.constant 1.000000e+00 : f32
    %78 = vector.broadcast %cst_8 : f32 to vector<4x4x128xf32>
    %79 = arith.addf %77, %78 : vector<4x4x128xf32>
    %cst_9 = arith.constant 5.000000e-01 : f32
    %80 = vector.broadcast %cst_9 : f32 to vector<4x4x128xf32>
    %81 = arith.mulf %80, %79 : vector<4x4x128xf32>
    %82 = arith.mulf %74, %81 : vector<4x4x128xf32>
    %83 = arith.truncf %82 : vector<4x4x128xf32> to vector<4x4x128xbf16>
    %c0_10 = arith.constant 0 : index
    %c0_11 = arith.constant 0 : index
    %c0_12 = arith.constant 0 : index
    %c0_13 = arith.constant 0 : index
    %84 = vector.load %arg4[%c0_10, %c0_11, %c0_12, %c0_13] : memref<1x4x4x128xbf16, #tpu.memory_space<vmem>>, vector<1x4x4x128xbf16>
    %85 = vector.shape_cast %84 : vector<1x4x4x128xbf16> to vector<4x4x128xbf16>
    %86 = vector.shape_cast %83 : vector<4x4x128xbf16> to vector<1x4x4x128xbf16>
    tpu.vector_store %arg4[%c0_10, %c0_11, %c0_12, %c0_13], %86 {strides = array<i32>} : memref<1x4x4x128xbf16, #tpu.memory_space<vmem>>, vector<1x4x4x128xbf16>,
    %cst_14 = arith.constant dense<0.000000e+00> : vector<4x128xf32>
    %87 = vector.multi_reduction <add>, %82, %cst_14 [0] : vector<4x4x128xf32> to vector<4x128xf32>
    %cst_15 = arith.constant dense<0.000000e+00> : vector<128xf32>
    %88 = vector.multi_reduction <add>, %87, %cst_15 [0] : vector<4x128xf32> to vector<128xf32>
    %89 = vector.shape_cast %88 : vector<128xf32> to vector<1x128xf32>
    %c0_16 = arith.constant 0 : index
    %c0_17 = arith.constant 0 : index
    %c0_18 = arith.constant 0 : index
    %90 = vector.load %arg5[%c0_16, %c0_17, %c0_18] : memref<1x1x128xf32, #tpu.memory_space<vmem>>, vector<1x1x128xf32>
    %91 = vector.shape_cast %90 : vector<1x1x128xf32> to vector<1x128xf32>
    %92 = vector.shape_cast %89 : vector<1x128xf32> to vector<1x1x128xf32>
    tpu.vector_store %arg5[%c0_16, %c0_17, %c0_18], %92 {strides = array<i32>} : memref<1x1x128xf32, #tpu.memory_space<vmem>>, vector<1x1x128xf32>,
    return
  }
  func.func @transform_0(%arg0: i32) -> (i32, i32, i32, i32) {
    %c0_i32 = arith.constant 0 : i32
    %c0_i32_0 = arith.constant 0 : i32
    %c0_i32_1 = arith.constant 0 : i32
    %c0_i32_2 = arith.constant 0 : i32
    return %arg0, %c0_i32, %c0_i32_0, %c0_i32_1 : i32, i32, i32, i32
  }
  func.func @transform_1(%arg0: i32) -> (i32, i32) {
    %c0_i32 = arith.constant 0 : i32
    %c0_i32_0 = arith.constant 0 : i32
    %c0_i32_1 = arith.constant 0 : i32
    return %c0_i32, %c0_i32_0 : i32, i32
  }
  func.func @transform_2(%arg0: i32) -> (i32, i32) {
    %c0_i32 = arith.constant 0 : i32
    %c0_i32_0 = arith.constant 0 : i32
    %c0_i32_1 = arith.constant 0 : i32
    return %c0_i32, %c0_i32_0 : i32, i32
  }
  func.func @transform_3(%arg0: i32) -> (i32, i32, i32, i32) {
    %c0_i32 = arith.constant 0 : i32
    %c0_i32_0 = arith.constant 0 : i32
    %c0_i32_1 = arith.constant 0 : i32
    %c0_i32_2 = arith.constant 0 : i32
    return %arg0, %c0_i32, %c0_i32_0, %c0_i32_1 : i32, i32, i32, i32
  }
  func.func @transform_4(%arg0: i32) -> (i32, i32, i32) {
    %c0_i32 = arith.constant 0 : i32
    %c0_i32_0 = arith.constant 0 : i32
    %c0_i32_1 = arith.constant 0 : i32
    return %arg0, %c0_i32, %c0_i32_0 : i32, i32, i32
  }
}

module attributes {stable_mosaic.version = 11 : i64} {
  func.func @_head_pool_kernel(%arg0: i32, %arg1: i32, %arg2: i32, %arg3: memref<1x16x128xbf16, #tpu.memory_space<vmem>>, %arg4: memref<128x128xbf16, #tpu.memory_space<vmem>>, %arg5: memref<1x128xf32, #tpu.memory_space<vmem>>, %arg6: memref<1x1x128xf32, #tpu.memory_space<vmem>>, %arg7: memref<16x128xf32, #tpu.memory_space<vmem>>) attributes {dimension_semantics = [#tpu.dimension_semantics<parallel>, #tpu.dimension_semantics<parallel>, #tpu.dimension_semantics<arbitrary>], iteration_bounds = array<i64: 2, 1, 1>, scalar_prefetch = 0 : i64, scratch_operands = 1 : i64, tpu.core_type = #tpu.core_type<tc>, window_params = [{transform_indices = @transform_0, window_bounds = array<i64: 1, 16, 128>}, {transform_indices = @transform_1, window_bounds = array<i64: 128, 128>}, {transform_indices = @transform_2, window_bounds = array<i64: 1, 128>}, {transform_indices = @transform_3, window_bounds = array<i64: 1, 1, 128>}]} {
    %c0_i32 = arith.constant 0 : i32
    %0 = arith.cmpi eq, %arg2, %c0_i32 : i32
    %1 = arith.extui %0 : i1 to i32
    %c0_i32_0 = arith.constant 0 : i32
    %2 = arith.cmpi ne, %1, %c0_i32_0 : i32
    scf.if %2 {
      %cst_11 = arith.constant 0.000000e+00 : f32
      %13 = vector.broadcast %cst_11 : f32 to vector<16x128xf32>
      %c0_12 = arith.constant 0 : index
      %c0_13 = arith.constant 0 : index
      %14 = vector.load %arg7[%c0_12, %c0_13] : memref<16x128xf32, #tpu.memory_space<vmem>>, vector<16x128xf32>
      tpu.vector_store %arg7[%c0_12, %c0_13], %13 {strides = array<i32>} : memref<16x128xf32, #tpu.memory_space<vmem>>, vector<16x128xf32>,
    } else {
    }
    %c0 = arith.constant 0 : index
    %c0_1 = arith.constant 0 : index
    %3 = vector.load %arg7[%c0, %c0_1] : memref<16x128xf32, #tpu.memory_space<vmem>>, vector<16x128xf32>
    %c0_2 = arith.constant 0 : index
    %c0_3 = arith.constant 0 : index
    %c0_4 = arith.constant 0 : index
    %4 = vector.load %arg3[%c0_2, %c0_3, %c0_4] : memref<1x16x128xbf16, #tpu.memory_space<vmem>>, vector<1x16x128xbf16>
    %5 = vector.shape_cast %4 : vector<1x16x128xbf16> to vector<16x128xbf16>
    %c0_5 = arith.constant 0 : index
    %c0_6 = arith.constant 0 : index
    %6 = vector.load %arg4[%c0_5, %c0_6] : memref<128x128xbf16, #tpu.memory_space<vmem>>, vector<128x128xbf16>
    %cst = arith.constant dense<0.000000e+00> : vector<16x128xf32>
    %7 = tpu.matmul %5, %6, %cst {dimension_numbers = #tpu.dot_dimension_numbers<[1], [0], [0], [1], [0, 0, 1, 1], [], []>} : vector<16x128xbf16>, vector<128x128xbf16>, vector<16x128xf32> -> vector<16x128xf32>
    %8 = arith.addf %3, %7 : vector<16x128xf32>
    %c0_7 = arith.constant 0 : index
    %c0_8 = arith.constant 0 : index
    %9 = vector.load %arg7[%c0_7, %c0_8] : memref<16x128xf32, #tpu.memory_space<vmem>>, vector<16x128xf32>
    tpu.vector_store %arg7[%c0_7, %c0_8], %8 {strides = array<i32>} : memref<16x128xf32, #tpu.memory_space<vmem>>, vector<16x128xf32>,
    %c0_i32_9 = arith.constant 0 : i32
    %10 = arith.cmpi eq, %arg2, %c0_i32_9 : i32
    %11 = arith.extui %10 : i1 to i32
    %c0_i32_10 = arith.constant 0 : i32
    %12 = arith.cmpi ne, %11, %c0_i32_10 : i32
    scf.if %12 {
      %c0_11 = arith.constant 0 : index
      %c0_12 = arith.constant 0 : index
      %13 = vector.load %arg7[%c0_11, %c0_12] : memref<16x128xf32, #tpu.memory_space<vmem>>, vector<16x128xf32>
      %c0_13 = arith.constant 0 : index
      %c0_14 = arith.constant 0 : index
      %14 = vector.load %arg5[%c0_13, %c0_14] : memref<1x128xf32, #tpu.memory_space<vmem>>, vector<1x128xf32>
      %15 = vector.broadcast %14 : vector<1x128xf32> to vector<16x128xf32>
      %16 = arith.addf %13, %15 : vector<16x128xf32>
      %cst_15 = arith.constant 5.000000e-01 : f32
      %17 = vector.broadcast %cst_15 : f32 to vector<16x128xf32>
      %18 = arith.mulf %17, %16 : vector<16x128xf32>
      %19 = math.tanh %18 : vector<16x128xf32>
      %cst_16 = arith.constant 1.000000e+00 : f32
      %20 = vector.broadcast %cst_16 : f32 to vector<16x128xf32>
      %21 = arith.addf %19, %20 : vector<16x128xf32>
      %cst_17 = arith.constant 5.000000e-01 : f32
      %22 = vector.broadcast %cst_17 : f32 to vector<16x128xf32>
      %23 = arith.mulf %22, %21 : vector<16x128xf32>
      %24 = arith.mulf %16, %23 : vector<16x128xf32>
      %cst_18 = arith.constant dense<0.000000e+00> : vector<128xf32>
      %25 = vector.multi_reduction <add>, %24, %cst_18 [0] : vector<16x128xf32> to vector<128xf32>
      %26 = vector.shape_cast %25 : vector<128xf32> to vector<1x128xf32>
      %cst_19 = arith.constant 6.250000e-02 : f32
      %27 = vector.broadcast %cst_19 : f32 to vector<1x128xf32>
      %28 = arith.mulf %26, %27 : vector<1x128xf32>
      %c0_20 = arith.constant 0 : index
      %c0_21 = arith.constant 0 : index
      %c0_22 = arith.constant 0 : index
      %29 = vector.load %arg6[%c0_20, %c0_21, %c0_22] : memref<1x1x128xf32, #tpu.memory_space<vmem>>, vector<1x1x128xf32>
      %30 = vector.shape_cast %29 : vector<1x1x128xf32> to vector<1x128xf32>
      %31 = vector.shape_cast %28 : vector<1x128xf32> to vector<1x1x128xf32>
      tpu.vector_store %arg6[%c0_20, %c0_21, %c0_22], %31 {strides = array<i32>} : memref<1x1x128xf32, #tpu.memory_space<vmem>>, vector<1x1x128xf32>,
    } else {
    }
    return
  }
  func.func @transform_0(%arg0: i32, %arg1: i32, %arg2: i32) -> (i32, i32, i32) {
    %c0_i32 = arith.constant 0 : i32
    %c0_i32_0 = arith.constant 0 : i32
    return %arg0, %c0_i32, %arg2 : i32, i32, i32
  }
  func.func @transform_1(%arg0: i32, %arg1: i32, %arg2: i32) -> (i32, i32) {
    %c0_i32 = arith.constant 0 : i32
    return %arg2, %arg1 : i32, i32
  }
  func.func @transform_2(%arg0: i32, %arg1: i32, %arg2: i32) -> (i32, i32) {
    %c0_i32 = arith.constant 0 : i32
    %c0_i32_0 = arith.constant 0 : i32
    return %c0_i32, %arg1 : i32, i32
  }
  func.func @transform_3(%arg0: i32, %arg1: i32, %arg2: i32) -> (i32, i32, i32) {
    %c0_i32 = arith.constant 0 : i32
    %c0_i32_0 = arith.constant 0 : i32
    return %arg0, %c0_i32, %arg1 : i32, i32, i32
  }
}

module attributes {stable_mosaic.version = 11 : i64} {
  func.func @_se_fc_kernel(%arg0: i32, %arg1: memref<2x128xf32, #tpu.memory_space<vmem>>, %arg2: memref<128x128xf32, #tpu.memory_space<vmem>>, %arg3: memref<1x128xf32, #tpu.memory_space<vmem>>, %arg4: memref<128x128xf32, #tpu.memory_space<vmem>>, %arg5: memref<1x128xf32, #tpu.memory_space<vmem>>, %arg6: memref<2x128xbf16, #tpu.memory_space<vmem>>) attributes {dimension_semantics = [#tpu.dimension_semantics<arbitrary>], iteration_bounds = array<i64: 1>, scalar_prefetch = 0 : i64, scratch_operands = 0 : i64, tpu.core_type = #tpu.core_type<tc>, window_params = [{pipeline_mode = #tpu.pipeline_mode<synchronous>, transform_indices = @transform_0, window_bounds = array<i64: 2, 128>}, {pipeline_mode = #tpu.pipeline_mode<synchronous>, transform_indices = @transform_1, window_bounds = array<i64: 128, 128>}, {pipeline_mode = #tpu.pipeline_mode<synchronous>, transform_indices = @transform_2, window_bounds = array<i64: 1, 128>}, {pipeline_mode = #tpu.pipeline_mode<synchronous>, transform_indices = @transform_3, window_bounds = array<i64: 128, 128>}, {pipeline_mode = #tpu.pipeline_mode<synchronous>, transform_indices = @transform_4, window_bounds = array<i64: 1, 128>}, {pipeline_mode = #tpu.pipeline_mode<synchronous>, transform_indices = @transform_5, window_bounds = array<i64: 2, 128>}]} {
    %c0 = arith.constant 0 : index
    %c0_0 = arith.constant 0 : index
    %0 = vector.load %arg1[%c0, %c0_0] : memref<2x128xf32, #tpu.memory_space<vmem>>, vector<2x128xf32>
    %cst = arith.constant 6.250000e-02 : f32
    %1 = vector.broadcast %cst : f32 to vector<2x128xf32>
    %2 = arith.mulf %0, %1 : vector<2x128xf32>
    %c0_1 = arith.constant 0 : index
    %c0_2 = arith.constant 0 : index
    %3 = vector.load %arg2[%c0_1, %c0_2] : memref<128x128xf32, #tpu.memory_space<vmem>>, vector<128x128xf32>
    %cst_3 = arith.constant dense<0.000000e+00> : vector<2x128xf32>
    %4 = tpu.matmul %2, %3, %cst_3 {dimension_numbers = #tpu.dot_dimension_numbers<[1], [0], [0], [1], [0, 0, 1, 1], [], []>} : vector<2x128xf32>, vector<128x128xf32>, vector<2x128xf32> -> vector<2x128xf32>
    %c0_4 = arith.constant 0 : index
    %c0_5 = arith.constant 0 : index
    %5 = vector.load %arg3[%c0_4, %c0_5] : memref<1x128xf32, #tpu.memory_space<vmem>>, vector<1x128xf32>
    %6 = vector.broadcast %5 : vector<1x128xf32> to vector<2x128xf32>
    %7 = arith.addf %4, %6 : vector<2x128xf32>
    %cst_6 = arith.constant 5.000000e-01 : f32
    %8 = vector.broadcast %cst_6 : f32 to vector<2x128xf32>
    %9 = arith.mulf %8, %7 : vector<2x128xf32>
    %10 = math.tanh %9 : vector<2x128xf32>
    %cst_7 = arith.constant 1.000000e+00 : f32
    %11 = vector.broadcast %cst_7 : f32 to vector<2x128xf32>
    %12 = arith.addf %10, %11 : vector<2x128xf32>
    %cst_8 = arith.constant 5.000000e-01 : f32
    %13 = vector.broadcast %cst_8 : f32 to vector<2x128xf32>
    %14 = arith.mulf %13, %12 : vector<2x128xf32>
    %15 = arith.mulf %7, %14 : vector<2x128xf32>
    %c0_9 = arith.constant 0 : index
    %c0_10 = arith.constant 0 : index
    %16 = vector.load %arg4[%c0_9, %c0_10] : memref<128x128xf32, #tpu.memory_space<vmem>>, vector<128x128xf32>
    %cst_11 = arith.constant dense<0.000000e+00> : vector<2x128xf32>
    %17 = tpu.matmul %15, %16, %cst_11 {dimension_numbers = #tpu.dot_dimension_numbers<[1], [0], [0], [1], [0, 0, 1, 1], [], []>} : vector<2x128xf32>, vector<128x128xf32>, vector<2x128xf32> -> vector<2x128xf32>
    %c0_12 = arith.constant 0 : index
    %c0_13 = arith.constant 0 : index
    %18 = vector.load %arg5[%c0_12, %c0_13] : memref<1x128xf32, #tpu.memory_space<vmem>>, vector<1x128xf32>
    %19 = vector.broadcast %18 : vector<1x128xf32> to vector<2x128xf32>
    %20 = arith.addf %17, %19 : vector<2x128xf32>
    %cst_14 = arith.constant 5.000000e-01 : f32
    %21 = vector.broadcast %cst_14 : f32 to vector<2x128xf32>
    %22 = arith.mulf %21, %20 : vector<2x128xf32>
    %23 = math.tanh %22 : vector<2x128xf32>
    %cst_15 = arith.constant 1.000000e+00 : f32
    %24 = vector.broadcast %cst_15 : f32 to vector<2x128xf32>
    %25 = arith.addf %23, %24 : vector<2x128xf32>
    %cst_16 = arith.constant 5.000000e-01 : f32
    %26 = vector.broadcast %cst_16 : f32 to vector<2x128xf32>
    %27 = arith.mulf %26, %25 : vector<2x128xf32>
    %28 = arith.truncf %27 : vector<2x128xf32> to vector<2x128xbf16>
    %c0_17 = arith.constant 0 : index
    %c0_18 = arith.constant 0 : index
    %29 = vector.load %arg6[%c0_17, %c0_18] : memref<2x128xbf16, #tpu.memory_space<vmem>>, vector<2x128xbf16>
    tpu.vector_store %arg6[%c0_17, %c0_18], %28 {strides = array<i32>} : memref<2x128xbf16, #tpu.memory_space<vmem>>, vector<2x128xbf16>,
    return
  }
  func.func @transform_0(%arg0: i32) -> (i32, i32) {
    %c0_i32 = arith.constant 0 : i32
    %c0_i32_0 = arith.constant 0 : i32
    %c0_i32_1 = arith.constant 0 : i32
    return %c0_i32, %c0_i32_0 : i32, i32
  }
  func.func @transform_1(%arg0: i32) -> (i32, i32) {
    %c0_i32 = arith.constant 0 : i32
    %c0_i32_0 = arith.constant 0 : i32
    %c0_i32_1 = arith.constant 0 : i32
    return %c0_i32, %c0_i32_0 : i32, i32
  }
  func.func @transform_2(%arg0: i32) -> (i32, i32) {
    %c0_i32 = arith.constant 0 : i32
    %c0_i32_0 = arith.constant 0 : i32
    %c0_i32_1 = arith.constant 0 : i32
    return %c0_i32, %c0_i32_0 : i32, i32
  }
  func.func @transform_3(%arg0: i32) -> (i32, i32) {
    %c0_i32 = arith.constant 0 : i32
    %c0_i32_0 = arith.constant 0 : i32
    %c0_i32_1 = arith.constant 0 : i32
    return %c0_i32, %c0_i32_0 : i32, i32
  }
  func.func @transform_4(%arg0: i32) -> (i32, i32) {
    %c0_i32 = arith.constant 0 : i32
    %c0_i32_0 = arith.constant 0 : i32
    %c0_i32_1 = arith.constant 0 : i32
    return %c0_i32, %c0_i32_0 : i32, i32
  }
  func.func @transform_5(%arg0: i32) -> (i32, i32) {
    %c0_i32 = arith.constant 0 : i32
    %c0_i32_0 = arith.constant 0 : i32
    %c0_i32_1 = arith.constant 0 : i32
    return %c0_i32, %c0_i32_0 : i32, i32
  }
}

module attributes {stable_mosaic.version = 11 : i64} {
  func.func @_se_proj_res_kernel(%arg0: i32, %arg1: i32, %arg2: i32, %arg3: i32, %arg4: memref<1x16x128xbf16, #tpu.memory_space<vmem>>, %arg5: memref<1x1x128xbf16, #tpu.memory_space<vmem>>, %arg6: memref<128x128xbf16, #tpu.memory_space<vmem>>, %arg7: memref<1x128xf32, #tpu.memory_space<vmem>>, %arg8: memref<1x16x128xbf16, #tpu.memory_space<vmem>>, %arg9: memref<1x16x128xbf16, #tpu.memory_space<vmem>>, %arg10: memref<16x128xf32, #tpu.memory_space<vmem>>) attributes {dimension_semantics = [#tpu.dimension_semantics<parallel>, #tpu.dimension_semantics<parallel>, #tpu.dimension_semantics<parallel>, #tpu.dimension_semantics<arbitrary>], iteration_bounds = array<i64: 2, 1, 1, 1>, scalar_prefetch = 0 : i64, scratch_operands = 1 : i64, tpu.core_type = #tpu.core_type<tc>, window_params = [{transform_indices = @transform_0, window_bounds = array<i64: 1, 16, 128>}, {transform_indices = @transform_1, window_bounds = array<i64: 1, 1, 128>}, {transform_indices = @transform_2, window_bounds = array<i64: 128, 128>}, {transform_indices = @transform_3, window_bounds = array<i64: 1, 128>}, {transform_indices = @transform_4, window_bounds = array<i64: 1, 16, 128>}, {transform_indices = @transform_5, window_bounds = array<i64: 1, 16, 128>}]} {
    %c0_i32 = arith.constant 0 : i32
    %0 = arith.cmpi eq, %arg3, %c0_i32 : i32
    %1 = arith.extui %0 : i1 to i32
    %c0_i32_0 = arith.constant 0 : i32
    %2 = arith.cmpi ne, %1, %c0_i32_0 : i32
    scf.if %2 {
      %cst_14 = arith.constant 0.000000e+00 : f32
      %17 = vector.broadcast %cst_14 : f32 to vector<16x128xf32>
      %c0_15 = arith.constant 0 : index
      %c0_16 = arith.constant 0 : index
      %18 = vector.load %arg10[%c0_15, %c0_16] : memref<16x128xf32, #tpu.memory_space<vmem>>, vector<16x128xf32>
      tpu.vector_store %arg10[%c0_15, %c0_16], %17 {strides = array<i32>} : memref<16x128xf32, #tpu.memory_space<vmem>>, vector<16x128xf32>,
    } else {
    }
    %c0 = arith.constant 0 : index
    %c0_1 = arith.constant 0 : index
    %c0_2 = arith.constant 0 : index
    %3 = vector.load %arg4[%c0, %c0_1, %c0_2] : memref<1x16x128xbf16, #tpu.memory_space<vmem>>, vector<1x16x128xbf16>
    %4 = vector.shape_cast %3 : vector<1x16x128xbf16> to vector<16x128xbf16>
    %c0_3 = arith.constant 0 : index
    %c0_4 = arith.constant 0 : index
    %c0_5 = arith.constant 0 : index
    %5 = vector.load %arg5[%c0_3, %c0_4, %c0_5] : memref<1x1x128xbf16, #tpu.memory_space<vmem>>, vector<1x1x128xbf16>
    %6 = vector.shape_cast %5 : vector<1x1x128xbf16> to vector<1x128xbf16>
    %7 = vector.broadcast %6 : vector<1x128xbf16> to vector<16x128xbf16>
    %8 = arith.mulf %4, %7 : vector<16x128xbf16>
    %c0_6 = arith.constant 0 : index
    %c0_7 = arith.constant 0 : index
    %9 = vector.load %arg10[%c0_6, %c0_7] : memref<16x128xf32, #tpu.memory_space<vmem>>, vector<16x128xf32>
    %c0_8 = arith.constant 0 : index
    %c0_9 = arith.constant 0 : index
    %10 = vector.load %arg6[%c0_8, %c0_9] : memref<128x128xbf16, #tpu.memory_space<vmem>>, vector<128x128xbf16>
    %cst = arith.constant dense<0.000000e+00> : vector<16x128xf32>
    %11 = tpu.matmul %8, %10, %cst {dimension_numbers = #tpu.dot_dimension_numbers<[1], [0], [0], [1], [0, 0, 1, 1], [], []>} : vector<16x128xbf16>, vector<128x128xbf16>, vector<16x128xf32> -> vector<16x128xf32>
    %12 = arith.addf %9, %11 : vector<16x128xf32>
    %c0_10 = arith.constant 0 : index
    %c0_11 = arith.constant 0 : index
    %13 = vector.load %arg10[%c0_10, %c0_11] : memref<16x128xf32, #tpu.memory_space<vmem>>, vector<16x128xf32>
    tpu.vector_store %arg10[%c0_10, %c0_11], %12 {strides = array<i32>} : memref<16x128xf32, #tpu.memory_space<vmem>>, vector<16x128xf32>,
    %c0_i32_12 = arith.constant 0 : i32
    %14 = arith.cmpi eq, %arg3, %c0_i32_12 : i32
    %15 = arith.extui %14 : i1 to i32
    %c0_i32_13 = arith.constant 0 : i32
    %16 = arith.cmpi ne, %15, %c0_i32_13 : i32
    scf.if %16 {
      %c0_14 = arith.constant 0 : index
      %c0_15 = arith.constant 0 : index
      %17 = vector.load %arg10[%c0_14, %c0_15] : memref<16x128xf32, #tpu.memory_space<vmem>>, vector<16x128xf32>
      %c0_16 = arith.constant 0 : index
      %c0_17 = arith.constant 0 : index
      %18 = vector.load %arg7[%c0_16, %c0_17] : memref<1x128xf32, #tpu.memory_space<vmem>>, vector<1x128xf32>
      %19 = vector.broadcast %18 : vector<1x128xf32> to vector<16x128xf32>
      %20 = arith.addf %17, %19 : vector<16x128xf32>
      %c0_18 = arith.constant 0 : index
      %c0_19 = arith.constant 0 : index
      %c0_20 = arith.constant 0 : index
      %21 = vector.load %arg8[%c0_18, %c0_19, %c0_20] : memref<1x16x128xbf16, #tpu.memory_space<vmem>>, vector<1x16x128xbf16>
      %22 = vector.shape_cast %21 : vector<1x16x128xbf16> to vector<16x128xbf16>
      %23 = arith.extf %22 : vector<16x128xbf16> to vector<16x128xf32>
      %24 = arith.addf %20, %23 : vector<16x128xf32>
      %25 = arith.truncf %24 : vector<16x128xf32> to vector<16x128xbf16>
      %c0_21 = arith.constant 0 : index
      %c0_22 = arith.constant 0 : index
      %c0_23 = arith.constant 0 : index
      %26 = vector.load %arg9[%c0_21, %c0_22, %c0_23] : memref<1x16x128xbf16, #tpu.memory_space<vmem>>, vector<1x16x128xbf16>
      %27 = vector.shape_cast %26 : vector<1x16x128xbf16> to vector<16x128xbf16>
      %28 = vector.shape_cast %25 : vector<16x128xbf16> to vector<1x16x128xbf16>
      tpu.vector_store %arg9[%c0_21, %c0_22, %c0_23], %28 {strides = array<i32>} : memref<1x16x128xbf16, #tpu.memory_space<vmem>>, vector<1x16x128xbf16>,
    } else {
    }
    return
  }
  func.func @transform_0(%arg0: i32, %arg1: i32, %arg2: i32, %arg3: i32) -> (i32, i32, i32) {
    %c0_i32 = arith.constant 0 : i32
    return %arg0, %arg1, %arg3 : i32, i32, i32
  }
  func.func @transform_1(%arg0: i32, %arg1: i32, %arg2: i32, %arg3: i32) -> (i32, i32, i32) {
    %c0_i32 = arith.constant 0 : i32
    %c0_i32_0 = arith.constant 0 : i32
    return %arg0, %c0_i32, %arg3 : i32, i32, i32
  }
  func.func @transform_2(%arg0: i32, %arg1: i32, %arg2: i32, %arg3: i32) -> (i32, i32) {
    %c0_i32 = arith.constant 0 : i32
    return %arg3, %arg2 : i32, i32
  }
  func.func @transform_3(%arg0: i32, %arg1: i32, %arg2: i32, %arg3: i32) -> (i32, i32) {
    %c0_i32 = arith.constant 0 : i32
    %c0_i32_0 = arith.constant 0 : i32
    return %c0_i32, %arg2 : i32, i32
  }
  func.func @transform_4(%arg0: i32, %arg1: i32, %arg2: i32, %arg3: i32) -> (i32, i32, i32) {
    %c0_i32 = arith.constant 0 : i32
    return %arg0, %arg1, %arg2 : i32, i32, i32
  }
  func.func @transform_5(%arg0: i32, %arg1: i32, %arg2: i32, %arg3: i32) -> (i32, i32, i32) {
    %c0_i32 = arith.constant 0 : i32
    return %arg0, %arg1, %arg2 : i32, i32, i32
  }
}

module attributes {stable_mosaic.version = 11 : i64} {
  func.func @_mm_kernel(%arg0: i32, %arg1: i32, %arg2: i32, %arg3: memref<16x128xbf16, #tpu.memory_space<vmem>>, %arg4: memref<128x128xbf16, #tpu.memory_space<vmem>>, %arg5: memref<1x128xf32, #tpu.memory_space<vmem>>, %arg6: memref<16x128xf32, #tpu.memory_space<vmem>>, %arg7: memref<16x128xf32, #tpu.memory_space<vmem>>) attributes {dimension_semantics = [#tpu.dimension_semantics<parallel>, #tpu.dimension_semantics<parallel>, #tpu.dimension_semantics<arbitrary>], iteration_bounds = array<i64: 1, 1, 1>, scalar_prefetch = 0 : i64, scratch_operands = 1 : i64, tpu.core_type = #tpu.core_type<tc>, window_params = [{transform_indices = @transform_0, window_bounds = array<i64: 16, 128>}, {transform_indices = @transform_1, window_bounds = array<i64: 128, 128>}, {transform_indices = @transform_2, window_bounds = array<i64: 1, 128>}, {transform_indices = @transform_3, window_bounds = array<i64: 16, 128>}]} {
    %c0_i32 = arith.constant 0 : i32
    %0 = arith.cmpi eq, %arg2, %c0_i32 : i32
    %1 = arith.extui %0 : i1 to i32
    %c0_i32_0 = arith.constant 0 : i32
    %2 = arith.cmpi ne, %1, %c0_i32_0 : i32
    scf.if %2 {
      %cst_10 = arith.constant 0.000000e+00 : f32
      %12 = vector.broadcast %cst_10 : f32 to vector<16x128xf32>
      %c0_11 = arith.constant 0 : index
      %c0_12 = arith.constant 0 : index
      %13 = vector.load %arg7[%c0_11, %c0_12] : memref<16x128xf32, #tpu.memory_space<vmem>>, vector<16x128xf32>
      tpu.vector_store %arg7[%c0_11, %c0_12], %12 {strides = array<i32>} : memref<16x128xf32, #tpu.memory_space<vmem>>, vector<16x128xf32>,
    } else {
    }
    %c0 = arith.constant 0 : index
    %c0_1 = arith.constant 0 : index
    %3 = vector.load %arg7[%c0, %c0_1] : memref<16x128xf32, #tpu.memory_space<vmem>>, vector<16x128xf32>
    %c0_2 = arith.constant 0 : index
    %c0_3 = arith.constant 0 : index
    %4 = vector.load %arg3[%c0_2, %c0_3] : memref<16x128xbf16, #tpu.memory_space<vmem>>, vector<16x128xbf16>
    %c0_4 = arith.constant 0 : index
    %c0_5 = arith.constant 0 : index
    %5 = vector.load %arg4[%c0_4, %c0_5] : memref<128x128xbf16, #tpu.memory_space<vmem>>, vector<128x128xbf16>
    %cst = arith.constant dense<0.000000e+00> : vector<16x128xf32>
    %6 = tpu.matmul %4, %5, %cst {dimension_numbers = #tpu.dot_dimension_numbers<[1], [0], [0], [1], [0, 0, 1, 1], [], []>} : vector<16x128xbf16>, vector<128x128xbf16>, vector<16x128xf32> -> vector<16x128xf32>
    %7 = arith.addf %3, %6 : vector<16x128xf32>
    %c0_6 = arith.constant 0 : index
    %c0_7 = arith.constant 0 : index
    %8 = vector.load %arg7[%c0_6, %c0_7] : memref<16x128xf32, #tpu.memory_space<vmem>>, vector<16x128xf32>
    tpu.vector_store %arg7[%c0_6, %c0_7], %7 {strides = array<i32>} : memref<16x128xf32, #tpu.memory_space<vmem>>, vector<16x128xf32>,
    %c0_i32_8 = arith.constant 0 : i32
    %9 = arith.cmpi eq, %arg2, %c0_i32_8 : i32
    %10 = arith.extui %9 : i1 to i32
    %c0_i32_9 = arith.constant 0 : i32
    %11 = arith.cmpi ne, %10, %c0_i32_9 : i32
    scf.if %11 {
      %c0_10 = arith.constant 0 : index
      %c0_11 = arith.constant 0 : index
      %12 = vector.load %arg7[%c0_10, %c0_11] : memref<16x128xf32, #tpu.memory_space<vmem>>, vector<16x128xf32>
      %c0_12 = arith.constant 0 : index
      %c0_13 = arith.constant 0 : index
      %13 = vector.load %arg5[%c0_12, %c0_13] : memref<1x128xf32, #tpu.memory_space<vmem>>, vector<1x128xf32>
      %14 = vector.broadcast %13 : vector<1x128xf32> to vector<16x128xf32>
      %15 = arith.addf %12, %14 : vector<16x128xf32>
      %c0_14 = arith.constant 0 : index
      %c0_15 = arith.constant 0 : index
      %16 = vector.load %arg6[%c0_14, %c0_15] : memref<16x128xf32, #tpu.memory_space<vmem>>, vector<16x128xf32>
      tpu.vector_store %arg6[%c0_14, %c0_15], %15 {strides = array<i32>} : memref<16x128xf32, #tpu.memory_space<vmem>>, vector<16x128xf32>,
    } else {
    }
    return
  }
  func.func @transform_0(%arg0: i32, %arg1: i32, %arg2: i32) -> (i32, i32) {
    %c0_i32 = arith.constant 0 : i32
    return %arg0, %arg2 : i32, i32
  }
  func.func @transform_1(%arg0: i32, %arg1: i32, %arg2: i32) -> (i32, i32) {
    %c0_i32 = arith.constant 0 : i32
    return %arg2, %arg1 : i32, i32
  }
  func.func @transform_2(%arg0: i32, %arg1: i32, %arg2: i32) -> (i32, i32) {
    %c0_i32 = arith.constant 0 : i32
    %c0_i32_0 = arith.constant 0 : i32
    return %c0_i32, %arg1 : i32, i32
  }
  func.func @transform_3(%arg0: i32, %arg1: i32, %arg2: i32) -> (i32, i32) {
    %c0_i32 = arith.constant 0 : i32
    return %arg0, %arg1 : i32, i32
  }
}

</mosaic_0001>

<llo_original>
// kernel: _lambda_.10
$region0: #{_lambda_.10}
  #allocation0 [shape = 'u32[]', space=smem, size = 0x4, offset = 0x4, fixed_abs, tag = 'smem constant byte address 0x4 - core index']
  #allocation1 [shape = 'u32[144,128]{1,0:T(1,128)}', space=vmem, size = 0x12000, scoped, tag = 'internal scratch']
  #allocation2 [shape = 'f32[128,128]{1,0:T(8,128)}', space=vmem, size = 0x10000, scoped, tag = 'scratch operand']
  %s0 = inlined_call_operand.vmem [shape: bf16[128,128], index: 0, kind: input, shape index: {}]
  %s1 = inlined_call_operand.vmem [shape: bf16[128,128], index: 1, kind: input, shape index: {}]
  %s2 = inlined_call_operand.vmem [shape: f32[1,128], index: 2, kind: input, shape index: {}]
  %s3 = inlined_call_operand.vmem [shape: bf16[128,128], index: 3, kind: output, shape index: {}]
  %s4 = sld [smem:[#allocation0]]
  $region30: #{_lambda_.10} parent=0
    _
  %s6 = ssub.s32 1, %s4
  %s7 = scalar_select 0, %s6, %s4
  // Predicated region
  $region2: #{_lambda_.10} parent=0 // pred_check
    _
  $region3: #{_lambda_.10} parent=0 // pred_check_branch
    %9 = sbr.rel (0) target = $region5
  $region4: #{_lambda_.10} parent=0 // pred_region
    _
  $region5: #{_lambda_.10} parent=0 // pred_fallthru
    _
  // Predicated region
  $region6: #{_lambda_.10} parent=0 // pred_check
    _
  $region7: #{_lambda_.10} parent=0 // pred_check_branch
    %11 = sbr.rel (0) target = $region9
  $region8: #{_lambda_.10} parent=0 // pred_region
    _
  $region9: #{_lambda_.10} parent=0 // pred_fallthru
    _
  // Predicated region
  $region10: #{_lambda_.10} parent=0 // pred_check
    _
  $region11: #{_lambda_.10} parent=0 // pred_check_branch
    %13 = sbr.rel (0) target = $region13
  $region12: #{_lambda_.10} parent=0 // pred_region
    _
  $region13: #{_lambda_.10} parent=0 // pred_fallthru
    _
  %p15 = scmp.eq.s32.totalorder 0, 0
  // Predicated region
  $region14: #{_lambda_.10} parent=0 // pred_check
    %p16 = pneg %p15
  $region15: #{_lambda_.10} parent=0 // pred_check_branch
    %18 = sbr.rel (%p16) target = $region17
  $region16: #{_lambda_.10} parent=0 // pred_region
    %19 = vst [vmem:[#allocation2] sm:$0xff] 0.0
    %20 = vst [vmem:[#allocation2 + $0x8] sm:$0xff] 0.0
    %21 = vst [vmem:[#allocation2 + $0x10] sm:$0xff] 0.0
    %22 = vst [vmem:[#allocation2 + $0x18] sm:$0xff] 0.0
    %23 = vst [vmem:[#allocation2 + $0x20] sm:$0xff] 0.0
    %24 = vst [vmem:[#allocation2 + $0x28] sm:$0xff] 0.0
    %25 = vst [vmem:[#allocation2 + $0x30] sm:$0xff] 0.0
    %26 = vst [vmem:[#allocation2 + $0x38] sm:$0xff] 0.0
    %27 = vst [vmem:[#allocation2 + $0x40] sm:$0xff] 0.0
    %28 = vst [vmem:[#allocation2 + $0x48] sm:$0xff] 0.0
    %29 = vst [vmem:[#allocation2 + $0x50] sm:$0xff] 0.0
    %30 = vst [vmem:[#allocation2 + $0x58] sm:$0xff] 0.0
    %31 = vst [vmem:[#allocation2 + $0x60] sm:$0xff] 0.0
    %32 = vst [vmem:[#allocation2 + $0x68] sm:$0xff] 0.0
    %33 = vst [vmem:[#allocation2 + $0x70] sm:$0xff] 0.0
    %34 = vst [vmem:[#allocation2 + $0x78] sm:$0xff] 0.0
  $region17: #{_lambda_.10} parent=0 // pred_fallthru
    _
  %v35 = vld [vmem:[#allocation2] sm:$0xff]
  %v36 = vld [vmem:[#allocation2 + $0x8] sm:$0xff]
  %v37 = vld [vmem:[#allocation2 + $0x10] sm:$0xff]
  %v38 = vld [vmem:[#allocation2 + $0x18] sm:$0xff]
  %v39 = vld [vmem:[#allocation2 + $0x20] sm:$0xff]
  %v40 = vld [vmem:[#allocation2 + $0x28] sm:$0xff]
  %v41 = vld [vmem:[#allocation2 + $0x30] sm:$0xff]
  %v42 = vld [vmem:[#allocation2 + $0x38] sm:$0xff]
  %v43 = vld [vmem:[#allocation2 + $0x40] sm:$0xff]
  %v44 = vld [vmem:[#allocation2 + $0x48] sm:$0xff]
  %v45 = vld [vmem:[#allocation2 + $0x50] sm:$0xff]
  %v46 = vld [vmem:[#allocation2 + $0x58] sm:$0xff]
  %v47 = vld [vmem:[#allocation2 + $0x60] sm:$0xff]
  %v48 = vld [vmem:[#allocation2 + $0x68] sm:$0xff]
  %v49 = vld [vmem:[#allocation2 + $0x70] sm:$0xff]
  %v50 = vld [vmem:[#allocation2 + $0x78] sm:$0xff]
  %v51 = vld [vmem:[%s0] sm:$0xf]
  %v52 = vld [vmem:[%s0 + $0x4] sm:$0xf]
  %v53 = vld [vmem:[%s0 + $0x8] sm:$0xf]
  %v54 = vld [vmem:[%s0 + $0xc] sm:$0xf]
  %v55 = vld [vmem:[%s0 + $0x10] sm:$0xf]
  %v56 = vld [vmem:[%s0 + $0x14] sm:$0xf]
  %v57 = vld [vmem:[%s0 + $0x18] sm:$0xf]
  %v58 = vld [vmem:[%s0 + $0x1c] sm:$0xf]
  %v59 = vld [vmem:[%s0 + $0x20] sm:$0xf]
  %v60 = vld [vmem:[%s0 + $0x24] sm:$0xf]
  %v61 = vld [vmem:[%s0 + $0x28] sm:$0xf]
  %v62 = vld [vmem:[%s0 + $0x2c] sm:$0xf]
  %v63 = vld [vmem:[%s0 + $0x30] sm:$0xf]
  %v64 = vld [vmem:[%s0 + $0x34] sm:$0xf]
  %v65 = vld [vmem:[%s0 + $0x38] sm:$0xf]
  %v66 = vld [vmem:[%s0 + $0x3c] sm:$0xf]
  %v67 = vld [vmem:[%s1] sm:$0xf]
  %v68 = vld [vmem:[%s1 + $0x4] sm:$0xf]
  %v69 = vld [vmem:[%s1 + $0x8] sm:$0xf]
  %v70 = vld [vmem:[%s1 + $0xc] sm:$0xf]
  %v71 = vld [vmem:[%s1 + $0x10] sm:$0xf]
  %v72 = vld [vmem:[%s1 + $0x14] sm:$0xf]
  %v73 = vld [vmem:[%s1 + $0x18] sm:$0xf]
  %v74 = vld [vmem:[%s1 + $0x1c] sm:$0xf]
  %v75 = vld [vmem:[%s1 + $0x20] sm:$0xf]
  %v76 = vld [vmem:[%s1 + $0x24] sm:$0xf]
  %v77 = vld [vmem:[%s1 + $0x28] sm:$0xf]
  %v78 = vld [vmem:[%s1 + $0x2c] sm:$0xf]
  %v79 = vld [vmem:[%s1 + $0x30] sm:$0xf]
  %v80 = vld [vmem:[%s1 + $0x34] sm:$0xf]
  %v81 = vld [vmem:[%s1 + $0x38] sm:$0xf]
  %v82 = vld [vmem:[%s1 + $0x3c] sm:$0xf]
  %v99 = vunpack.c.l.b16 %v51
  %v100 = vunpack.c.l.b16 %v52
  %v101 = vunpack.c.l.b16 %v53
  %v102 = vunpack.c.l.b16 %v54
  %v103 = vunpack.c.l.b16 %v55
  %v104 = vunpack.c.l.b16 %v56
  %v105 = vunpack.c.l.b16 %v57
  %v106 = vunpack.c.l.b16 %v58
  %v107 = vunpack.c.l.b16 %v59
  %v108 = vunpack.c.l.b16 %v60
  %v109 = vunpack.c.l.b16 %v61
  %v110 = vunpack.c.l.b16 %v62
  %v111 = vunpack.c.l.b16 %v63
  %v112 = vunpack.c.l.b16 %v64
  %v113 = vunpack.c.l.b16 %v65
  %v114 = vunpack.c.l.b16 %v66
  %v115 = vpack.c.b16 %v100, %v99
  %v116 = vpack.c.b16 %v102, %v101
  %v117 = vpack.c.b16 %v104, %v103
  %v118 = vpack.c.b16 %v106, %v105
  %v119 = vpack.c.b16 %v108, %v107
  %v120 = vpack.c.b16 %v110, %v109
  %v121 = vpack.c.b16 %v112, %v111
  %v122 = vpack.c.b16 %v114, %v113
  %v147 = vunpack.c.l.b16 %v67
  %v148 = vunpack.c.l.b16 %v68
  %v149 = vunpack.c.l.b16 %v69
  %v150 = vunpack.c.l.b16 %v70
  %v151 = vunpack.c.l.b16 %v71
  %v152 = vunpack.c.l.b16 %v72
  %v153 = vunpack.c.l.b16 %v73
  %v154 = vunpack.c.l.b16 %v74
  %v155 = vunpack.c.l.b16 %v75
  %v156 = vunpack.c.l.b16 %v76
  %v157 = vunpack.c.l.b16 %v77
  %v158 = vunpack.c.l.b16 %v78
  %v159 = vunpack.c.l.b16 %v79
  %v160 = vunpack.c.l.b16 %v80
  %v161 = vunpack.c.l.b16 %v81
  %v162 = vunpack.c.l.b16 %v82
  %v163 = vpack.c.b16 %v148, %v147
  %v164 = vpack.c.b16 %v150, %v149
  %v165 = vpack.c.b16 %v152, %v151
  %v166 = vpack.c.b16 %v154, %v153
  %v167 = vpack.c.b16 %v156, %v155
  %v168 = vpack.c.b16 %v158, %v157
  %v169 = vpack.c.b16 %v160, %v159
  %v170 = vpack.c.b16 %v162, %v161
  %179 = vmatprep.subr.bf16.mxu0 0
  %180 = vmatpush1.bf16.msra.mxu0 %v170
  %181 = vmatprep.subr.bf16.mxu0 0
  %182 = vmatpush1.bf16.msra.mxu0 %v169
  %183 = vmatprep.subr.bf16.mxu0 0
  %184 = vmatpush1.bf16.msra.mxu0 %v168
  %185 = vmatprep.subr.bf16.mxu0 0
  %186 = vmatpush1.bf16.msra.mxu0 %v167
  %187 = vmatprep.subr.bf16.mxu0 0
  %188 = vmatpush1.bf16.msra.mxu0 %v166
  %189 = vmatprep.subr.bf16.mxu0 0
  %190 = vmatpush1.bf16.msra.mxu0 %v165
  %191 = vmatprep.subr.bf16.mxu0 0
  %192 = vmatpush1.bf16.msra.mxu0 %v164
  %193 = vmatprep.subr.bf16.mxu0 0
  %194 = vmatpush1.bf16.msra.mxu0 %v163
  %195 = vmatprep.subr.bf16.mxu0 0
  %196 = vmatpush2.bf16.msra.mxu0 0
  %197 = vmatprep.subr.bf16.mxu0 0
  %198 = vmatpush2.bf16.msra.mxu0 0
  %199 = vmatprep.subr.bf16.mxu0 0
  %200 = vmatpush2.bf16.msra.mxu0 0
  %201 = vmatprep.subr.bf16.mxu0 0
  %202 = vmatpush2.bf16.msra.mxu0 0
  %203 = vmatprep.subr.bf16.mxu0 0
  %204 = vmatpush2.bf16.msra.mxu0 0
  %205 = vmatprep.subr.bf16.mxu0 0
  %206 = vmatpush2.bf16.msra.mxu0 0
  %207 = vmatprep.subr.bf16.mxu0 0
  %208 = vmatpush2.bf16.msra.mxu0 0
  %209 = vmatprep.subr.bf16.mxu0 0
  %210 = vmatpush2.bf16.msra.mxu0 0
  %211 = vmatprep.mubr.bf16.mxu0 0
  %212 = vmatmul.mubr.bf16.gmra.mxu0 %v115
  %v213 = vpop.f32.mrf.mxu0
  %v214 = vadd.f32 0.0, %v213
  %v215 = vpop.f32.mrf.mxu0
  %v216 = vpop.f32.mrf.mxu0
  %v217 = vadd.f32 0.0, %v216
  %v218 = vpop.f32.mrf.mxu0
  %219 = vmatprep.mubr.bf16.mxu0 0
  %220 = vmatmul.mubr.bf16.gmra.mxu0 %v116
  %v221 = vpop.f32.mrf.mxu0
  %v222 = vadd.f32 0.0, %v221
  %v223 = vpop.f32.mrf.mxu0
  %v224 = vpop.f32.mrf.mxu0
  %v225 = vadd.f32 0.0, %v224
  %v226 = vpop.f32.mrf.mxu0
  %227 = vmatprep.mubr.bf16.mxu0 0
  %228 = vmatmul.mubr.bf16.gmra.mxu0 %v117
  %v229 = vpop.f32.mrf.mxu0
  %v230 = vadd.f32 0.0, %v229
  %v231 = vpop.f32.mrf.mxu0
  %v232 = vpop.f32.mrf.mxu0
  %v233 = vadd.f32 0.0, %v232
  %v234 = vpop.f32.mrf.mxu0
  %235 = vmatprep.mubr.bf16.mxu0 0
  %236 = vmatmul.mubr.bf16.gmra.mxu0 %v118
  %v237 = vpop.f32.mrf.mxu0
  %v238 = vadd.f32 0.0, %v237
  %v239 = vpop.f32.mrf.mxu0
  %v240 = vpop.f32.mrf.mxu0
  %v241 = vadd.f32 0.0, %v240
  %v242 = vpop.f32.mrf.mxu0
  %243 = vmatprep.mubr.bf16.mxu0 0
  %244 = vmatmul.mubr.bf16.gmra.mxu0 %v119
  %v245 = vpop.f32.mrf.mxu0
  %v246 = vadd.f32 0.0, %v245
  %v247 = vpop.f32.mrf.mxu0
  %v248 = vpop.f32.mrf.mxu0
  %v249 = vadd.f32 0.0, %v248
  %v250 = vpop.f32.mrf.mxu0
  %251 = vmatprep.mubr.bf16.mxu0 0
  %252 = vmatmul.mubr.bf16.gmra.mxu0 %v120
  %v253 = vpop.f32.mrf.mxu0
  %v254 = vadd.f32 0.0, %v253
  %v255 = vpop.f32.mrf.mxu0
  %v256 = vpop.f32.mrf.mxu0
  %v257 = vadd.f32 0.0, %v256
  %v258 = vpop.f32.mrf.mxu0
  %259 = vmatprep.mubr.bf16.mxu0 0
  %260 = vmatmul.mubr.bf16.gmra.mxu0 %v121
  %v261 = vpop.f32.mrf.mxu0
  %v262 = vadd.f32 0.0, %v261
  %v263 = vpop.f32.mrf.mxu0
  %v264 = vpop.f32.mrf.mxu0
  %v265 = vadd.f32 0.0, %v264
  %v266 = vpop.f32.mrf.mxu0
  %267 = vmatprep.mubr.bf16.mxu0 0
  %268 = vmatmul.mubr.bf16.gmra.mxu0 %v122
  %v269 = vpop.f32.mrf.mxu0
  %v270 = vadd.f32 0.0, %v269
  %v271 = vpop.f32.mrf.mxu0
  %v272 = vpop.f32.mrf.mxu0
  %v273 = vadd.f32 0.0, %v272
  %v274 = vpop.f32.mrf.mxu0
  %275 = vdwg.mxu0
  %v276 = vadd.f32 %v35, %v214
  %v277 = vadd.f32 %v36, %v217
  %v278 = vadd.f32 %v37, %v222
  %v279 = vadd.f32 %v38, %v225
  %v280 = vadd.f32 %v39, %v230
  %v281 = vadd.f32 %v40, %v233
  %v282 = vadd.f32 %v41, %v238
  %v283 = vadd.f32 %v42, %v241
  %v284 = vadd.f32 %v43, %v246
  %v285 = vadd.f32 %v44, %v249
  %v286 = vadd.f32 %v45, %v254
  %v287 = vadd.f32 %v46, %v257
  %v288 = vadd.f32 %v47, %v262
  %v289 = vadd.f32 %v48, %v265
  %v290 = vadd.f32 %v49, %v270
  %v291 = vadd.f32 %v50, %v273
  %292 = vst [vmem:[#allocation2] sm:$0xff] %v276
  %293 = vst [vmem:[#allocation2 + $0x8] sm:$0xff] %v277
  %294 = vst [vmem:[#allocation2 + $0x10] sm:$0xff] %v278
  %295 = vst [vmem:[#allocation2 + $0x18] sm:$0xff] %v279
  %296 = vst [vmem:[#allocation2 + $0x20] sm:$0xff] %v280
  %297 = vst [vmem:[#allocation2 + $0x28] sm:$0xff] %v281
  %298 = vst [vmem:[#allocation2 + $0x30] sm:$0xff] %v282
  %299 = vst [vmem:[#allocation2 + $0x38] sm:$0xff] %v283
  %300 = vst [vmem:[#allocation2 + $0x40] sm:$0xff] %v284
  %301 = vst [vmem:[#allocation2 + $0x48] sm:$0xff] %v285
  %302 = vst [vmem:[#allocation2 + $0x50] sm:$0xff] %v286
  %303 = vst [vmem:[#allocation2 + $0x58] sm:$0xff] %v287
  %304 = vst [vmem:[#allocation2 + $0x60] sm:$0xff] %v288
  %305 = vst [vmem:[#allocation2 + $0x68] sm:$0xff] %v289
  %306 = vst [vmem:[#allocation2 + $0x70] sm:$0xff] %v290
  %307 = vst [vmem:[#allocation2 + $0x78] sm:$0xff] %v291
  // Predicated region
  $region18: #{_lambda_.10} parent=0 // pred_check
    %p308 = pneg %p15
  $region19: #{_lambda_.10} parent=0 // pred_check_branch
    %310 = sbr.rel (%p308) target = $region21
  $region20: #{_lambda_.10} parent=0 // pred_region
    %v311 = vld [vmem:[#allocation2] sm:$0xff]
    %v312 = vld [vmem:[#allocation2 + $0x8] sm:$0xff]
    %v313 = vld [vmem:[#allocation2 + $0x10] sm:$0xff]
    %v314 = vld [vmem:[#allocation2 + $0x18] sm:$0xff]
    %v315 = vld [vmem:[#allocation2 + $0x20] sm:$0xff]
    %v316 = vld [vmem:[#allocation2 + $0x28] sm:$0xff]
    %v317 = vld [vmem:[#allocation2 + $0x30] sm:$0xff]
    %v318 = vld [vmem:[#allocation2 + $0x38] sm:$0xff]
    %v319 = vld [vmem:[#allocation2 + $0x40] sm:$0xff]
    %v320 = vld [vmem:[#allocation2 + $0x48] sm:$0xff]
    %v321 = vld [vmem:[#allocation2 + $0x50] sm:$0xff]
    %v322 = vld [vmem:[#allocation2 + $0x58] sm:$0xff]
    %v323 = vld [vmem:[#allocation2 + $0x60] sm:$0xff]
    %v324 = vld [vmem:[#allocation2 + $0x68] sm:$0xff]
    %v325 = vld [vmem:[#allocation2 + $0x70] sm:$0xff]
    %v326 = vld [vmem:[#allocation2 + $0x78] sm:$0xff]
    %v327 = vld [vmem:[%s2] sm:$0x1]
    %v329 = vlaneseq
    %v330 = vshrl.u32 %v329, 7
    %v331 = vsub.s32 0, %v330
    %v332 = vrot.slane %v327, %v331
    %v334 = vadd.f32 %v311, %v332
    %v335 = vadd.f32 %v312, %v332
    %v336 = vadd.f32 %v313, %v332
    %v337 = vadd.f32 %v314, %v332
    %v338 = vadd.f32 %v315, %v332
    %v339 = vadd.f32 %v316, %v332
    %v340 = vadd.f32 %v317, %v332
    %v341 = vadd.f32 %v318, %v332
    %v342 = vadd.f32 %v319, %v332
    %v343 = vadd.f32 %v320, %v332
    %v344 = vadd.f32 %v321, %v332
    %v345 = vadd.f32 %v322, %v332
    %v346 = vadd.f32 %v323, %v332
    %v347 = vadd.f32 %v324, %v332
    %v348 = vadd.f32 %v325, %v332
    %v349 = vadd.f32 %v326, %v332
    %v350 = vmul.f32 %v334, 0.5
    %v351 = vmul.f32 %v335, 0.5
    %v352 = vmul.f32 %v336, 0.5
    %v353 = vmul.f32 %v337, 0.5
    %v354 = vmul.f32 %v338, 0.5
    %v355 = vmul.f32 %v339, 0.5
    %v356 = vmul.f32 %v340, 0.5
    %v357 = vmul.f32 %v341, 0.5
    %v358 = vmul.f32 %v342, 0.5
    %v359 = vmul.f32 %v343, 0.5
    %v360 = vmul.f32 %v344, 0.5
    %v361 = vmul.f32 %v345, 0.5
    %v362 = vmul.f32 %v346, 0.5
    %v363 = vmul.f32 %v347, 0.5
    %v364 = vmul.f32 %v348, 0.5
    %v365 = vmul.f32 %v349, 0.5
    %v366 = vtanh.pop %v350
    %v367 = vtanh.pop %v351
    %v368 = vtanh.pop %v352
    %v369 = vtanh.pop %v353
    %v370 = vtanh.pop %v354
    %v371 = vtanh.pop %v355
    %v372 = vtanh.pop %v356
    %v373 = vtanh.pop %v357
    %v374 = vtanh.pop %v358
    %v375 = vtanh.pop %v359
    %v376 = vtanh.pop %v360
    %v377 = vtanh.pop %v361
    %v378 = vtanh.pop %v362
    %v379 = vtanh.pop %v363
    %v380 = vtanh.pop %v364
    %v381 = vtanh.pop %v365
    %v382 = vadd.f32 %v366, 1.0
    %v383 = vadd.f32 %v367, 1.0
    %v384 = vadd.f32 %v368, 1.0
    %v385 = vadd.f32 %v369, 1.0
    %v386 = vadd.f32 %v370, 1.0
    %v387 = vadd.f32 %v371, 1.0
    %v388 = vadd.f32 %v372, 1.0
    %v389 = vadd.f32 %v373, 1.0
    %v390 = vadd.f32 %v374, 1.0
    %v391 = vadd.f32 %v375, 1.0
    %v392 = vadd.f32 %v376, 1.0
    %v393 = vadd.f32 %v377, 1.0
    %v394 = vadd.f32 %v378, 1.0
    %v395 = vadd.f32 %v379, 1.0
    %v396 = vadd.f32 %v380, 1.0
    %v397 = vadd.f32 %v381, 1.0
    %v398 = vmul.f32 %v382, 0.5
    %v399 = vmul.f32 %v383, 0.5
    %v400 = vmul.f32 %v384, 0.5
    %v401 = vmul.f32 %v385, 0.5
    %v402 = vmul.f32 %v386, 0.5
    %v403 = vmul.f32 %v387, 0.5
    %v404 = vmul.f32 %v388, 0.5
    %v405 = vmul.f32 %v389, 0.5
    %v406 = vmul.f32 %v390, 0.5
    %v407 = vmul.f32 %v391, 0.5
    %v408 = vmul.f32 %v392, 0.5
    %v409 = vmul.f32 %v393, 0.5
    %v410 = vmul.f32 %v394, 0.5
    %v411 = vmul.f32 %v395, 0.5
    %v412 = vmul.f32 %v396, 0.5
    %v413 = vmul.f32 %v397, 0.5
    %v414 = vmul.f32 %v334, %v398
    %v415 = vmul.f32 %v335, %v399
    %v416 = vmul.f32 %v336, %v400
    %v417 = vmul.f32 %v337, %v401
    %v418 = vmul.f32 %v338, %v402
    %v419 = vmul.f32 %v339, %v403
    %v420 = vmul.f32 %v340, %v404
    %v421 = vmul.f32 %v341, %v405
    %v422 = vmul.f32 %v342, %v406
    %v423 = vmul.f32 %v343, %v407
    %v424 = vmul.f32 %v344, %v408
    %v425 = vmul.f32 %v345, %v409
    %v426 = vmul.f32 %v346, %v410
    %v427 = vmul.f32 %v347, %v411
    %v428 = vmul.f32 %v348, %v412
    %v429 = vmul.f32 %v349, %v413
    %v430 = vpack.c.bf16 %v415, %v414
    %v431 = vpack.c.bf16 %v417, %v416
    %v432 = vpack.c.bf16 %v419, %v418
    %v433 = vpack.c.bf16 %v421, %v420
    %v434 = vpack.c.bf16 %v423, %v422
    %v435 = vpack.c.bf16 %v425, %v424
    %v436 = vpack.c.bf16 %v427, %v426
    %v437 = vpack.c.bf16 %v429, %v428
    %v446 = vunpack.c.l.b16 %v430
    %v447 = vunpack.c.h.b16 %v430
    %v448 = vunpack.c.l.b16 %v431
    %v449 = vunpack.c.h.b16 %v431
    %v450 = vunpack.c.l.b16 %v432
    %v451 = vunpack.c.h.b16 %v432
    %v452 = vunpack.c.l.b16 %v433
    %v453 = vunpack.c.h.b16 %v433
    %v454 = vunpack.c.l.b16 %v434
    %v455 = vunpack.c.h.b16 %v434
    %v456 = vunpack.c.l.b16 %v435
    %v457 = vunpack.c.h.b16 %v435
    %v458 = vunpack.c.l.b16 %v436
    %v459 = vunpack.c.h.b16 %v436
    %v460 = vunpack.c.l.b16 %v437
    %v461 = vunpack.c.h.b16 %v437
    %v462 = vpack.c.b16 %v446, %v446
    %v463 = vpack.c.b16 %v447, %v447
    %v464 = vpack.c.b16 %v448, %v448
    %v465 = vpack.c.b16 %v449, %v449
    %v466 = vpack.c.b16 %v450, %v450
    %v467 = vpack.c.b16 %v451, %v451
    %v468 = vpack.c.b16 %v452, %v452
    %v469 = vpack.c.b16 %v453, %v453
    %v470 = vpack.c.b16 %v454, %v454
    %v471 = vpack.c.b16 %v455, %v455
    %v472 = vpack.c.b16 %v456, %v456
    %v473 = vpack.c.b16 %v457, %v457
    %v474 = vpack.c.b16 %v458, %v458
    %v475 = vpack.c.b16 %v459, %v459
    %v476 = vpack.c.b16 %v460, %v460
    %v477 = vpack.c.b16 %v461, %v461
    %494 = vst [vmem:[%s3] sm:$0xf] %v462
    %495 = vst [vmem:[%s3 + $0x4] sm:$0xf] %v463
    %496 = vst [vmem:[%s3 + $0x8] sm:$0xf] %v464
    %497 = vst [vmem:[%s3 + $0xc] sm:$0xf] %v465
    %498 = vst [vmem:[%s3 + $0x10] sm:$0xf] %v466
    %499 = vst [vmem:[%s3 + $0x14] sm:$0xf] %v467
    %500 = vst [vmem:[%s3 + $0x18] sm:$0xf] %v468
    %501 = vst [vmem:[%s3 + $0x1c] sm:$0xf] %v469
    %502 = vst [vmem:[%s3 + $0x20] sm:$0xf] %v470
    %503 = vst [vmem:[%s3 + $0x24] sm:$0xf] %v471
    %504 = vst [vmem:[%s3 + $0x28] sm:$0xf] %v472
    %505 = vst [vmem:[%s3 + $0x2c] sm:$0xf] %v473
    %506 = vst [vmem:[%s3 + $0x30] sm:$0xf] %v474
    %507 = vst [vmem:[%s3 + $0x34] sm:$0xf] %v475
    %508 = vst [vmem:[%s3 + $0x38] sm:$0xf] %v476
    %509 = vst [vmem:[%s3 + $0x3c] sm:$0xf] %v477
  $region21: #{_lambda_.10} parent=0 // pred_fallthru
    _
  // Predicated region
  $region22: #{_lambda_.10} parent=0 // pred_check
    _
  $region23: #{_lambda_.10} parent=0 // pred_check_branch
    %511 = sbr.rel (0) target = $region25
  $region24: #{_lambda_.10} parent=0 // pred_region
    _
  $region25: #{_lambda_.10} parent=0 // pred_fallthru
    _
  // Predicated region
  $region26: #{_lambda_.10} parent=0 // pred_check
    _
  $region27: #{_lambda_.10} parent=0 // pred_check_branch
    %513 = sbr.rel (0) target = $region29
  $region28: #{_lambda_.10} parent=0 // pred_region
    _
  $region29: #{_lambda_.10} parent=0 // pred_fallthru
    _

// kernel: _lambda_.11
$region0: #{_lambda_.11}
  #allocation0 [shape = 'u32[]', space=smem, size = 0x4, offset = 0x4, fixed_abs, tag = 'smem constant byte address 0x4 - core index']
  #allocation1 [shape = 'u32[144,128]{1,0:T(1,128)}', space=vmem, size = 0x12000, scoped, tag = 'internal scratch']
  %s0 = inlined_call_operand.vmem [shape: bf16[2,110,128], index: 0, kind: input, shape index: {}]
  %s1 = inlined_call_operand.vmem [shape: bf16[9,128,128], index: 1, kind: input, shape index: {}]
  %s2 = inlined_call_operand.vmem [shape: f32[1,128], index: 2, kind: input, shape index: {}]
  %s3 = inlined_call_operand.vmem [shape: bf16[2,80,128], index: 3, kind: input, shape index: {}]
  %s4 = inlined_call_operand.vmem [shape: bf16[2,80,128], index: 4, kind: output, shape index: {}]
  %s5 = sld [smem:[#allocation0]]
  $region49: #{_lambda_.11} parent=0
    _
  %s7 = ssub.s32 1, %s5
  %s8 = scalar_select 0, %s7, %s5
  loop: start=0, step=1, limit=4
  $region2: #{_lambda_.11} parent=0 // loop_pre_header
    _
  $region3: #{_lambda_.11} parent=0 // loop_header
    %s10 = sphi 0, %s14
    %p11 = scmp.ge.s32.totalorder %s10, 4
    %s17 = sphi 0, %s29
    %s18 = sphi 0, %s25
    %s19 = sphi 0, %s17
    %s20 = sphi 0, %s18
    %s21 = sphi 0, %s19
    %s22 = sphi 0, %s20
    %s32 = sphi 0, %s34
    %s35 = sphi 0, %s32
    %s36 = sphi 0, %s35
    %s52 = sphi 0, %s36
    %s58 = sphi 0, %s60
    %s61 = sphi 0, %s58
    %s62 = sphi 0, %s61
    %s78 = sphi 0, %s62
    %s84 = sphi 0, %s86
    %s87 = sphi 0, %s84
    %s88 = sphi 0, %s87
    %s104 = sphi 0, %s88
    %s112 = sphi 0, %s114
    %s115 = sphi 0, %s112
    %s116 = sphi 0, %s115
    %s132 = sphi 0, %s116
    %s140 = sphi 0, %s142
    %s143 = sphi 0, %s140
    %s144 = sphi 0, %s143
    %s160 = sphi 0, %s144
  $region4: #{_lambda_.11} parent=0 // loop_header_branch
    %13 = sbr.rel (%p11) target = $region8
  $region5: #{_lambda_.11} parent=0 // loop_body
    %s15 = ssub.s32 %s10, 1
    %s16 = ssub.s32 %s10, 2
    %s23 = sadd.s32 1, %s18
    %p24 = scmp.ge.s32.totalorder %s23, 1
    %s25 = scalar_select %p24, 0, %s23
    %s26 = sadd.s32 1, %s17
    %s27 = scalar_select %p24, %s26, %s17
    %p28 = scmp.ge.s32.totalorder %s27, 2
    %s29 = scalar_select %p28, 0, %s27
    %s30 = ssub.s32 %s17, %s29
    %p31 = scmp.eq.s32.totalorder %s30, 0
    %s33 = sadd.s32 %s32, 1
    %s34 = scalar_select %p31, %s32, %s33
    %p37 = pneg %p31
    %p38 = scmp.eq.s32.totalorder %s10, 1
    %p39 = por %p37, %p38
    %p40 = scmp.ne.s32.totalorder %s32, %s35
    %p41 = scmp.eq.s32.totalorder %s10, 0
    %p42 = por %p40, %p41
    %p43 = scmp.ne.s32.totalorder %s32, %s35
    %p44 = scmp.eq.s32.totalorder %s15, 1
    %p45 = por %p43, %p44
    %p46 = scmp.ne.s32.totalorder %s35, %s36
    %p47 = scmp.eq.s32.totalorder %s15, 0
    %p48 = por %p46, %p47
    %p49 = scmp.ne.s32.totalorder %s35, %s36
    %p50 = scmp.eq.s32.totalorder %s16, 1
    %p51 = por %p49, %p50
    %p53 = scmp.ne.s32.totalorder %s36, %s52
    %p54 = scmp.eq.s32.totalorder %s16, 0
    %p55 = por %p53, %p54
    %s56 = ssub.s32 %s18, %s25
    %p57 = scmp.eq.s32.totalorder %s56, 0
    %s59 = sadd.s32 %s58, 1
    %s60 = scalar_select %p57, %s58, %s59
    %p63 = pneg %p57
    %p64 = scmp.eq.s32.totalorder %s10, 1
    %p65 = por %p63, %p64
    %p66 = scmp.ne.s32.totalorder %s58, %s61
    %p67 = scmp.eq.s32.totalorder %s10, 0
    %p68 = por %p66, %p67
    %p69 = scmp.ne.s32.totalorder %s58, %s61
    %p70 = scmp.eq.s32.totalorder %s15, 1
    %p71 = por %p69, %p70
    %p72 = scmp.ne.s32.totalorder %s61, %s62
    %p73 = scmp.eq.s32.totalorder %s15, 0
    %p74 = por %p72, %p73
    %p75 = scmp.ne.s32.totalorder %s61, %s62
    %p76 = scmp.eq.s32.totalorder %s16, 1
    %p77 = por %p75, %p76
    %p79 = scmp.ne.s32.totalorder %s62, %s78
    %p80 = scmp.eq.s32.totalorder %s16, 0
    %p81 = por %p79, %p80
    %s82 = ssub.s32 %s18, %s25
    %p83 = scmp.eq.s32.totalorder %s82, 0
    %s85 = sadd.s32 %s84, 1
    %s86 = scalar_select %p83, %s84, %s85
    %p89 = pneg %p83
    %p90 = scmp.eq.s32.totalorder %s10, 1
    %p91 = por %p89, %p90
    %p92 = scmp.ne.s32.totalorder %s84, %s87
    %p93 = scmp.eq.s32.totalorder %s10, 0
    %p94 = por %p92, %p93
    %p95 = scmp.ne.s32.totalorder %s84, %s87
    %p96 = scmp.eq.s32.totalorder %s15, 1
    %p97 = por %p95, %p96
    %p98 = scmp.ne.s32.totalorder %s87, %s88
    %p99 = scmp.eq.s32.totalorder %s15, 0
    %p100 = por %p98, %p99
    %p101 = scmp.ne.s32.totalorder %s87, %s88
    %p102 = scmp.eq.s32.totalorder %s16, 1
    %p103 = por %p101, %p102
    %p105 = scmp.ne.s32.totalorder %s88, %s104
    %p106 = scmp.eq.s32.totalorder %s16, 0
    %p107 = por %p105, %p106
    %s108 = ssub.s32 %s17, %s29
    %s109 = ssub.s32 %s18, %s25
    %s110 = sor.u32 %s108, %s109
    %p111 = scmp.eq.s32.totalorder %s110, 0
    %s113 = sadd.s32 %s112, 1
    %s114 = scalar_select %p111, %s112, %s113
    %p117 = pneg %p111
    %p118 = scmp.eq.s32.totalorder %s10, 1
    %p119 = por %p117, %p118
    %p120 = scmp.ne.s32.totalorder %s112, %s115
    %p121 = scmp.eq.s32.totalorder %s10, 0
    %p122 = por %p120, %p121
    %p123 = scmp.ne.s32.totalorder %s112, %s115
    %p124 = scmp.eq.s32.totalorder %s15, 1
    %p125 = por %p123, %p124
    %p126 = scmp.ne.s32.totalorder %s115, %s116
    %p127 = scmp.eq.s32.totalorder %s15, 0
    %p128 = por %p126, %p127
    %p129 = scmp.ne.s32.totalorder %s115, %s116
    %p130 = scmp.eq.s32.totalorder %s16, 1
    %p131 = por %p129, %p130
    %p133 = scmp.ne.s32.totalorder %s116, %s132
    %p134 = scmp.eq.s32.totalorder %s16, 0
    %p135 = por %p133, %p134
    %s136 = ssub.s32 %s17, %s29
    %s137 = ssub.s32 %s18, %s25
    %s138 = sor.u32 %s136, %s137
    %p139 = scmp.eq.s32.totalorder %s138, 0
    %s141 = sadd.s32 %s140, 1
    %s142 = scalar_select %p139, %s140, %s141
    %p145 = pneg %p139
    %p146 = scmp.eq.s32.totalorder %s10, 1
    %p147 = por %p145, %p146
    %p148 = scmp.ne.s32.totalorder %s140, %s143
    %p149 = scmp.eq.s32.totalorder %s10, 0
    %p150 = por %p148, %p149
    %p151 = scmp.ne.s32.totalorder %s140, %s143
    %p152 = scmp.eq.s32.totalorder %s15, 1
    %p153 = por %p151, %p152
    %p154 = scmp.ne.s32.totalorder %s143, %s144
    %p155 = scmp.eq.s32.totalorder %s15, 0
    %p156 = por %p154, %p155
    %p157 = scmp.ne.s32.totalorder %s143, %s144
    %p158 = scmp.eq.s32.totalorder %s16, 1
    %p159 = por %p157, %p158
    %p161 = scmp.ne.s32.totalorder %s144, %s160
    %p162 = scmp.eq.s32.totalorder %s16, 0
    %p163 = por %p161, %p162
    %p164 = scmp.le.s32.totalorder 1, %s10
    %p165 = scmp.lt.s32.totalorder %s10, 3
    %p166 = pnand %p164, %p165
    %p167 = pneg %p166
    // Predicated region
    $region9: #{_lambda_.11} parent=5 // pred_check
      _
    $region10: #{_lambda_.11} parent=5 // pred_check_branch
      %169 = sbr.rel (%p166) target = $region12
    $region11: #{_lambda_.11} parent=5 // pred_region
      %s170 = ssub.s32 %s10, 1
      // Predicated region
      $region13: #{_lambda_.11} parent=11 // pred_check
        %p171 = pneg %p74
      $region14: #{_lambda_.11} parent=11 // pred_check_branch
        %173 = sbr.rel (%p171) target = $region16
      $region15: #{_lambda_.11} parent=11 // pred_region
        %p174 = scmp.lt.s32.totalorder %s20, 0
        %s175 = scalar_select %p174, %s20, 0
        %s176 = smul.addr %s175, 4
        %s177 = scalar_lea.vmem %s1, %s176
      $region16: #{_lambda_.11} parent=11 // pred_fallthru
        _
      // Predicated region
      $region17: #{_lambda_.11} parent=11 // pred_check
        %p178 = pneg %p100
      $region18: #{_lambda_.11} parent=11 // pred_check_branch
        %180 = sbr.rel (%p178) target = $region20
      $region19: #{_lambda_.11} parent=11 // pred_region
        %p181 = scmp.lt.s32.totalorder %s20, 0
        %s182 = scalar_select %p181, %s20, 0
        %s183 = scalar_lea.vmem %s2, %s182
      $region20: #{_lambda_.11} parent=11 // pred_fallthru
        _
    $region12: #{_lambda_.11} parent=5 // pred_fallthru
      _
    %p184 = scmp.lt.s32.totalorder %s10, 2
    // Predicated region
    $region21: #{_lambda_.11} parent=5 // pred_check
      %p185 = pneg %p184
    $region22: #{_lambda_.11} parent=5 // pred_check_branch
      %187 = sbr.rel (%p185) target = $region24
    $region23: #{_lambda_.11} parent=5 // pred_region
      // Predicated region
      $region25: #{_lambda_.11} parent=23 // pred_check
        %p188 = pneg %p42
      $region26: #{_lambda_.11} parent=23 // pred_check_branch
        %190 = sbr.rel (%p188) target = $region28
      $region27: #{_lambda_.11} parent=23 // pred_region
        %p191 = scmp.lt.s32.totalorder %s17, 1
        %s192 = scalar_select %p191, %s17, 1
        %s193 = smul.addr %s192, 14
        %s194 = smul.addr %s193, 4
        %s195 = scalar_lea.vmem %s0, %s194
      $region28: #{_lambda_.11} parent=23 // pred_fallthru
        _
      // Predicated region
      $region29: #{_lambda_.11} parent=23 // pred_check
        %p196 = pneg %p122
      $region30: #{_lambda_.11} parent=23 // pred_check_branch
        %198 = sbr.rel (%p196) target = $region32
      $region31: #{_lambda_.11} parent=23 // pred_region
        %p199 = scmp.lt.s32.totalorder %s17, 1
        %s200 = scalar_select %p199, %s17, 1
        %p201 = scmp.lt.s32.totalorder %s18, 0
        %s202 = scalar_select %p201, %s18, 0
        %s203 = smul.addr %s200, 10
        %s204 = sadd.s32 %s202, %s203
        %s205 = smul.addr %s204, 4
        %s206 = scalar_lea.vmem %s3, %s205
      $region32: #{_lambda_.11} parent=23 // pred_fallthru
        _
    $region24: #{_lambda_.11} parent=5 // pred_fallthru
      _
    %p207 = scmp.le.s32.totalorder 1, %s10
    %p208 = scmp.lt.s32.totalorder %s10, 3
    %p209 = pnand %p207, %p208
    %p210 = pneg %p209
    // Predicated region
    $region33: #{_lambda_.11} parent=5 // pred_check
      _
    $region34: #{_lambda_.11} parent=5 // pred_check_branch
      %212 = sbr.rel (%p209) target = $region36
    $region35: #{_lambda_.11} parent=5 // pred_region
      %s213 = ssub.s32 %s10, 1
      %p214 = scmp.lt.s32.totalorder %s19, 1
      %s215 = scalar_select %p214, %s19, 1
      %s216 = smul.addr %s215, 14
      %s217 = smul.addr %s216, 4
      %s218 = scalar_lea.vmem %s0, %s217
      %p219 = pneg %p48
      %p220 = pneg %p45
      %p221 = scmp.lt.s32.totalorder %s20, 0
      %s222 = scalar_select %p221, %s20, 0
      %s223 = smul.addr %s222, 4
      %s224 = scalar_lea.vmem %s1, %s223
      %p225 = pneg %p74
      %p226 = pneg %p71
      %p227 = scmp.lt.s32.totalorder %s20, 0
      %s228 = scalar_select %p227, %s20, 0
      %s229 = scalar_lea.vmem %s2, %s228
      %p230 = pneg %p100
      %p231 = pneg %p97
      %p232 = scmp.lt.s32.totalorder %s19, 1
      %s233 = scalar_select %p232, %s19, 1
      %p234 = scmp.lt.s32.totalorder %s20, 0
      %s235 = scalar_select %p234, %s20, 0
      %s236 = smul.addr %s233, 10
      %s237 = sadd.s32 %s235, %s236
      %s238 = smul.addr %s237, 4
      %s239 = scalar_lea.vmem %s3, %s238
      %p240 = pneg %p128
      %p241 = pneg %p125
      %p242 = pneg %p156
      %p243 = pneg %p153
      %p244 = scmp.lt.s32.totalorder %s19, 1
      %s245 = scalar_select %p244, %s19, 1
      %p246 = scmp.lt.s32.totalorder %s20, 0
      %s247 = scalar_select %p246, %s20, 0
      %s248 = smul.addr %s245, 10
      %s249 = sadd.s32 %s247, %s248
      %s250 = smul.addr %s249, 4
      %s251 = scalar_lea.vmem %s4, %s250
      %p252 = scmp.lt.s32.totalorder %s19, 1
      %s253 = scalar_select %p252, %s19, 1
      %s254 = smul.addr %s253, 14
      %s255 = smul.addr %s254, 4
      %s256 = scalar_lea.vmem %s0, %s255
      %p257 = scmp.lt.s32.totalorder %s20, 0
      %s258 = scalar_select %p257, %s20, 0
      %s259 = smul.addr %s258, 4
      %s260 = scalar_lea.vmem %s1, %s259
      %p261 = scmp.lt.s32.totalorder %s20, 0
      %s262 = scalar_select %p261, %s20, 0
      %s263 = scalar_lea.vmem %s2, %s262
      %p264 = scmp.lt.s32.totalorder %s19, 1
      %s265 = scalar_select %p264, %s19, 1
      %p266 = scmp.lt.s32.totalorder %s20, 0
      %s267 = scalar_select %p266, %s20, 0
      %s268 = smul.addr %s265, 10
      %s269 = sadd.s32 %s267, %s268
      %s270 = smul.addr %s269, 4
      %s271 = scalar_lea.vmem %s3, %s270
      %p272 = scmp.lt.s32.totalorder %s19, 1
      %s273 = scalar_select %p272, %s19, 1
      %p274 = scmp.lt.s32.totalorder %s20, 0
      %s275 = scalar_select %p274, %s20, 0
      %s276 = smul.addr %s273, 10
      %s277 = sadd.s32 %s275, %s276
      %s278 = smul.addr %s277, 4
      %s279 = scalar_lea.vmem %s4, %s278
      %v281 = vld [vmem:[%s256] sm:$0xf]
      %v282 = vld [vmem:[%s256 + $0x4] sm:$0xf]
      %v283 = vld [vmem:[%s256 + $0x8] sm:$0xf]
      %v284 = vld [vmem:[%s256 + $0xc] sm:$0xf]
      %v285 = vld [vmem:[%s256 + $0x10] sm:$0xf]
      %v286 = vld [vmem:[%s256 + $0x14] sm:$0xf]
      %v287 = vld [vmem:[%s256 + $0x18] sm:$0xf]
      %v288 = vld [vmem:[%s256 + $0x1c] sm:$0xf]
      %v289 = vld [vmem:[%s256 + $0x20] sm:$0xf]
      %v290 = vld [vmem:[%s256 + $0x24] sm:$0xf]
      %v291 = vld [vmem:[%s256 + $0x28] sm:$0xf]
      %v292 = vld [vmem:[%s256 + $0x2c] sm:$0xf]
      %v293 = vld [vmem:[%s256 + $0x30] sm:$0xf]
      %v294 = vunpack.c.l.bf16 %v281
      %v295 = vunpack.c.l.bf16 %v282
      %v296 = vunpack.c.l.bf16 %v283
      %v297 = vunpack.c.l.bf16 %v284
      %v298 = vunpack.c.l.bf16 %v285
      %v299 = vunpack.c.l.bf16 %v286
      %v300 = vunpack.c.l.bf16 %v287
      %v301 = vunpack.c.l.bf16 %v288
      %v302 = vunpack.c.l.bf16 %v289
      %v303 = vunpack.c.l.bf16 %v290
      %v304 = vunpack.c.l.bf16 %v291
      %v305 = vunpack.c.l.bf16 %v292
      %v306 = vunpack.c.l.bf16 %v293
      %v307 = vld [vmem:[%s260] sm:$0xf]
      %v308 = vld [vmem:[%s260 + $0x4] sm:$0xf]
      %v309 = vld [vmem:[%s260 + $0x8] sm:$0xf]
      %v310 = vld [vmem:[%s260 + $0xc] sm:$0xf]
      %v311 = vld [vmem:[%s260 + $0x10] sm:$0xf]
      %v312 = vld [vmem:[%s260 + $0x14] sm:$0xf]
      %v313 = vld [vmem:[%s260 + $0x18] sm:$0xf]
      %v314 = vld [vmem:[%s260 + $0x1c] sm:$0xf]
      %v315 = vld [vmem:[%s260 + $0x20] sm:$0xf]
      %v316 = vld [vmem:[%s260 + $0x24] sm:$0xf]
      %v317 = vld [vmem:[%s260 + $0x28] sm:$0xf]
      %v318 = vld [vmem:[%s260 + $0x2c] sm:$0xf]
      %v319 = vld [vmem:[%s260 + $0x30] sm:$0xf]
      %v320 = vld [vmem:[%s260 + $0x34] sm:$0xf]
      %v321 = vld [vmem:[%s260 + $0x38] sm:$0xf]
      %v322 = vld [vmem:[%s260 + $0x3c] sm:$0xf]
      %v323 = vld [vmem:[%s260 + $0x40] sm:$0xf]
      %v324 = vld [vmem:[%s260 + $0x44] sm:$0xf]
      %v325 = vld [vmem:[%s260 + $0x48] sm:$0xf]
      %v326 = vld [vmem:[%s260 + $0x4c] sm:$0xf]
      %v327 = vld [vmem:[%s260 + $0x50] sm:$0xf]
      %v328 = vld [vmem:[%s260 + $0x54] sm:$0xf]
      %v329 = vld [vmem:[%s260 + $0x58] sm:$0xf]
      %v330 = vld [vmem:[%s260 + $0x5c] sm:$0xf]
      %v331 = vld [vmem:[%s260 + $0x60] sm:$0xf]
      %v332 = vld [vmem:[%s260 + $0x64] sm:$0xf]
      %v333 = vld [vmem:[%s260 + $0x68] sm:$0xf]
      %v334 = vld [vmem:[%s260 + $0x6c] sm:$0xf]
      %v335 = vld [vmem:[%s260 + $0x70] sm:$0xf]
      %v336 = vld [vmem:[%s260 + $0x74] sm:$0xf]
      %v337 = vld [vmem:[%s260 + $0x78] sm:$0xf]
      %v338 = vld [vmem:[%s260 + $0x7c] sm:$0xf]
      %v339 = vld [vmem:[%s260 + $0x80] sm:$0xf]
      %v340 = vld [vmem:[%s260 + $0x84] sm:$0xf]
      %v341 = vld [vmem:[%s260 + $0x88] sm:$0xf]
      %v342 = vld [vmem:[%s260 + $0x8c] sm:$0xf]
      %v343 = vld [vmem:[%s260 + $0x90] sm:$0xf]
      %v344 = vld [vmem:[%s260 + $0x94] sm:$0xf]
      %v345 = vld [vmem:[%s260 + $0x98] sm:$0xf]
      %v346 = vld [vmem:[%s260 + $0x9c] sm:$0xf]
      %v347 = vld [vmem:[%s260 + $0xa0] sm:$0xf]
      %v348 = vld [vmem:[%s260 + $0xa4] sm:$0xf]
      %v349 = vld [vmem:[%s260 + $0xa8] sm:$0xf]
      %v350 = vld [vmem:[%s260 + $0xac] sm:$0xf]
      %v351 = vld [vmem:[%s260 + $0xb0] sm:$0xf]
      %v352 = vld [vmem:[%s260 + $0xb4] sm:$0xf]
      %v353 = vld [vmem:[%s260 + $0xb8] sm:$0xf]
      %v354 = vld [vmem:[%s260 + $0xbc] sm:$0xf]
      %v355 = vld [vmem:[%s260 + $0xc0] sm:$0xf]
      %v356 = vld [vmem:[%s260 + $0xc4] sm:$0xf]
      %v357 = vld [vmem:[%s260 + $0xc8] sm:$0xf]
      %v358 = vld [vmem:[%s260 + $0xcc] sm:$0xf]
      %v359 = vld [vmem:[%s260 + $0xd0] sm:$0xf]
      %v360 = vld [vmem:[%s260 + $0xd4] sm:$0xf]
      %v361 = vld [vmem:[%s260 + $0xd8] sm:$0xf]
      %v362 = vld [vmem:[%s260 + $0xdc] sm:$0xf]
      %v363 = vld [vmem:[%s260 + $0xe0] sm:$0xf]
      %v364 = vld [vmem:[%s260 + $0xe4] sm:$0xf]
      %v365 = vld [vmem:[%s260 + $0xe8] sm:$0xf]
      %v366 = vld [vmem:[%s260 + $0xec] sm:$0xf]
      %v367 = vld [vmem:[%s260 + $0xf0] sm:$0xf]
      %v368 = vld [vmem:[%s260 + $0xf4] sm:$0xf]
      %v369 = vld [vmem:[%s260 + $0xf8] sm:$0xf]
      %v370 = vld [vmem:[%s260 + $0xfc] sm:$0xf]
      %v371 = vld [vmem:[%s260 + $0x100] sm:$0xf]
      %v372 = vld [vmem:[%s260 + $0x104] sm:$0xf]
      %v373 = vld [vmem:[%s260 + $0x108] sm:$0xf]
      %v374 = vld [vmem:[%s260 + $0x10c] sm:$0xf]
      %v375 = vld [vmem:[%s260 + $0x110] sm:$0xf]
      %v376 = vld [vmem:[%s260 + $0x114] sm:$0xf]
      %v377 = vld [vmem:[%s260 + $0x118] sm:$0xf]
      %v378 = vld [vmem:[%s260 + $0x11c] sm:$0xf]
      %v379 = vld [vmem:[%s260 + $0x120] sm:$0xf]
      %v380 = vld [vmem:[%s260 + $0x124] sm:$0xf]
      %v381 = vld [vmem:[%s260 + $0x128] sm:$0xf]
      %v382 = vld [vmem:[%s260 + $0x12c] sm:$0xf]
      %v383 = vld [vmem:[%s260 + $0x130] sm:$0xf]
      %v384 = vld [vmem:[%s260 + $0x134] sm:$0xf]
      %v385 = vld [vmem:[%s260 + $0x138] sm:$0xf]
      %v386 = vld [vmem:[%s260 + $0x13c] sm:$0xf]
      %v387 = vld [vmem:[%s260 + $0x140] sm:$0xf]
      %v388 = vld [vmem:[%s260 + $0x144] sm:$0xf]
      %v389 = vld [vmem:[%s260 + $0x148] sm:$0xf]
      %v390 = vld [vmem:[%s260 + $0x14c] sm:$0xf]
      %v391 = vld [vmem:[%s260 + $0x150] sm:$0xf]
      %v392 = vld [vmem:[%s260 + $0x154] sm:$0xf]
      %v393 = vld [vmem:[%s260 + $0x158] sm:$0xf]
      %v394 = vld [vmem:[%s260 + $0x15c] sm:$0xf]
      %v395 = vld [vmem:[%s260 + $0x160] sm:$0xf]
      %v396 = vld [vmem:[%s260 + $0x164] sm:$0xf]
      %v397 = vld [vmem:[%s260 + $0x168] sm:$0xf]
      %v398 = vld [vmem:[%s260 + $0x16c] sm:$0xf]
      %v399 = vld [vmem:[%s260 + $0x170] sm:$0xf]
      %v400 = vld [vmem:[%s260 + $0x174] sm:$0xf]
      %v401 = vld [vmem:[%s260 + $0x178] sm:$0xf]
      %v402 = vld [vmem:[%s260 + $0x17c] sm:$0xf]
      %v403 = vld [vmem:[%s260 + $0x180] sm:$0xf]
      %v404 = vld [vmem:[%s260 + $0x184] sm:$0xf]
      %v405 = vld [vmem:[%s260 + $0x188] sm:$0xf]
      %v406 = vld [vmem:[%s260 + $0x18c] sm:$0xf]
      %v407 = vld [vmem:[%s260 + $0x190] sm:$0xf]
      %v408 = vld [vmem:[%s260 + $0x194] sm:$0xf]
      %v409 = vld [vmem:[%s260 + $0x198] sm:$0xf]
      %v410 = vld [vmem:[%s260 + $0x19c] sm:$0xf]
      %v411 = vld [vmem:[%s260 + $0x1a0] sm:$0xf]
      %v412 = vld [vmem:[%s260 + $0x1a4] sm:$0xf]
      %v413 = vld [vmem:[%s260 + $0x1a8] sm:$0xf]
      %v414 = vld [vmem:[%s260 + $0x1ac] sm:$0xf]
      %v415 = vld [vmem:[%s260 + $0x1b0] sm:$0xf]
      %v416 = vld [vmem:[%s260 + $0x1b4] sm:$0xf]
      %v417 = vld [vmem:[%s260 + $0x1b8] sm:$0xf]
      %v418 = vld [vmem:[%s260 + $0x1bc] sm:$0xf]
      %v419 = vld [vmem:[%s260 + $0x1c0] sm:$0xf]
      %v420 = vld [vmem:[%s260 + $0x1c4] sm:$0xf]
      %v421 = vld [vmem:[%s260 + $0x1c8] sm:$0xf]
      %v422 = vld [vmem:[%s260 + $0x1cc] sm:$0xf]
      %v423 = vld [vmem:[%s260 + $0x1d0] sm:$0xf]
      %v424 = vld [vmem:[%s260 + $0x1d4] sm:$0xf]
      %v425 = vld [vmem:[%s260 + $0x1d8] sm:$0xf]
      %v426 = vld [vmem:[%s260 + $0x1dc] sm:$0xf]
      %v427 = vld [vmem:[%s260 + $0x1e0] sm:$0xf]
      %v428 = vld [vmem:[%s260 + $0x1e4] sm:$0xf]
      %v429 = vld [vmem:[%s260 + $0x1e8] sm:$0xf]
      %v430 = vld [vmem:[%s260 + $0x1ec] sm:$0xf]
      %v431 = vld [vmem:[%s260 + $0x1f0] sm:$0xf]
      %v432 = vld [vmem:[%s260 + $0x1f4] sm:$0xf]
      %v433 = vld [vmem:[%s260 + $0x1f8] sm:$0xf]
      %v434 = vld [vmem:[%s260 + $0x1fc] sm:$0xf]
      %v435 = vld [vmem:[%s260 + $0x200] sm:$0xf]
      %v436 = vld [vmem:[%s260 + $0x204] sm:$0xf]
      %v437 = vld [vmem:[%s260 + $0x208] sm:$0xf]
      %v438 = vld [vmem:[%s260 + $0x20c] sm:$0xf]
      %v439 = vld [vmem:[%s260 + $0x210] sm:$0xf]
      %v440 = vld [vmem:[%s260 + $0x214] sm:$0xf]
      %v441 = vld [vmem:[%s260 + $0x218] sm:$0xf]
      %v442 = vld [vmem:[%s260 + $0x21c] sm:$0xf]
      %v443 = vld [vmem:[%s260 + $0x220] sm:$0xf]
      %v444 = vld [vmem:[%s260 + $0x224] sm:$0xf]
      %v445 = vld [vmem:[%s260 + $0x228] sm:$0xf]
      %v446 = vld [vmem:[%s260 + $0x22c] sm:$0xf]
      %v447 = vld [vmem:[%s260 + $0x230] sm:$0xf]
      %v448 = vld [vmem:[%s260 + $0x234] sm:$0xf]
      %v449 = vld [vmem:[%s260 + $0x238] sm:$0xf]
      %v450 = vld [vmem:[%s260 + $0x23c] sm:$0xf]
      %v451 = vpack.c.bf16 %v295, %v294
      %v452 = vpack.c.bf16 %v297, %v296
      %v453 = vpack.c.bf16 %v299, %v298
      %v454 = vpack.c.bf16 %v301, %v300
      %v455 = vpack.c.bf16 %v303, %v302
      %v456 = vpack.c.bf16 %v304, %v304
      %vm457 = vsmask.f32 7424
      %v459 = vshrl.u32 %v451, 16
      %v461 = vshll.u32 %v451, 16
      %v463 = vrot.slane %v461, 1
      %v464 = vor.u32 %v459, %v463
      %v466 = vshll.u32 %v452, 16
      %v468 = vrot.slane %v466, 1
      %v469 = vsel %vm457, %v464, %v468
      %v470 = vshrl.u32 %v452, 16
      %v472 = vor.u32 %v470, %v468
      %v474 = vshll.u32 %v453, 16
      %v476 = vrot.slane %v474, 1
      %v477 = vsel %vm457, %v472, %v476
      %v478 = vshrl.u32 %v453, 16
      %v480 = vor.u32 %v478, %v476
      %v482 = vshll.u32 %v454, 16
      %v484 = vrot.slane %v482, 1
      %v485 = vsel %vm457, %v480, %v484
      %v486 = vshrl.u32 %v454, 16
      %v488 = vor.u32 %v486, %v484
      %v490 = vshll.u32 %v455, 16
      %v492 = vrot.slane %v490, 1
      %v493 = vsel %vm457, %v488, %v492
      %v494 = vshrl.u32 %v455, 16
      %v496 = vor.u32 %v494, %v492
      %v498 = vshll.u32 %v456, 16
      %v500 = vrot.slane %v498, 1
      %v501 = vsel %vm457, %v496, %v500
      %v523 = vunpack.c.l.b16 %v323
      %v524 = vunpack.c.l.b16 %v324
      %v525 = vunpack.c.l.b16 %v325
      %v526 = vunpack.c.l.b16 %v326
      %v527 = vunpack.c.l.b16 %v327
      %v528 = vunpack.c.l.b16 %v328
      %v529 = vunpack.c.l.b16 %v329
      %v530 = vunpack.c.l.b16 %v330
      %v531 = vunpack.c.l.b16 %v331
      %v532 = vunpack.c.l.b16 %v332
      %v533 = vunpack.c.l.b16 %v333
      %v534 = vunpack.c.l.b16 %v334
      %v535 = vunpack.c.l.b16 %v335
      %v536 = vunpack.c.l.b16 %v336
      %v537 = vunpack.c.l.b16 %v337
      %v538 = vunpack.c.l.b16 %v338
      %v539 = vpack.c.b16 %v524, %v523
      %v540 = vpack.c.b16 %v526, %v525
      %v541 = vpack.c.b16 %v528, %v527
      %v542 = vpack.c.b16 %v530, %v529
      %v543 = vpack.c.b16 %v532, %v531
      %v544 = vpack.c.b16 %v534, %v533
      %v545 = vpack.c.b16 %v536, %v535
      %v546 = vpack.c.b16 %v538, %v537
      %555 = vmatprep.subr.bf16.mxu0 0
      %556 = vmatpush1.bf16.msra.mxu0 %v546
      %557 = vmatprep.subr.bf16.mxu0 0
      %558 = vmatpush1.bf16.msra.mxu0 %v545
      %559 = vmatprep.subr.bf16.mxu0 0
      %560 = vmatpush1.bf16.msra.mxu0 %v544
      %561 = vmatprep.subr.bf16.mxu0 0
      %562 = vmatpush1.bf16.msra.mxu0 %v543
      %563 = vmatprep.subr.bf16.mxu0 0
      %564 = vmatpush1.bf16.msra.mxu0 %v542
      %565 = vmatprep.subr.bf16.mxu0 0
      %566 = vmatpush1.bf16.msra.mxu0 %v541
      %567 = vmatprep.subr.bf16.mxu0 0
      %568 = vmatpush1.bf16.msra.mxu0 %v540
      %569 = vmatprep.subr.bf16.mxu0 0
      %570 = vmatpush1.bf16.msra.mxu0 %v539
      %571 = vmatprep.subr.bf16.mxu0 0
      %572 = vmatpush2.bf16.msra.mxu0 0
      %573 = vmatprep.subr.bf16.mxu0 0
      %574 = vmatpush2.bf16.msra.mxu0 0
      %575 = vmatprep.subr.bf16.mxu0 0
      %576 = vmatpush2.bf16.msra.mxu0 0
      %577 = vmatprep.subr.bf16.mxu0 0
      %578 = vmatpush2.bf16.msra.mxu0 0
      %579 = vmatprep.subr.bf16.mxu0 0
      %580 = vmatpush2.bf16.msra.mxu0 0
      %581 = vmatprep.subr.bf16.mxu0 0
      %582 = vmatpush2.bf16.msra.mxu0 0
      %583 = vmatprep.subr.bf16.mxu0 0
      %584 = vmatpush2.bf16.msra.mxu0 0
      %585 = vmatprep.subr.bf16.mxu0 0
      %586 = vmatpush2.bf16.msra.mxu0 0
      %587 = vmatprep.mubr.bf16.mxu0 0
      %588 = vmatmul.mubr.bf16.gmra.mxu0 %v469
      %v589 = vpop.f32.mrf.mxu0
      %v590 = vadd.f32 0.0, %v589
      %v591 = vpop.f32.mrf.mxu0
      %v592 = vpop.f32.mrf.mxu0
      %v593 = vadd.f32 0.0, %v592
      %v594 = vpop.f32.mrf.mxu0
      %595 = vmatprep.mubr.bf16.mxu0 0
      %596 = vmatmul.mubr.bf16.gmra.mxu0 %v477
      %v597 = vpop.f32.mrf.mxu0
      %v598 = vadd.f32 0.0, %v597
      %v599 = vpop.f32.mrf.mxu0
      %v600 = vpop.f32.mrf.mxu0
      %v601 = vadd.f32 0.0, %v600
      %v602 = vpop.f32.mrf.mxu0
      %603 = vmatprep.mubr.bf16.mxu0 0
      %604 = vmatmul.mubr.bf16.gmra.mxu0 %v485
      %v605 = vpop.f32.mrf.mxu0
      %v606 = vadd.f32 0.0, %v605
      %v607 = vpop.f32.mrf.mxu0
      %v608 = vpop.f32.mrf.mxu0
      %v609 = vadd.f32 0.0, %v608
      %v610 = vpop.f32.mrf.mxu0
      %611 = vmatprep.mubr.bf16.mxu0 0
      %612 = vmatmul.mubr.bf16.gmra.mxu0 %v493
      %v613 = vpop.f32.mrf.mxu0
      %v614 = vadd.f32 0.0, %v613
      %v615 = vpop.f32.mrf.mxu0
      %v616 = vpop.f32.mrf.mxu0
      %v617 = vadd.f32 0.0, %v616
      %v618 = vpop.f32.mrf.mxu0
      %619 = vmatprep.mubr.bf16.mxu0 0
      %620 = vmatmul.mubr.bf16.gmra.mxu0 %v501
      %v621 = vpop.f32.mrf.mxu0
      %v622 = vadd.f32 0.0, %v621
      %v623 = vpop.f32.mrf.mxu0
      %v624 = vpop.f32.mrf.mxu0
      %v625 = vadd.f32 0.0, %v624
      %v626 = vpop.f32.mrf.mxu0
      %627 = vdwg.mxu0
      %v644 = vunpack.c.l.b16 %v307
      %v645 = vunpack.c.l.b16 %v308
      %v646 = vunpack.c.l.b16 %v309
      %v647 = vunpack.c.l.b16 %v310
      %v648 = vunpack.c.l.b16 %v311
      %v649 = vunpack.c.l.b16 %v312
      %v650 = vunpack.c.l.b16 %v313
      %v651 = vunpack.c.l.b16 %v314
      %v652 = vunpack.c.l.b16 %v315
      %v653 = vunpack.c.l.b16 %v316
      %v654 = vunpack.c.l.b16 %v317
      %v655 = vunpack.c.l.b16 %v318
      %v656 = vunpack.c.l.b16 %v319
      %v657 = vunpack.c.l.b16 %v320
      %v658 = vunpack.c.l.b16 %v321
      %v659 = vunpack.c.l.b16 %v322
      %v660 = vpack.c.b16 %v645, %v644
      %v661 = vpack.c.b16 %v647, %v646
      %v662 = vpack.c.b16 %v649, %v648
      %v663 = vpack.c.b16 %v651, %v650
      %v664 = vpack.c.b16 %v653, %v652
      %v665 = vpack.c.b16 %v655, %v654
      %v666 = vpack.c.b16 %v657, %v656
      %v667 = vpack.c.b16 %v659, %v658
      %676 = vmatprep.subr.bf16.mxu0 0
      %677 = vmatpush1.bf16.msra.mxu0 %v667
      %678 = vmatprep.subr.bf16.mxu0 0
      %679 = vmatpush1.bf16.msra.mxu0 %v666
      %680 = vmatprep.subr.bf16.mxu0 0
      %681 = vmatpush1.bf16.msra.mxu0 %v665
      %682 = vmatprep.subr.bf16.mxu0 0
      %683 = vmatpush1.bf16.msra.mxu0 %v664
      %684 = vmatprep.subr.bf16.mxu0 0
      %685 = vmatpush1.bf16.msra.mxu0 %v663
      %686 = vmatprep.subr.bf16.mxu0 0
      %687 = vmatpush1.bf16.msra.mxu0 %v662
      %688 = vmatprep.subr.bf16.mxu0 0
      %689 = vmatpush1.bf16.msra.mxu0 %v661
      %690 = vmatprep.subr.bf16.mxu0 0
      %691 = vmatpush1.bf16.msra.mxu0 %v660
      %692 = vmatprep.subr.bf16.mxu0 0
      %693 = vmatpush2.bf16.msra.mxu0 0
      %694 = vmatprep.subr.bf16.mxu0 0
      %695 = vmatpush2.bf16.msra.mxu0 0
      %696 = vmatprep.subr.bf16.mxu0 0
      %697 = vmatpush2.bf16.msra.mxu0 0
      %698 = vmatprep.subr.bf16.mxu0 0
      %699 = vmatpush2.bf16.msra.mxu0 0
      %700 = vmatprep.subr.bf16.mxu0 0
      %701 = vmatpush2.bf16.msra.mxu0 0
      %702 = vmatprep.subr.bf16.mxu0 0
      %703 = vmatpush2.bf16.msra.mxu0 0
      %704 = vmatprep.subr.bf16.mxu0 0
      %705 = vmatpush2.bf16.msra.mxu0 0
      %706 = vmatprep.subr.bf16.mxu0 0
      %707 = vmatpush2.bf16.msra.mxu0 0
      %708 = vmatprep.mubr.bf16.mxu0 0
      %709 = vmatmul.mubr.bf16.gmra.mxu0 %v451
      %v710 = vpop.f32.mrf.mxu0
      %v711 = vadd.f32 %v590, %v710
      %v712 = vpop.f32.mrf.mxu0
      %v713 = vpop.f32.mrf.mxu0
      %v714 = vadd.f32 %v593, %v713
      %v715 = vpop.f32.mrf.mxu0
      %716 = vmatprep.mubr.bf16.mxu0 0
      %717 = vmatmul.mubr.bf16.gmra.mxu0 %v452
      %v718 = vpop.f32.mrf.mxu0
      %v719 = vadd.f32 %v598, %v718
      %v720 = vpop.f32.mrf.mxu0
      %v721 = vpop.f32.mrf.mxu0
      %v722 = vadd.f32 %v601, %v721
      %v723 = vpop.f32.mrf.mxu0
      %724 = vmatprep.mubr.bf16.mxu0 0
      %725 = vmatmul.mubr.bf16.gmra.mxu0 %v453
      %v726 = vpop.f32.mrf.mxu0
      %v727 = vadd.f32 %v606, %v726
      %v728 = vpop.f32.mrf.mxu0
      %v729 = vpop.f32.mrf.mxu0
      %v730 = vadd.f32 %v609, %v729
      %v731 = vpop.f32.mrf.mxu0
      %732 = vmatprep.mubr.bf16.mxu0 0
      %733 = vmatmul.mubr.bf16.gmra.mxu0 %v454
      %v734 = vpop.f32.mrf.mxu0
      %v735 = vadd.f32 %v614, %v734
      %v736 = vpop.f32.mrf.mxu0
      %v737 = vpop.f32.mrf.mxu0
      %v738 = vadd.f32 %v617, %v737
      %v739 = vpop.f32.mrf.mxu0
      %740 = vmatprep.mubr.bf16.mxu0 0
      %741 = vmatmul.mubr.bf16.gmra.mxu0 %v455
      %v742 = vpop.f32.mrf.mxu0
      %v743 = vadd.f32 %v622, %v742
      %v744 = vpop.f32.mrf.mxu0
      %v745 = vpop.f32.mrf.mxu0
      %v746 = vadd.f32 %v625, %v745
      %v747 = vpop.f32.mrf.mxu0
      %748 = vdwg.mxu0
      %vm755 = vcmask 1046528
      %v756 = vrot.slane %v451, 1
      %v757 = vrot.slane %v452, 1
      %v758 = vsel %vm755, %v756, %v757
      %v759 = vrot.slane %v453, 1
      %v760 = vsel %vm755, %v757, %v759
      %v761 = vrot.slane %v454, 1
      %v762 = vsel %vm755, %v759, %v761
      %v763 = vrot.slane %v455, 1
      %v764 = vsel %vm755, %v761, %v763
      %v765 = vrot.slane %v456, 1
      %v766 = vsel %vm755, %v763, %v765
      %v788 = vunpack.c.l.b16 %v339
      %v789 = vunpack.c.l.b16 %v340
      %v790 = vunpack.c.l.b16 %v341
      %v791 = vunpack.c.l.b16 %v342
      %v792 = vunpack.c.l.b16 %v343
      %v793 = vunpack.c.l.b16 %v344
      %v794 = vunpack.c.l.b16 %v345
      %v795 = vunpack.c.l.b16 %v346
      %v796 = vunpack.c.l.b16 %v347
      %v797 = vunpack.c.l.b16 %v348
      %v798 = vunpack.c.l.b16 %v349
      %v799 = vunpack.c.l.b16 %v350
      %v800 = vunpack.c.l.b16 %v351
      %v801 = vunpack.c.l.b16 %v352
      %v802 = vunpack.c.l.b16 %v353
      %v803 = vunpack.c.l.b16 %v354
      %v804 = vpack.c.b16 %v789, %v788
      %v805 = vpack.c.b16 %v791, %v790
      %v806 = vpack.c.b16 %v793, %v792
      %v807 = vpack.c.b16 %v795, %v794
      %v808 = vpack.c.b16 %v797, %v796
      %v809 = vpack.c.b16 %v799, %v798
      %v810 = vpack.c.b16 %v801, %v800
      %v811 = vpack.c.b16 %v803, %v802
      %820 = vmatprep.subr.bf16.mxu0 0
      %821 = vmatpush1.bf16.msra.mxu0 %v811
      %822 = vmatprep.subr.bf16.mxu0 0
      %823 = vmatpush1.bf16.msra.mxu0 %v810
      %824 = vmatprep.subr.bf16.mxu0 0
      %825 = vmatpush1.bf16.msra.mxu0 %v809
      %826 = vmatprep.subr.bf16.mxu0 0
      %827 = vmatpush1.bf16.msra.mxu0 %v808
      %828 = vmatprep.subr.bf16.mxu0 0
      %829 = vmatpush1.bf16.msra.mxu0 %v807
      %830 = vmatprep.subr.bf16.mxu0 0
      %831 = vmatpush1.bf16.msra.mxu0 %v806
      %832 = vmatprep.subr.bf16.mxu0 0
      %833 = vmatpush1.bf16.msra.mxu0 %v805
      %834 = vmatprep.subr.bf16.mxu0 0
      %835 = vmatpush1.bf16.msra.mxu0 %v804
      %836 = vmatprep.subr.bf16.mxu0 0
      %837 = vmatpush2.bf16.msra.mxu0 0
      %838 = vmatprep.subr.bf16.mxu0 0
      %839 = vmatpush2.bf16.msra.mxu0 0
      %840 = vmatprep.subr.bf16.mxu0 0
      %841 = vmatpush2.bf16.msra.mxu0 0
      %842 = vmatprep.subr.bf16.mxu0 0
      %843 = vmatpush2.bf16.msra.mxu0 0
      %844 = vmatprep.subr.bf16.mxu0 0
      %845 = vmatpush2.bf16.msra.mxu0 0
      %846 = vmatprep.subr.bf16.mxu0 0
      %847 = vmatpush2.bf16.msra.mxu0 0
      %848 = vmatprep.subr.bf16.mxu0 0
      %849 = vmatpush2.bf16.msra.mxu0 0
      %850 = vmatprep.subr.bf16.mxu0 0
      %851 = vmatpush2.bf16.msra.mxu0 0
      %852 = vmatprep.mubr.bf16.mxu0 0
      %853 = vmatmul.mubr.bf16.gmra.mxu0 %v758
      %v854 = vpop.f32.mrf.mxu0
      %v855 = vadd.f32 0.0, %v854
      %v856 = vpop.f32.mrf.mxu0
      %v857 = vpop.f32.mrf.mxu0
      %v858 = vadd.f32 0.0, %v857
      %v859 = vpop.f32.mrf.mxu0
      %860 = vmatprep.mubr.bf16.mxu0 0
      %861 = vmatmul.mubr.bf16.gmra.mxu0 %v760
      %v862 = vpop.f32.mrf.mxu0
      %v863 = vadd.f32 0.0, %v862
      %v864 = vpop.f32.mrf.mxu0
      %v865 = vpop.f32.mrf.mxu0
      %v866 = vadd.f32 0.0, %v865
      %v867 = vpop.f32.mrf.mxu0
      %868 = vmatprep.mubr.bf16.mxu0 0
      %869 = vmatmul.mubr.bf16.gmra.mxu0 %v762
      %v870 = vpop.f32.mrf.mxu0
      %v871 = vadd.f32 0.0, %v870
      %v872 = vpop.f32.mrf.mxu0
      %v873 = vpop.f32.mrf.mxu0
      %v874 = vadd.f32 0.0, %v873
      %v875 = vpop.f32.mrf.mxu0
      %876 = vmatprep.mubr.bf16.mxu0 0
      %877 = vmatmul.mubr.bf16.gmra.mxu0 %v764
      %v878 = vpop.f32.mrf.mxu0
      %v879 = vadd.f32 0.0, %v878
      %v880 = vpop.f32.mrf.mxu0
      %v881 = vpop.f32.mrf.mxu0
      %v882 = vadd.f32 0.0, %v881
      %v883 = vpop.f32.mrf.mxu0
      %884 = vmatprep.mubr.bf16.mxu0 0
      %885 = vmatmul.mubr.bf16.gmra.mxu0 %v766
      %v886 = vpop.f32.mrf.mxu0
      %v887 = vadd.f32 0.0, %v886
      %v888 = vpop.f32.mrf.mxu0
      %v889 = vpop.f32.mrf.mxu0
      %v890 = vadd.f32 0.0, %v889
      %v891 = vpop.f32.mrf.mxu0
      %892 = vdwg.mxu0
      %v893 = vadd.f32 %v711, %v855
      %v894 = vadd.f32 %v714, %v858
      %v895 = vadd.f32 %v719, %v863
      %v896 = vadd.f32 %v722, %v866
      %v897 = vadd.f32 %v727, %v871
      %v898 = vadd.f32 %v730, %v874
      %v899 = vadd.f32 %v735, %v879
      %v900 = vadd.f32 %v738, %v882
      %v901 = vadd.f32 %v743, %v887
      %v902 = vadd.f32 %v746, %v890
      %v903 = vpack.c.bf16 %v296, %v295
      %v904 = vpack.c.bf16 %v298, %v297
      %v905 = vpack.c.bf16 %v300, %v299
      %v906 = vpack.c.bf16 %v302, %v301
      %v907 = vpack.c.bf16 %v304, %v303
      %v908 = vpack.c.bf16 %v305, %v305
      %v915 = vrot.slane %v903, 1
      %v916 = vrot.slane %v904, 1
      %v917 = vsel %vm755, %v915, %v916
      %v918 = vrot.slane %v905, 1
      %v919 = vsel %vm755, %v916, %v918
      %v920 = vrot.slane %v906, 1
      %v921 = vsel %vm755, %v918, %v920
      %v922 = vrot.slane %v907, 1
      %v923 = vsel %vm755, %v920, %v922
      %v924 = vrot.slane %v908, 1
      %v925 = vsel %vm755, %v922, %v924
      %v947 = vunpack.c.l.b16 %v355
      %v948 = vunpack.c.l.b16 %v356
      %v949 = vunpack.c.l.b16 %v357
      %v950 = vunpack.c.l.b16 %v358
      %v951 = vunpack.c.l.b16 %v359
      %v952 = vunpack.c.l.b16 %v360
      %v953 = vunpack.c.l.b16 %v361
      %v954 = vunpack.c.l.b16 %v362
      %v955 = vunpack.c.l.b16 %v363
      %v956 = vunpack.c.l.b16 %v364
      %v957 = vunpack.c.l.b16 %v365
      %v958 = vunpack.c.l.b16 %v366
      %v959 = vunpack.c.l.b16 %v367
      %v960 = vunpack.c.l.b16 %v368
      %v961 = vunpack.c.l.b16 %v369
      %v962 = vunpack.c.l.b16 %v370
      %v963 = vpack.c.b16 %v948, %v947
      %v964 = vpack.c.b16 %v950, %v949
      %v965 = vpack.c.b16 %v952, %v951
      %v966 = vpack.c.b16 %v954, %v953
      %v967 = vpack.c.b16 %v956, %v955
      %v968 = vpack.c.b16 %v958, %v957
      %v969 = vpack.c.b16 %v960, %v959
      %v970 = vpack.c.b16 %v962, %v961
      %979 = vmatprep.subr.bf16.mxu0 0
      %980 = vmatpush1.bf16.msra.mxu0 %v970
      %981 = vmatprep.subr.bf16.mxu0 0
      %982 = vmatpush1.bf16.msra.mxu0 %v969
      %983 = vmatprep.subr.bf16.mxu0 0
      %984 = vmatpush1.bf16.msra.mxu0 %v968
      %985 = vmatprep.subr.bf16.mxu0 0
      %986 = vmatpush1.bf16.msra.mxu0 %v967
      %987 = vmatprep.subr.bf16.mxu0 0
      %988 = vmatpush1.bf16.msra.mxu0 %v966
      %989 = vmatprep.subr.bf16.mxu0 0
      %990 = vmatpush1.bf16.msra.mxu0 %v965
      %991 = vmatprep.subr.bf16.mxu0 0
      %992 = vmatpush1.bf16.msra.mxu0 %v964
      %993 = vmatprep.subr.bf16.mxu0 0
      %994 = vmatpush1.bf16.msra.mxu0 %v963
      %995 = vmatprep.subr.bf16.mxu0 0
      %996 = vmatpush2.bf16.msra.mxu0 0
      %997 = vmatprep.subr.bf16.mxu0 0
      %998 = vmatpush2.bf16.msra.mxu0 0
      %999 = vmatprep.subr.bf16.mxu0 0
      %1000 = vmatpush2.bf16.msra.mxu0 0
      %1001 = vmatprep.subr.bf16.mxu0 0
      %1002 = vmatpush2.bf16.msra.mxu0 0
      %1003 = vmatprep.subr.bf16.mxu0 0
      %1004 = vmatpush2.bf16.msra.mxu0 0
      %1005 = vmatprep.subr.bf16.mxu0 0
      %1006 = vmatpush2.bf16.msra.mxu0 0
      %1007 = vmatprep.subr.bf16.mxu0 0
      %1008 = vmatpush2.bf16.msra.mxu0 0
      %1009 = vmatprep.subr.bf16.mxu0 0
      %1010 = vmatpush2.bf16.msra.mxu0 0
      %1011 = vmatprep.mubr.bf16.mxu0 0
      %1012 = vmatmul.mubr.bf16.gmra.mxu0 %v917
      %v1013 = vpop.f32.mrf.mxu0
      %v1014 = vadd.f32 0.0, %v1013
      %v1015 = vpop.f32.mrf.mxu0
      %v1016 = vpop.f32.mrf.mxu0
      %v1017 = vadd.f32 0.0, %v1016
      %v1018 = vpop.f32.mrf.mxu0
      %1019 = vmatprep.mubr.bf16.mxu0 0
      %1020 = vmatmul.mubr.bf16.gmra.mxu0 %v919
      %v1021 = vpop.f32.mrf.mxu0
      %v1022 = vadd.f32 0.0, %v1021
      %v1023 = vpop.f32.mrf.mxu0
      %v1024 = vpop.f32.mrf.mxu0
      %v1025 = vadd.f32 0.0, %v1024
      %v1026 = vpop.f32.mrf.mxu0
      %1027 = vmatprep.mubr.bf16.mxu0 0
      %1028 = vmatmul.mubr.bf16.gmra.mxu0 %v921
      %v1029 = vpop.f32.mrf.mxu0
      %v1030 = vadd.f32 0.0, %v1029
      %v1031 = vpop.f32.mrf.mxu0
      %v1032 = vpop.f32.mrf.mxu0
      %v1033 = vadd.f32 0.0, %v1032
      %v1034 = vpop.f32.mrf.mxu0
      %1035 = vmatprep.mubr.bf16.mxu0 0
      %1036 = vmatmul.mubr.bf16.gmra.mxu0 %v923
      %v1037 = vpop.f32.mrf.mxu0
      %v1038 = vadd.f32 0.0, %v1037
      %v1039 = vpop.f32.mrf.mxu0
      %v1040 = vpop.f32.mrf.mxu0
      %v1041 = vadd.f32 0.0, %v1040
      %v1042 = vpop.f32.mrf.mxu0
      %1043 = vmatprep.mubr.bf16.mxu0 0
      %1044 = vmatmul.mubr.bf16.gmra.mxu0 %v925
      %v1045 = vpop.f32.mrf.mxu0
      %v1046 = vadd.f32 0.0, %v1045
      %v1047 = vpop.f32.mrf.mxu0
      %v1048 = vpop.f32.mrf.mxu0
      %v1049 = vadd.f32 0.0, %v1048
      %v1050 = vpop.f32.mrf.mxu0
      %1051 = vdwg.mxu0
      %v1052 = vadd.f32 %v893, %v1014
      %v1053 = vadd.f32 %v894, %v1017
      %v1054 = vadd.f32 %v895, %v1022
      %v1055 = vadd.f32 %v896, %v1025
      %v1056 = vadd.f32 %v897, %v1030
      %v1057 = vadd.f32 %v898, %v1033
      %v1058 = vadd.f32 %v899, %v1038
      %v1059 = vadd.f32 %v900, %v1041
      %v1060 = vadd.f32 %v901, %v1046
      %v1061 = vadd.f32 %v902, %v1049
      %vm1062 = vsmask.f32 6400
      %v1064 = vshrl.u32 %v903, 16
      %v1066 = vrot.slane %v1064, 1
      %v1067 = vshll.u32 %v903, 16
      %v1069 = vrot.slane %v1067, 2
      %v1070 = vor.u32 %v1066, %v1069
      %v1072 = vshrl.u32 %v904, 16
      %v1074 = vrot.slane %v1072, 1
      %v1075 = vshll.u32 %v904, 16
      %v1077 = vrot.slane %v1075, 2
      %v1078 = vor.u32 %v1074, %v1077
      %v1079 = vsel %vm1062, %v1070, %v1078
      %v1081 = vshrl.u32 %v905, 16
      %v1083 = vrot.slane %v1081, 1
      %v1084 = vshll.u32 %v905, 16
      %v1086 = vrot.slane %v1084, 2
      %v1087 = vor.u32 %v1083, %v1086
      %v1088 = vsel %vm1062, %v1078, %v1087
      %v1090 = vshrl.u32 %v906, 16
      %v1092 = vrot.slane %v1090, 1
      %v1093 = vshll.u32 %v906, 16
      %v1095 = vrot.slane %v1093, 2
      %v1096 = vor.u32 %v1092, %v1095
      %v1097 = vsel %vm1062, %v1087, %v1096
      %v1099 = vshrl.u32 %v907, 16
      %v1101 = vrot.slane %v1099, 1
      %v1102 = vshll.u32 %v907, 16
      %v1104 = vrot.slane %v1102, 2
      %v1105 = vor.u32 %v1101, %v1104
      %v1106 = vsel %vm1062, %v1096, %v1105
      %v1108 = vshrl.u32 %v908, 16
      %v1110 = vrot.slane %v1108, 1
      %v1111 = vshll.u32 %v908, 16
      %v1113 = vrot.slane %v1111, 2
      %v1114 = vor.u32 %v1110, %v1113
      %v1115 = vsel %vm1062, %v1105, %v1114
      %v1137 = vunpack.c.l.b16 %v371
      %v1138 = vunpack.c.l.b16 %v372
      %v1139 = vunpack.c.l.b16 %v373
      %v1140 = vunpack.c.l.b16 %v374
      %v1141 = vunpack.c.l.b16 %v375
      %v1142 = vunpack.c.l.b16 %v376
      %v1143 = vunpack.c.l.b16 %v377
      %v1144 = vunpack.c.l.b16 %v378
      %v1145 = vunpack.c.l.b16 %v379
      %v1146 = vunpack.c.l.b16 %v380
      %v1147 = vunpack.c.l.b16 %v381
      %v1148 = vunpack.c.l.b16 %v382
      %v1149 = vunpack.c.l.b16 %v383
      %v1150 = vunpack.c.l.b16 %v384
      %v1151 = vunpack.c.l.b16 %v385
      %v1152 = vunpack.c.l.b16 %v386
      %v1153 = vpack.c.b16 %v1138, %v1137
      %v1154 = vpack.c.b16 %v1140, %v1139
      %v1155 = vpack.c.b16 %v1142, %v1141
      %v1156 = vpack.c.b16 %v1144, %v1143
      %v1157 = vpack.c.b16 %v1146, %v1145
      %v1158 = vpack.c.b16 %v1148, %v1147
      %v1159 = vpack.c.b16 %v1150, %v1149
      %v1160 = vpack.c.b16 %v1152, %v1151
      %1169 = vmatprep.subr.bf16.mxu0 0
      %1170 = vmatpush1.bf16.msra.mxu0 %v1160
      %1171 = vmatprep.subr.bf16.mxu0 0
      %1172 = vmatpush1.bf16.msra.mxu0 %v1159
      %1173 = vmatprep.subr.bf16.mxu0 0
      %1174 = vmatpush1.bf16.msra.mxu0 %v1158
      %1175 = vmatprep.subr.bf16.mxu0 0
      %1176 = vmatpush1.bf16.msra.mxu0 %v1157
      %1177 = vmatprep.subr.bf16.mxu0 0
      %1178 = vmatpush1.bf16.msra.mxu0 %v1156
      %1179 = vmatprep.subr.bf16.mxu0 0
      %1180 = vmatpush1.bf16.msra.mxu0 %v1155
      %1181 = vmatprep.subr.bf16.mxu0 0
      %1182 = vmatpush1.bf16.msra.mxu0 %v1154
      %1183 = vmatprep.subr.bf16.mxu0 0
      %1184 = vmatpush1.bf16.msra.mxu0 %v1153
      %1185 = vmatprep.subr.bf16.mxu0 0
      %1186 = vmatpush2.bf16.msra.mxu0 0
      %1187 = vmatprep.subr.bf16.mxu0 0
      %1188 = vmatpush2.bf16.msra.mxu0 0
      %1189 = vmatprep.subr.bf16.mxu0 0
      %1190 = vmatpush2.bf16.msra.mxu0 0
      %1191 = vmatprep.subr.bf16.mxu0 0
      %1192 = vmatpush2.bf16.msra.mxu0 0
      %1193 = vmatprep.subr.bf16.mxu0 0
      %1194 = vmatpush2.bf16.msra.mxu0 0
      %1195 = vmatprep.subr.bf16.mxu0 0
      %1196 = vmatpush2.bf16.msra.mxu0 0
      %1197 = vmatprep.subr.bf16.mxu0 0
      %1198 = vmatpush2.bf16.msra.mxu0 0
      %1199 = vmatprep.subr.bf16.mxu0 0
      %1200 = vmatpush2.bf16.msra.mxu0 0
      %1201 = vmatprep.mubr.bf16.mxu0 0
      %1202 = vmatmul.mubr.bf16.gmra.mxu0 %v1079
      %v1203 = vpop.f32.mrf.mxu0
      %v1204 = vadd.f32 0.0, %v1203
      %v1205 = vpop.f32.mrf.mxu0
      %v1206 = vpop.f32.mrf.mxu0
      %v1207 = vadd.f32 0.0, %v1206
      %v1208 = vpop.f32.mrf.mxu0
      %1209 = vmatprep.mubr.bf16.mxu0 0
      %1210 = vmatmul.mubr.bf16.gmra.mxu0 %v1088
      %v1211 = vpop.f32.mrf.mxu0
      %v1212 = vadd.f32 0.0, %v1211
      %v1213 = vpop.f32.mrf.mxu0
      %v1214 = vpop.f32.mrf.mxu0
      %v1215 = vadd.f32 0.0, %v1214
      %v1216 = vpop.f32.mrf.mxu0
      %1217 = vmatprep.mubr.bf16.mxu0 0
      %1218 = vmatmul.mubr.bf16.gmra.mxu0 %v1097
      %v1219 = vpop.f32.mrf.mxu0
      %v1220 = vadd.f32 0.0, %v1219
      %v1221 = vpop.f32.mrf.mxu0
      %v1222 = vpop.f32.mrf.mxu0
      %v1223 = vadd.f32 0.0, %v1222
      %v1224 = vpop.f32.mrf.mxu0
      %1225 = vmatprep.mubr.bf16.mxu0 0
      %1226 = vmatmul.mubr.bf16.gmra.mxu0 %v1106
      %v1227 = vpop.f32.mrf.mxu0
      %v1228 = vadd.f32 0.0, %v1227
      %v1229 = vpop.f32.mrf.mxu0
      %v1230 = vpop.f32.mrf.mxu0
      %v1231 = vadd.f32 0.0, %v1230
      %v1232 = vpop.f32.mrf.mxu0
      %1233 = vmatprep.mubr.bf16.mxu0 0
      %1234 = vmatmul.mubr.bf16.gmra.mxu0 %v1115
      %v1235 = vpop.f32.mrf.mxu0
      %v1236 = vadd.f32 0.0, %v1235
      %v1237 = vpop.f32.mrf.mxu0
      %v1238 = vpop.f32.mrf.mxu0
      %v1239 = vadd.f32 0.0, %v1238
      %v1240 = vpop.f32.mrf.mxu0
      %1241 = vdwg.mxu0
      %v1242 = vadd.f32 %v1052, %v1204
      %v1243 = vadd.f32 %v1053, %v1207
      %v1244 = vadd.f32 %v1054, %v1212
      %v1245 = vadd.f32 %v1055, %v1215
      %v1246 = vadd.f32 %v1056, %v1220
      %v1247 = vadd.f32 %v1057, %v1223
      %v1248 = vadd.f32 %v1058, %v1228
      %v1249 = vadd.f32 %v1059, %v1231
      %v1250 = vadd.f32 %v1060, %v1236
      %v1251 = vadd.f32 %v1061, %v1239
      %vm1252 = vcmask 1045504
      %v1253 = vrot.slane %v903, 2
      %v1254 = vrot.slane %v904, 2
      %v1255 = vsel %vm1252, %v1253, %v1254
      %v1256 = vrot.slane %v905, 2
      %v1257 = vsel %vm1252, %v1254, %v1256
      %v1258 = vrot.slane %v906, 2
      %v1259 = vsel %vm1252, %v1256, %v1258
      %v1260 = vrot.slane %v907, 2
      %v1261 = vsel %vm1252, %v1258, %v1260
      %v1262 = vrot.slane %v908, 2
      %v1263 = vsel %vm1252, %v1260, %v1262
      %v1285 = vunpack.c.l.b16 %v387
      %v1286 = vunpack.c.l.b16 %v388
      %v1287 = vunpack.c.l.b16 %v389
      %v1288 = vunpack.c.l.b16 %v390
      %v1289 = vunpack.c.l.b16 %v391
      %v1290 = vunpack.c.l.b16 %v392
      %v1291 = vunpack.c.l.b16 %v393
      %v1292 = vunpack.c.l.b16 %v394
      %v1293 = vunpack.c.l.b16 %v395
      %v1294 = vunpack.c.l.b16 %v396
      %v1295 = vunpack.c.l.b16 %v397
      %v1296 = vunpack.c.l.b16 %v398
      %v1297 = vunpack.c.l.b16 %v399
      %v1298 = vunpack.c.l.b16 %v400
      %v1299 = vunpack.c.l.b16 %v401
      %v1300 = vunpack.c.l.b16 %v402
      %v1301 = vpack.c.b16 %v1286, %v1285
      %v1302 = vpack.c.b16 %v1288, %v1287
      %v1303 = vpack.c.b16 %v1290, %v1289
      %v1304 = vpack.c.b16 %v1292, %v1291
      %v1305 = vpack.c.b16 %v1294, %v1293
      %v1306 = vpack.c.b16 %v1296, %v1295
      %v1307 = vpack.c.b16 %v1298, %v1297
      %v1308 = vpack.c.b16 %v1300, %v1299
      %1317 = vmatprep.subr.bf16.mxu0 0
      %1318 = vmatpush1.bf16.msra.mxu0 %v1308
      %1319 = vmatprep.subr.bf16.mxu0 0
      %1320 = vmatpush1.bf16.msra.mxu0 %v1307
      %1321 = vmatprep.subr.bf16.mxu0 0
      %1322 = vmatpush1.bf16.msra.mxu0 %v1306
      %1323 = vmatprep.subr.bf16.mxu0 0
      %1324 = vmatpush1.bf16.msra.mxu0 %v1305
      %1325 = vmatprep.subr.bf16.mxu0 0
      %1326 = vmatpush1.bf16.msra.mxu0 %v1304
      %1327 = vmatprep.subr.bf16.mxu0 0
      %1328 = vmatpush1.bf16.msra.mxu0 %v1303
      %1329 = vmatprep.subr.bf16.mxu0 0
      %1330 = vmatpush1.bf16.msra.mxu0 %v1302
      %1331 = vmatprep.subr.bf16.mxu0 0
      %1332 = vmatpush1.bf16.msra.mxu0 %v1301
      %1333 = vmatprep.subr.bf16.mxu0 0
      %1334 = vmatpush2.bf16.msra.mxu0 0
      %1335 = vmatprep.subr.bf16.mxu0 0
      %1336 = vmatpush2.bf16.msra.mxu0 0
      %1337 = vmatprep.subr.bf16.mxu0 0
      %1338 = vmatpush2.bf16.msra.mxu0 0
      %1339 = vmatprep.subr.bf16.mxu0 0
      %1340 = vmatpush2.bf16.msra.mxu0 0
      %1341 = vmatprep.subr.bf16.mxu0 0
      %1342 = vmatpush2.bf16.msra.mxu0 0
      %1343 = vmatprep.subr.bf16.mxu0 0
      %1344 = vmatpush2.bf16.msra.mxu0 0
      %1345 = vmatprep.subr.bf16.mxu0 0
      %1346 = vmatpush2.bf16.msra.mxu0 0
      %1347 = vmatprep.subr.bf16.mxu0 0
      %1348 = vmatpush2.bf16.msra.mxu0 0
      %1349 = vmatprep.mubr.bf16.mxu0 0
      %1350 = vmatmul.mubr.bf16.gmra.mxu0 %v1255
      %v1351 = vpop.f32.mrf.mxu0
      %v1352 = vadd.f32 0.0, %v1351
      %v1353 = vpop.f32.mrf.mxu0
      %v1354 = vpop.f32.mrf.mxu0
      %v1355 = vadd.f32 0.0, %v1354
      %v1356 = vpop.f32.mrf.mxu0
      %1357 = vmatprep.mubr.bf16.mxu0 0
      %1358 = vmatmul.mubr.bf16.gmra.mxu0 %v1257
      %v1359 = vpop.f32.mrf.mxu0
      %v1360 = vadd.f32 0.0, %v1359
      %v1361 = vpop.f32.mrf.mxu0
      %v1362 = vpop.f32.mrf.mxu0
      %v1363 = vadd.f32 0.0, %v1362
      %v1364 = vpop.f32.mrf.mxu0
      %1365 = vmatprep.mubr.bf16.mxu0 0
      %1366 = vmatmul.mubr.bf16.gmra.mxu0 %v1259
      %v1367 = vpop.f32.mrf.mxu0
      %v1368 = vadd.f32 0.0, %v1367
      %v1369 = vpop.f32.mrf.mxu0
      %v1370 = vpop.f32.mrf.mxu0
      %v1371 = vadd.f32 0.0, %v1370
      %v1372 = vpop.f32.mrf.mxu0
      %1373 = vmatprep.mubr.bf16.mxu0 0
      %1374 = vmatmul.mubr.bf16.gmra.mxu0 %v1261
      %v1375 = vpop.f32.mrf.mxu0
      %v1376 = vadd.f32 0.0, %v1375
      %v1377 = vpop.f32.mrf.mxu0
      %v1378 = vpop.f32.mrf.mxu0
      %v1379 = vadd.f32 0.0, %v1378
      %v1380 = vpop.f32.mrf.mxu0
      %1381 = vmatprep.mubr.bf16.mxu0 0
      %1382 = vmatmul.mubr.bf16.gmra.mxu0 %v1263
      %v1383 = vpop.f32.mrf.mxu0
      %v1384 = vadd.f32 0.0, %v1383
      %v1385 = vpop.f32.mrf.mxu0
      %v1386 = vpop.f32.mrf.mxu0
      %v1387 = vadd.f32 0.0, %v1386
      %v1388 = vpop.f32.mrf.mxu0
      %1389 = vdwg.mxu0
      %v1390 = vadd.f32 %v1242, %v1352
      %v1391 = vadd.f32 %v1243, %v1355
      %v1392 = vadd.f32 %v1244, %v1360
      %v1393 = vadd.f32 %v1245, %v1363
      %v1394 = vadd.f32 %v1246, %v1368
      %v1395 = vadd.f32 %v1247, %v1371
      %v1396 = vadd.f32 %v1248, %v1376
      %v1397 = vadd.f32 %v1249, %v1379
      %v1398 = vadd.f32 %v1250, %v1384
      %v1399 = vadd.f32 %v1251, %v1387
      %v1400 = vpack.c.bf16 %v305, %v304
      %v1401 = vpack.c.bf16 %v306, %v306
      %v1404 = vrot.slane %v452, 2
      %v1405 = vrot.slane %v453, 2
      %v1406 = vsel %vm1252, %v1404, %v1405
      %v1407 = vrot.slane %v454, 2
      %v1408 = vsel %vm1252, %v1405, %v1407
      %v1409 = vrot.slane %v455, 2
      %v1410 = vsel %vm1252, %v1407, %v1409
      %v1411 = vrot.slane %v1400, 2
      %v1412 = vsel %vm1252, %v1409, %v1411
      %v1413 = vrot.slane %v1401, 2
      %v1414 = vsel %vm1252, %v1411, %v1413
      %v1436 = vunpack.c.l.b16 %v403
      %v1437 = vunpack.c.l.b16 %v404
      %v1438 = vunpack.c.l.b16 %v405
      %v1439 = vunpack.c.l.b16 %v406
      %v1440 = vunpack.c.l.b16 %v407
      %v1441 = vunpack.c.l.b16 %v408
      %v1442 = vunpack.c.l.b16 %v409
      %v1443 = vunpack.c.l.b16 %v410
      %v1444 = vunpack.c.l.b16 %v411
      %v1445 = vunpack.c.l.b16 %v412
      %v1446 = vunpack.c.l.b16 %v413
      %v1447 = vunpack.c.l.b16 %v414
      %v1448 = vunpack.c.l.b16 %v415
      %v1449 = vunpack.c.l.b16 %v416
      %v1450 = vunpack.c.l.b16 %v417
      %v1451 = vunpack.c.l.b16 %v418
      %v1452 = vpack.c.b16 %v1437, %v1436
      %v1453 = vpack.c.b16 %v1439, %v1438
      %v1454 = vpack.c.b16 %v1441, %v1440
      %v1455 = vpack.c.b16 %v1443, %v1442
      %v1456 = vpack.c.b16 %v1445, %v1444
      %v1457 = vpack.c.b16 %v1447, %v1446
      %v1458 = vpack.c.b16 %v1449, %v1448
      %v1459 = vpack.c.b16 %v1451, %v1450
      %1468 = vmatprep.subr.bf16.mxu0 0
      %1469 = vmatpush1.bf16.msra.mxu0 %v1459
      %1470 = vmatprep.subr.bf16.mxu0 0
      %1471 = vmatpush1.bf16.msra.mxu0 %v1458
      %1472 = vmatprep.subr.bf16.mxu0 0
      %1473 = vmatpush1.bf16.msra.mxu0 %v1457
      %1474 = vmatprep.subr.bf16.mxu0 0
      %1475 = vmatpush1.bf16.msra.mxu0 %v1456
      %1476 = vmatprep.subr.bf16.mxu0 0
      %1477 = vmatpush1.bf16.msra.mxu0 %v1455
      %1478 = vmatprep.subr.bf16.mxu0 0
      %1479 = vmatpush1.bf16.msra.mxu0 %v1454
      %1480 = vmatprep.subr.bf16.mxu0 0
      %1481 = vmatpush1.bf16.msra.mxu0 %v1453
      %1482 = vmatprep.subr.bf16.mxu0 0
      %1483 = vmatpush1.bf16.msra.mxu0 %v1452
      %1484 = vmatprep.subr.bf16.mxu0 0
      %1485 = vmatpush2.bf16.msra.mxu0 0
      %1486 = vmatprep.subr.bf16.mxu0 0
      %1487 = vmatpush2.bf16.msra.mxu0 0
      %1488 = vmatprep.subr.bf16.mxu0 0
      %1489 = vmatpush2.bf16.msra.mxu0 0
      %1490 = vmatprep.subr.bf16.mxu0 0
      %1491 = vmatpush2.bf16.msra.mxu0 0
      %1492 = vmatprep.subr.bf16.mxu0 0
      %1493 = vmatpush2.bf16.msra.mxu0 0
      %1494 = vmatprep.subr.bf16.mxu0 0
      %1495 = vmatpush2.bf16.msra.mxu0 0
      %1496 = vmatprep.subr.bf16.mxu0 0
      %1497 = vmatpush2.bf16.msra.mxu0 0
      %1498 = vmatprep.subr.bf16.mxu0 0
      %1499 = vmatpush2.bf16.msra.mxu0 0
      %1500 = vmatprep.mubr.bf16.mxu0 0
      %1501 = vmatmul.mubr.bf16.gmra.mxu0 %v1406
      %v1502 = vpop.f32.mrf.mxu0
      %v1503 = vadd.f32 0.0, %v1502
      %v1504 = vpop.f32.mrf.mxu0
      %v1505 = vpop.f32.mrf.mxu0
      %v1506 = vadd.f32 0.0, %v1505
      %v1507 = vpop.f32.mrf.mxu0
      %1508 = vmatprep.mubr.bf16.mxu0 0
      %1509 = vmatmul.mubr.bf16.gmra.mxu0 %v1408
      %v1510 = vpop.f32.mrf.mxu0
      %v1511 = vadd.f32 0.0, %v1510
      %v1512 = vpop.f32.mrf.mxu0
      %v1513 = vpop.f32.mrf.mxu0
      %v1514 = vadd.f32 0.0, %v1513
      %v1515 = vpop.f32.mrf.mxu0
      %1516 = vmatprep.mubr.bf16.mxu0 0
      %1517 = vmatmul.mubr.bf16.gmra.mxu0 %v1410
      %v1518 = vpop.f32.mrf.mxu0
      %v1519 = vadd.f32 0.0, %v1518
      %v1520 = vpop.f32.mrf.mxu0
      %v1521 = vpop.f32.mrf.mxu0
      %v1522 = vadd.f32 0.0, %v1521
      %v1523 = vpop.f32.mrf.mxu0
      %1524 = vmatprep.mubr.bf16.mxu0 0
      %1525 = vmatmul.mubr.bf16.gmra.mxu0 %v1412
      %v1526 = vpop.f32.mrf.mxu0
      %v1527 = vadd.f32 0.0, %v1526
      %v1528 = vpop.f32.mrf.mxu0
      %v1529 = vpop.f32.mrf.mxu0
      %v1530 = vadd.f32 0.0, %v1529
      %v1531 = vpop.f32.mrf.mxu0
      %1532 = vmatprep.mubr.bf16.mxu0 0
      %1533 = vmatmul.mubr.bf16.gmra.mxu0 %v1414
      %v1534 = vpop.f32.mrf.mxu0
      %v1535 = vadd.f32 0.0, %v1534
      %v1536 = vpop.f32.mrf.mxu0
      %v1537 = vpop.f32.mrf.mxu0
      %v1538 = vadd.f32 0.0, %v1537
      %v1539 = vpop.f32.mrf.mxu0
      %1540 = vdwg.mxu0
      %v1541 = vadd.f32 %v1390, %v1503
      %v1542 = vadd.f32 %v1391, %v1506
      %v1543 = vadd.f32 %v1392, %v1511
      %v1544 = vadd.f32 %v1393, %v1514
      %v1545 = vadd.f32 %v1394, %v1519
      %v1546 = vadd.f32 %v1395, %v1522
      %v1547 = vadd.f32 %v1396, %v1527
      %v1548 = vadd.f32 %v1397, %v1530
      %v1549 = vadd.f32 %v1398, %v1535
      %v1550 = vadd.f32 %v1399, %v1538
      %vm1551 = vsmask.f32 5376
      %v1552 = vrot.slane %v470, 2
      %v1553 = vrot.slane %v466, 3
      %v1554 = vor.u32 %v1552, %v1553
      %v1555 = vrot.slane %v478, 2
      %v1556 = vrot.slane %v474, 3
      %v1557 = vor.u32 %v1555, %v1556
      %v1558 = vsel %vm1551, %v1554, %v1557
      %v1559 = vrot.slane %v486, 2
      %v1560 = vrot.slane %v482, 3
      %v1561 = vor.u32 %v1559, %v1560
      %v1562 = vsel %vm1551, %v1557, %v1561
      %v1563 = vrot.slane %v494, 2
      %v1564 = vrot.slane %v490, 3
      %v1565 = vor.u32 %v1563, %v1564
      %v1566 = vsel %vm1551, %v1561, %v1565
      %v1568 = vshrl.u32 %v1400, 16
      %v1570 = vrot.slane %v1568, 2
      %v1571 = vshll.u32 %v1400, 16
      %v1573 = vrot.slane %v1571, 3
      %v1574 = vor.u32 %v1570, %v1573
      %v1575 = vsel %vm1551, %v1565, %v1574
      %v1577 = vshrl.u32 %v1401, 16
      %v1579 = vrot.slane %v1577, 2
      %v1580 = vshll.u32 %v1401, 16
      %v1582 = vrot.slane %v1580, 3
      %v1583 = vor.u32 %v1579, %v1582
      %v1584 = vsel %vm1551, %v1574, %v1583
      %v1606 = vunpack.c.l.b16 %v419
      %v1607 = vunpack.c.l.b16 %v420
      %v1608 = vunpack.c.l.b16 %v421
      %v1609 = vunpack.c.l.b16 %v422
      %v1610 = vunpack.c.l.b16 %v423
      %v1611 = vunpack.c.l.b16 %v424
      %v1612 = vunpack.c.l.b16 %v425
      %v1613 = vunpack.c.l.b16 %v426
      %v1614 = vunpack.c.l.b16 %v427
      %v1615 = vunpack.c.l.b16 %v428
      %v1616 = vunpack.c.l.b16 %v429
      %v1617 = vunpack.c.l.b16 %v430
      %v1618 = vunpack.c.l.b16 %v431
      %v1619 = vunpack.c.l.b16 %v432
      %v1620 = vunpack.c.l.b16 %v433
      %v1621 = vunpack.c.l.b16 %v434
      %v1622 = vpack.c.b16 %v1607, %v1606
      %v1623 = vpack.c.b16 %v1609, %v1608
      %v1624 = vpack.c.b16 %v1611, %v1610
      %v1625 = vpack.c.b16 %v1613, %v1612
      %v1626 = vpack.c.b16 %v1615, %v1614
      %v1627 = vpack.c.b16 %v1617, %v1616
      %v1628 = vpack.c.b16 %v1619, %v1618
      %v1629 = vpack.c.b16 %v1621, %v1620
      %1638 = vmatprep.subr.bf16.mxu0 0
      %1639 = vmatpush1.bf16.msra.mxu0 %v1629
      %1640 = vmatprep.subr.bf16.mxu0 0
      %1641 = vmatpush1.bf16.msra.mxu0 %v1628
      %1642 = vmatprep.subr.bf16.mxu0 0
      %1643 = vmatpush1.bf16.msra.mxu0 %v1627
      %1644 = vmatprep.subr.bf16.mxu0 0
      %1645 = vmatpush1.bf16.msra.mxu0 %v1626
      %1646 = vmatprep.subr.bf16.mxu0 0
      %1647 = vmatpush1.bf16.msra.mxu0 %v1625
      %1648 = vmatprep.subr.bf16.mxu0 0
      %1649 = vmatpush1.bf16.msra.mxu0 %v1624
      %1650 = vmatprep.subr.bf16.mxu0 0
      %1651 = vmatpush1.bf16.msra.mxu0 %v1623
      %1652 = vmatprep.subr.bf16.mxu0 0
      %1653 = vmatpush1.bf16.msra.mxu0 %v1622
      %1654 = vmatprep.subr.bf16.mxu0 0
      %1655 = vmatpush2.bf16.msra.mxu0 0
      %1656 = vmatprep.subr.bf16.mxu0 0
      %1657 = vmatpush2.bf16.msra.mxu0 0
      %1658 = vmatprep.subr.bf16.mxu0 0
      %1659 = vmatpush2.bf16.msra.mxu0 0
      %1660 = vmatprep.subr.bf16.mxu0 0
      %1661 = vmatpush2.bf16.msra.mxu0 0
      %1662 = vmatprep.subr.bf16.mxu0 0
      %1663 = vmatpush2.bf16.msra.mxu0 0
      %1664 = vmatprep.subr.bf16.mxu0 0
      %1665 = vmatpush2.bf16.msra.mxu0 0
      %1666 = vmatprep.subr.bf16.mxu0 0
      %1667 = vmatpush2.bf16.msra.mxu0 0
      %1668 = vmatprep.subr.bf16.mxu0 0
      %1669 = vmatpush2.bf16.msra.mxu0 0
      %1670 = vmatprep.mubr.bf16.mxu0 0
      %1671 = vmatmul.mubr.bf16.gmra.mxu0 %v1558
      %v1672 = vpop.f32.mrf.mxu0
      %v1673 = vadd.f32 0.0, %v1672
      %v1674 = vpop.f32.mrf.mxu0
      %v1675 = vpop.f32.mrf.mxu0
      %v1676 = vadd.f32 0.0, %v1675
      %v1677 = vpop.f32.mrf.mxu0
      %1678 = vmatprep.mubr.bf16.mxu0 0
      %1679 = vmatmul.mubr.bf16.gmra.mxu0 %v1562
      %v1680 = vpop.f32.mrf.mxu0
      %v1681 = vadd.f32 0.0, %v1680
      %v1682 = vpop.f32.mrf.mxu0
      %v1683 = vpop.f32.mrf.mxu0
      %v1684 = vadd.f32 0.0, %v1683
      %v1685 = vpop.f32.mrf.mxu0
      %1686 = vmatprep.mubr.bf16.mxu0 0
      %1687 = vmatmul.mubr.bf16.gmra.mxu0 %v1566
      %v1688 = vpop.f32.mrf.mxu0
      %v1689 = vadd.f32 0.0, %v1688
      %v1690 = vpop.f32.mrf.mxu0
      %v1691 = vpop.f32.mrf.mxu0
      %v1692 = vadd.f32 0.0, %v1691
      %v1693 = vpop.f32.mrf.mxu0
      %1694 = vmatprep.mubr.bf16.mxu0 0
      %1695 = vmatmul.mubr.bf16.gmra.mxu0 %v1575
      %v1696 = vpop.f32.mrf.mxu0
      %v1697 = vadd.f32 0.0, %v1696
      %v1698 = vpop.f32.mrf.mxu0
      %v1699 = vpop.f32.mrf.mxu0
      %v1700 = vadd.f32 0.0, %v1699
      %v1701 = vpop.f32.mrf.mxu0
      %1702 = vmatprep.mubr.bf16.mxu0 0
      %1703 = vmatmul.mubr.bf16.gmra.mxu0 %v1584
      %v1704 = vpop.f32.mrf.mxu0
      %v1705 = vadd.f32 0.0, %v1704
      %v1706 = vpop.f32.mrf.mxu0
      %v1707 = vpop.f32.mrf.mxu0
      %v1708 = vadd.f32 0.0, %v1707
      %v1709 = vpop.f32.mrf.mxu0
      %1710 = vdwg.mxu0
      %v1711 = vadd.f32 %v1541, %v1673
      %v1712 = vadd.f32 %v1542, %v1676
      %v1713 = vadd.f32 %v1543, %v1681
      %v1714 = vadd.f32 %v1544, %v1684
      %v1715 = vadd.f32 %v1545, %v1689
      %v1716 = vadd.f32 %v1546, %v1692
      %v1717 = vadd.f32 %v1547, %v1697
      %v1718 = vadd.f32 %v1548, %v1700
      %v1719 = vadd.f32 %v1549, %v1705
      %v1720 = vadd.f32 %v1550, %v1708
      %vm1721 = vcmask 1044480
      %v1722 = vrot.slane %v452, 3
      %v1723 = vrot.slane %v453, 3
      %v1724 = vsel %vm1721, %v1722, %v1723
      %v1725 = vrot.slane %v454, 3
      %v1726 = vsel %vm1721, %v1723, %v1725
      %v1727 = vrot.slane %v455, 3
      %v1728 = vsel %vm1721, %v1725, %v1727
      %v1729 = vrot.slane %v1400, 3
      %v1730 = vsel %vm1721, %v1727, %v1729
      %v1731 = vrot.slane %v1401, 3
      %v1732 = vsel %vm1721, %v1729, %v1731
      %v1754 = vunpack.c.l.b16 %v435
      %v1755 = vunpack.c.l.b16 %v436
      %v1756 = vunpack.c.l.b16 %v437
      %v1757 = vunpack.c.l.b16 %v438
      %v1758 = vunpack.c.l.b16 %v439
      %v1759 = vunpack.c.l.b16 %v440
      %v1760 = vunpack.c.l.b16 %v441
      %v1761 = vunpack.c.l.b16 %v442
      %v1762 = vunpack.c.l.b16 %v443
      %v1763 = vunpack.c.l.b16 %v444
      %v1764 = vunpack.c.l.b16 %v445
      %v1765 = vunpack.c.l.b16 %v446
      %v1766 = vunpack.c.l.b16 %v447
      %v1767 = vunpack.c.l.b16 %v448
      %v1768 = vunpack.c.l.b16 %v449
      %v1769 = vunpack.c.l.b16 %v450
      %v1770 = vpack.c.b16 %v1755, %v1754
      %v1771 = vpack.c.b16 %v1757, %v1756
      %v1772 = vpack.c.b16 %v1759, %v1758
      %v1773 = vpack.c.b16 %v1761, %v1760
      %v1774 = vpack.c.b16 %v1763, %v1762
      %v1775 = vpack.c.b16 %v1765, %v1764
      %v1776 = vpack.c.b16 %v1767, %v1766
      %v1777 = vpack.c.b16 %v1769, %v1768
      %1786 = vmatprep.subr.bf16.mxu0 0
      %1787 = vmatpush1.bf16.msra.mxu0 %v1777
      %1788 = vmatprep.subr.bf16.mxu0 0
      %1789 = vmatpush1.bf16.msra.mxu0 %v1776
      %1790 = vmatprep.subr.bf16.mxu0 0
      %1791 = vmatpush1.bf16.msra.mxu0 %v1775
      %1792 = vmatprep.subr.bf16.mxu0 0
      %1793 = vmatpush1.bf16.msra.mxu0 %v1774
      %1794 = vmatprep.subr.bf16.mxu0 0
      %1795 = vmatpush1.bf16.msra.mxu0 %v1773
      %1796 = vmatprep.subr.bf16.mxu0 0
      %1797 = vmatpush1.bf16.msra.mxu0 %v1772
      %1798 = vmatprep.subr.bf16.mxu0 0
      %1799 = vmatpush1.bf16.msra.mxu0 %v1771
      %1800 = vmatprep.subr.bf16.mxu0 0
      %1801 = vmatpush1.bf16.msra.mxu0 %v1770
      %1802 = vmatprep.subr.bf16.mxu0 0
      %1803 = vmatpush2.bf16.msra.mxu0 0
      %1804 = vmatprep.subr.bf16.mxu0 0
      %1805 = vmatpush2.bf16.msra.mxu0 0
      %1806 = vmatprep.subr.bf16.mxu0 0
      %1807 = vmatpush2.bf16.msra.mxu0 0
      %1808 = vmatprep.subr.bf16.mxu0 0
      %1809 = vmatpush2.bf16.msra.mxu0 0
      %1810 = vmatprep.subr.bf16.mxu0 0
      %1811 = vmatpush2.bf16.msra.mxu0 0
      %1812 = vmatprep.subr.bf16.mxu0 0
      %1813 = vmatpush2.bf16.msra.mxu0 0
      %1814 = vmatprep.subr.bf16.mxu0 0
      %1815 = vmatpush2.bf16.msra.mxu0 0
      %1816 = vmatprep.subr.bf16.mxu0 0
      %1817 = vmatpush2.bf16.msra.mxu0 0
      %1818 = vmatprep.mubr.bf16.mxu0 0
      %1819 = vmatmul.mubr.bf16.gmra.mxu0 %v1724
      %v1820 = vpop.f32.mrf.mxu0
      %v1821 = vadd.f32 0.0, %v1820
      %v1822 = vpop.f32.mrf.mxu0
      %v1823 = vpop.f32.mrf.mxu0
      %v1824 = vadd.f32 0.0, %v1823
      %v1825 = vpop.f32.mrf.mxu0
      %1826 = vmatprep.mubr.bf16.mxu0 0
      %1827 = vmatmul.mubr.bf16.gmra.mxu0 %v1726
      %v1828 = vpop.f32.mrf.mxu0
      %v1829 = vadd.f32 0.0, %v1828
      %v1830 = vpop.f32.mrf.mxu0
      %v1831 = vpop.f32.mrf.mxu0
      %v1832 = vadd.f32 0.0, %v1831
      %v1833 = vpop.f32.mrf.mxu0
      %1834 = vmatprep.mubr.bf16.mxu0 0
      %1835 = vmatmul.mubr.bf16.gmra.mxu0 %v1728
      %v1836 = vpop.f32.mrf.mxu0
      %v1837 = vadd.f32 0.0, %v1836
      %v1838 = vpop.f32.mrf.mxu0
      %v1839 = vpop.f32.mrf.mxu0
      %v1840 = vadd.f32 0.0, %v1839
      %v1841 = vpop.f32.mrf.mxu0
      %1842 = vmatprep.mubr.bf16.mxu0 0
      %1843 = vmatmul.mubr.bf16.gmra.mxu0 %v1730
      %v1844 = vpop.f32.mrf.mxu0
      %v1845 = vadd.f32 0.0, %v1844
      %v1846 = vpop.f32.mrf.mxu0
      %v1847 = vpop.f32.mrf.mxu0
      %v1848 = vadd.f32 0.0, %v1847
      %v1849 = vpop.f32.mrf.mxu0
      %1850 = vmatprep.mubr.bf16.mxu0 0
      %1851 = vmatmul.mubr.bf16.gmra.mxu0 %v1732
      %v1852 = vpop.f32.mrf.mxu0
      %v1853 = vadd.f32 0.0, %v1852
      %v1854 = vpop.f32.mrf.mxu0
      %v1855 = vpop.f32.mrf.mxu0
      %v1856 = vadd.f32 0.0, %v1855
      %v1857 = vpop.f32.mrf.mxu0
      %1858 = vdwg.mxu0
      %v1859 = vadd.f32 %v1711, %v1821
      %v1860 = vadd.f32 %v1712, %v1824
      %v1861 = vadd.f32 %v1713, %v1829
      %v1862 = vadd.f32 %v1714, %v1832
      %v1863 = vadd.f32 %v1715, %v1837
      %v1864 = vadd.f32 %v1716, %v1840
      %v1865 = vadd.f32 %v1717, %v1845
      %v1866 = vadd.f32 %v1718, %v1848
      %v1867 = vadd.f32 %v1719, %v1853
      %v1868 = vadd.f32 %v1720, %v1856
      %v1869 = vld [vmem:[%s263] sm:$0x1]
      %v1871 = vlaneseq
      %v1872 = vshrl.u32 %v1871, 7
      %v1873 = vsub.s32 0, %v1872
      %v1874 = vrot.slane %v1869, %v1873
      %v1876 = vadd.f32 %v1859, %v1874
      %v1877 = vadd.f32 %v1860, %v1874
      %v1878 = vadd.f32 %v1861, %v1874
      %v1879 = vadd.f32 %v1862, %v1874
      %v1880 = vadd.f32 %v1863, %v1874
      %v1881 = vadd.f32 %v1864, %v1874
      %v1882 = vadd.f32 %v1865, %v1874
      %v1883 = vadd.f32 %v1866, %v1874
      %v1884 = vadd.f32 %v1867, %v1874
      %v1885 = vadd.f32 %v1868, %v1874
      %v1886 = vmul.f32 %v1876, 0.5
      %v1887 = vmul.f32 %v1877, 0.5
      %v1888 = vmul.f32 %v1878, 0.5
      %v1889 = vmul.f32 %v1879, 0.5
      %v1890 = vmul.f32 %v1880, 0.5
      %v1891 = vmul.f32 %v1881, 0.5
      %v1892 = vmul.f32 %v1882, 0.5
      %v1893 = vmul.f32 %v1883, 0.5
      %v1894 = vmul.f32 %v1884, 0.5
      %v1895 = vmul.f32 %v1885, 0.5
      %v1896 = vtanh.pop %v1886
      %v1897 = vtanh.pop %v1887
      %v1898 = vtanh.pop %v1888
      %v1899 = vtanh.pop %v1889
      %v1900 = vtanh.pop %v1890
      %v1901 = vtanh.pop %v1891
      %v1902 = vtanh.pop %v1892
      %v1903 = vtanh.pop %v1893
      %v1904 = vtanh.pop %v1894
      %v1905 = vtanh.pop %v1895
      %v1906 = vadd.f32 %v1896, 1.0
      %v1907 = vadd.f32 %v1897, 1.0
      %v1908 = vadd.f32 %v1898, 1.0
      %v1909 = vadd.f32 %v1899, 1.0
      %v1910 = vadd.f32 %v1900, 1.0
      %v1911 = vadd.f32 %v1901, 1.0
      %v1912 = vadd.f32 %v1902, 1.0
      %v1913 = vadd.f32 %v1903, 1.0
      %v1914 = vadd.f32 %v1904, 1.0
      %v1915 = vadd.f32 %v1905, 1.0
      %v1916 = vmul.f32 %v1906, 0.5
      %v1917 = vmul.f32 %v1907, 0.5
      %v1918 = vmul.f32 %v1908, 0.5
      %v1919 = vmul.f32 %v1909, 0.5
      %v1920 = vmul.f32 %v1910, 0.5
      %v1921 = vmul.f32 %v1911, 0.5
      %v1922 = vmul.f32 %v1912, 0.5
      %v1923 = vmul.f32 %v1913, 0.5
      %v1924 = vmul.f32 %v1914, 0.5
      %v1925 = vmul.f32 %v1915, 0.5
      %v1926 = vmul.f32 %v1876, %v1916
      %v1927 = vmul.f32 %v1877, %v1917
      %v1928 = vmul.f32 %v1878, %v1918
      %v1929 = vmul.f32 %v1879, %v1919
      %v1930 = vmul.f32 %v1880, %v1920
      %v1931 = vmul.f32 %v1881, %v1921
      %v1932 = vmul.f32 %v1882, %v1922
      %v1933 = vmul.f32 %v1883, %v1923
      %v1934 = vmul.f32 %v1884, %v1924
      %v1935 = vmul.f32 %v1885, %v1925
      %v1936 = vld [vmem:[%s271] sm:$0xf]
      %v1937 = vld [vmem:[%s271 + $0x4] sm:$0xf]
      %v1938 = vld [vmem:[%s271 + $0x8] sm:$0xf]
      %v1939 = vld [vmem:[%s271 + $0xc] sm:$0xf]
      %v1940 = vld [vmem:[%s271 + $0x10] sm:$0xf]
      %v1941 = vld [vmem:[%s271 + $0x14] sm:$0xf]
      %v1942 = vld [vmem:[%s271 + $0x18] sm:$0xf]
      %v1943 = vld [vmem:[%s271 + $0x1c] sm:$0xf]
      %v1944 = vld [vmem:[%s271 + $0x20] sm:$0xf]
      %v1945 = vld [vmem:[%s271 + $0x24] sm:$0xf]
      %v1946 = vunpack.c.l.bf16 %v1936
      %v1947 = vunpack.c.l.bf16 %v1937
      %v1948 = vunpack.c.l.bf16 %v1938
      %v1949 = vunpack.c.l.bf16 %v1939
      %v1950 = vunpack.c.l.bf16 %v1940
      %v1951 = vunpack.c.l.bf16 %v1941
      %v1952 = vunpack.c.l.bf16 %v1942
      %v1953 = vunpack.c.l.bf16 %v1943
      %v1954 = vunpack.c.l.bf16 %v1944
      %v1955 = vunpack.c.l.bf16 %v1945
      %v1956 = vadd.f32 %v1926, %v1946
      %v1957 = vadd.f32 %v1927, %v1947
      %v1958 = vadd.f32 %v1928, %v1948
      %v1959 = vadd.f32 %v1929, %v1949
      %v1960 = vadd.f32 %v1930, %v1950
      %v1961 = vadd.f32 %v1931, %v1951
      %v1962 = vadd.f32 %v1932, %v1952
      %v1963 = vadd.f32 %v1933, %v1953
      %v1964 = vadd.f32 %v1934, %v1954
      %v1965 = vadd.f32 %v1935, %v1955
      %v1966 = vpack.c.bf16 %v1957, %v1956
      %v1967 = vpack.c.bf16 %v1959, %v1958
      %v1968 = vpack.c.bf16 %v1961, %v1960
      %v1969 = vpack.c.bf16 %v1963, %v1962
      %v1970 = vpack.c.bf16 %v1965, %v1964
      %v1976 = vunpack.c.l.b16 %v1966
      %v1977 = vunpack.c.h.b16 %v1966
      %v1978 = vunpack.c.l.b16 %v1967
      %v1979 = vunpack.c.h.b16 %v1967
      %v1980 = vunpack.c.l.b16 %v1968
      %v1981 = vunpack.c.h.b16 %v1968
      %v1982 = vunpack.c.l.b16 %v1969
      %v1983 = vunpack.c.h.b16 %v1969
      %v1984 = vunpack.c.l.b16 %v1970
      %v1985 = vunpack.c.h.b16 %v1970
      %v1986 = vpack.c.b16 %v1976, %v1976
      %v1987 = vpack.c.b16 %v1977, %v1977
      %v1988 = vpack.c.b16 %v1978, %v1978
      %v1989 = vpack.c.b16 %v1979, %v1979
      %v1990 = vpack.c.b16 %v1980, %v1980
      %v1991 = vpack.c.b16 %v1981, %v1981
      %v1992 = vpack.c.b16 %v1982, %v1982
      %v1993 = vpack.c.b16 %v1983, %v1983
      %v1994 = vpack.c.b16 %v1984, %v1984
      %v1995 = vpack.c.b16 %v1985, %v1985
      %2006 = vst [vmem:[%s279] sm:$0xf] %v1986
      %2007 = vst [vmem:[%s279 + $0x4] sm:$0xf] %v1987
      %2008 = vst [vmem:[%s279 + $0x8] sm:$0xf] %v1988
      %2009 = vst [vmem:[%s279 + $0xc] sm:$0xf] %v1989
      %2010 = vst [vmem:[%s279 + $0x10] sm:$0xf] %v1990
      %2011 = vst [vmem:[%s279 + $0x14] sm:$0xf] %v1991
      %2012 = vst [vmem:[%s279 + $0x18] sm:$0xf] %v1992
      %2013 = vst [vmem:[%s279 + $0x1c] sm:$0xf] %v1993
      %2014 = vst [vmem:[%s279 + $0x20] sm:$0xf] %v1994
      %2015 = vst [vmem:[%s279 + $0x24] sm:$0xf] %v1995
      %p2016 = scmp.lt.s32.totalorder %s19, 1
      %s2017 = scalar_select %p2016, %s19, 1
      %p2018 = scmp.lt.s32.totalorder %s20, 0
      %s2019 = scalar_select %p2018, %s20, 0
      %s2020 = smul.addr %s2017, 10
      %s2021 = sadd.s32 %s2019, %s2020
      %s2022 = smul.addr %s2021, 4
      %s2023 = scalar_lea.vmem %s4, %s2022
      // Predicated region
      $region37: #{_lambda_.11} parent=35 // pred_check
        %p2024 = pneg %p153
      $region38: #{_lambda_.11} parent=35 // pred_check_branch
        %2026 = sbr.rel (%p2024) target = $region40
      $region39: #{_lambda_.11} parent=35 // pred_region
        _
      $region40: #{_lambda_.11} parent=35 // pred_fallthru
        _
    $region36: #{_lambda_.11} parent=5 // pred_fallthru
      _
    %p2027 = scmp.le.s32.totalorder 2, %s10
    // Predicated region
    $region41: #{_lambda_.11} parent=5 // pred_check
      %p2028 = pneg %p2027
    $region42: #{_lambda_.11} parent=5 // pred_check_branch
      %2030 = sbr.rel (%p2028) target = $region44
    $region43: #{_lambda_.11} parent=5 // pred_region
      %s2031 = ssub.s32 %s10, 2
      // Predicated region
      $region45: #{_lambda_.11} parent=43 // pred_check
        %p2032 = pneg %p159
      $region46: #{_lambda_.11} parent=43 // pred_check_branch
        %2034 = sbr.rel (%p2032) target = $region48
      $region47: #{_lambda_.11} parent=43 // pred_region
        %p2035 = scmp.lt.s32.totalorder %s21, 1
        %s2036 = scalar_select %p2035, %s21, 1
        %p2037 = scmp.lt.s32.totalorder %s22, 0
        %s2038 = scalar_select %p2037, %s22, 0
        %s2039 = smul.addr %s2036, 10
        %s2040 = sadd.s32 %s2038, %s2039
        %s2041 = smul.addr %s2040, 4
        %s2042 = scalar_lea.vmem %s4, %s2041
      $region48: #{_lambda_.11} parent=43 // pred_fallthru
        _
    $region44: #{_lambda_.11} parent=5 // pred_fallthru
      _
  $region6: #{_lambda_.11} parent=0 // loop_footer
    %s14 = sadd.s32 1, %s10
  $region7: #{_lambda_.11} parent=0 // loop_footer_branch
    %9 = sbr.rel target = $region3
  $region8: #{_lambda_.11} parent=0 // loop_exit
    _

// kernel: _lambda_.13
$region0: #{_lambda_.13}
  #allocation0 [shape = 'u32[]', space=smem, size = 0x4, offset = 0x4, fixed_abs, tag = 'smem constant byte address 0x4 - core index']
  #allocation1 [shape = 'u32[144,128]{1,0:T(1,128)}', space=vmem, size = 0x12000, scoped, tag = 'internal scratch']
  #allocation2 [shape = 'f32[32,128]{1,0:T(8,128)}', space=vmem, size = 0x4000, scoped, tag = 'scratch operand']
  %s0 = inlined_call_operand.vmem [shape: bf16[32,128], index: 0, kind: input, shape index: {}]
  %s1 = inlined_call_operand.vmem [shape: bf16[128,128], index: 1, kind: input, shape index: {}]
  %s2 = inlined_call_operand.vmem [shape: f32[1,128], index: 2, kind: input, shape index: {}]
  %s3 = inlined_call_operand.vmem [shape: bf16[32,128], index: 3, kind: output, shape index: {}]
  %s4 = sld [smem:[#allocation0]]
  $region30: #{_lambda_.13} parent=0
    _
  %s6 = ssub.s32 1, %s4
  %s7 = scalar_select 0, %s6, %s4
  // Predicated region
  $region2: #{_lambda_.13} parent=0 // pred_check
    _
  $region3: #{_lambda_.13} parent=0 // pred_check_branch
    %9 = sbr.rel (0) target = $region5
  $region4: #{_lambda_.13} parent=0 // pred_region
    _
  $region5: #{_lambda_.13} parent=0 // pred_fallthru
    _
  // Predicated region
  $region6: #{_lambda_.13} parent=0 // pred_check
    _
  $region7: #{_lambda_.13} parent=0 // pred_check_branch
    %11 = sbr.rel (0) target = $region9
  $region8: #{_lambda_.13} parent=0 // pred_region
    _
  $region9: #{_lambda_.13} parent=0 // pred_fallthru
    _
  // Predicated region
  $region10: #{_lambda_.13} parent=0 // pred_check
    _
  $region11: #{_lambda_.13} parent=0 // pred_check_branch
    %13 = sbr.rel (0) target = $region13
  $region12: #{_lambda_.13} parent=0 // pred_region
    _
  $region13: #{_lambda_.13} parent=0 // pred_fallthru
    _
  %p15 = scmp.eq.s32.totalorder 0, 0
  // Predicated region
  $region14: #{_lambda_.13} parent=0 // pred_check
    %p16 = pneg %p15
  $region15: #{_lambda_.13} parent=0 // pred_check_branch
    %18 = sbr.rel (%p16) target = $region17
  $region16: #{_lambda_.13} parent=0 // pred_region
    %19 = vst [vmem:[#allocation2] sm:$0xff] 0.0
    %20 = vst [vmem:[#allocation2 + $0x8] sm:$0xff] 0.0
    %21 = vst [vmem:[#allocation2 + $0x10] sm:$0xff] 0.0
    %22 = vst [vmem:[#allocation2 + $0x18] sm:$0xff] 0.0
  $region17: #{_lambda_.13} parent=0 // pred_fallthru
    _
  %v23 = vld [vmem:[#allocation2] sm:$0xff]
  %v24 = vld [vmem:[#allocation2 + $0x8] sm:$0xff]
  %v25 = vld [vmem:[#allocation2 + $0x10] sm:$0xff]
  %v26 = vld [vmem:[#allocation2 + $0x18] sm:$0xff]
  %v27 = vld [vmem:[%s0] sm:$0xf]
  %v28 = vld [vmem:[%s0 + $0x4] sm:$0xf]
  %v29 = vld [vmem:[%s0 + $0x8] sm:$0xf]
  %v30 = vld [vmem:[%s0 + $0xc] sm:$0xf]
  %v31 = vld [vmem:[%s1] sm:$0xf]
  %v32 = vld [vmem:[%s1 + $0x4] sm:$0xf]
  %v33 = vld [vmem:[%s1 + $0x8] sm:$0xf]
  %v34 = vld [vmem:[%s1 + $0xc] sm:$0xf]
  %v35 = vld [vmem:[%s1 + $0x10] sm:$0xf]
  %v36 = vld [vmem:[%s1 + $0x14] sm:$0xf]
  %v37 = vld [vmem:[%s1 + $0x18] sm:$0xf]
  %v38 = vld [vmem:[%s1 + $0x1c] sm:$0xf]
  %v39 = vld [vmem:[%s1 + $0x20] sm:$0xf]
  %v40 = vld [vmem:[%s1 + $0x24] sm:$0xf]
  %v41 = vld [vmem:[%s1 + $0x28] sm:$0xf]
  %v42 = vld [vmem:[%s1 + $0x2c] sm:$0xf]
  %v43 = vld [vmem:[%s1 + $0x30] sm:$0xf]
  %v44 = vld [vmem:[%s1 + $0x34] sm:$0xf]
  %v45 = vld [vmem:[%s1 + $0x38] sm:$0xf]
  %v46 = vld [vmem:[%s1 + $0x3c] sm:$0xf]
  %v51 = vunpack.c.l.b16 %v27
  %v52 = vunpack.c.l.b16 %v28
  %v53 = vunpack.c.l.b16 %v29
  %v54 = vunpack.c.l.b16 %v30
  %v55 = vpack.c.b16 %v52, %v51
  %v56 = vpack.c.b16 %v54, %v53
  %v75 = vunpack.c.l.b16 %v31
  %v76 = vunpack.c.l.b16 %v32
  %v77 = vunpack.c.l.b16 %v33
  %v78 = vunpack.c.l.b16 %v34
  %v79 = vunpack.c.l.b16 %v35
  %v80 = vunpack.c.l.b16 %v36
  %v81 = vunpack.c.l.b16 %v37
  %v82 = vunpack.c.l.b16 %v38
  %v83 = vunpack.c.l.b16 %v39
  %v84 = vunpack.c.l.b16 %v40
  %v85 = vunpack.c.l.b16 %v41
  %v86 = vunpack.c.l.b16 %v42
  %v87 = vunpack.c.l.b16 %v43
  %v88 = vunpack.c.l.b16 %v44
  %v89 = vunpack.c.l.b16 %v45
  %v90 = vunpack.c.l.b16 %v46
  %v91 = vpack.c.b16 %v76, %v75
  %v92 = vpack.c.b16 %v78, %v77
  %v93 = vpack.c.b16 %v80, %v79
  %v94 = vpack.c.b16 %v82, %v81
  %v95 = vpack.c.b16 %v84, %v83
  %v96 = vpack.c.b16 %v86, %v85
  %v97 = vpack.c.b16 %v88, %v87
  %v98 = vpack.c.b16 %v90, %v89
  %107 = vmatprep.subr.bf16.mxu0 0
  %108 = vmatpush1.bf16.msra.mxu0 %v98
  %109 = vmatprep.subr.bf16.mxu0 0
  %110 = vmatpush1.bf16.msra.mxu0 %v97
  %111 = vmatprep.subr.bf16.mxu0 0
  %112 = vmatpush1.bf16.msra.mxu0 %v96
  %113 = vmatprep.subr.bf16.mxu0 0
  %114 = vmatpush1.bf16.msra.mxu0 %v95
  %115 = vmatprep.subr.bf16.mxu0 0
  %116 = vmatpush1.bf16.msra.mxu0 %v94
  %117 = vmatprep.subr.bf16.mxu0 0
  %118 = vmatpush1.bf16.msra.mxu0 %v93
  %119 = vmatprep.subr.bf16.mxu0 0
  %120 = vmatpush1.bf16.msra.mxu0 %v92
  %121 = vmatprep.subr.bf16.mxu0 0
  %122 = vmatpush1.bf16.msra.mxu0 %v91
  %123 = vmatprep.subr.bf16.mxu0 0
  %124 = vmatpush2.bf16.msra.mxu0 0
  %125 = vmatprep.subr.bf16.mxu0 0
  %126 = vmatpush2.bf16.msra.mxu0 0
  %127 = vmatprep.subr.bf16.mxu0 0
  %128 = vmatpush2.bf16.msra.mxu0 0
  %129 = vmatprep.subr.bf16.mxu0 0
  %130 = vmatpush2.bf16.msra.mxu0 0
  %131 = vmatprep.subr.bf16.mxu0 0
  %132 = vmatpush2.bf16.msra.mxu0 0
  %133 = vmatprep.subr.bf16.mxu0 0
  %134 = vmatpush2.bf16.msra.mxu0 0
  %135 = vmatprep.subr.bf16.mxu0 0
  %136 = vmatpush2.bf16.msra.mxu0 0
  %137 = vmatprep.subr.bf16.mxu0 0
  %138 = vmatpush2.bf16.msra.mxu0 0
  %139 = vmatprep.mubr.bf16.mxu0 0
  %140 = vmatmul.mubr.bf16.gmra.mxu0 %v55
  %v141 = vpop.f32.mrf.mxu0
  %v142 = vadd.f32 0.0, %v141
  %v143 = vpop.f32.mrf.mxu0
  %v144 = vpop.f32.mrf.mxu0
  %v145 = vadd.f32 0.0, %v144
  %v146 = vpop.f32.mrf.mxu0
  %147 = vmatprep.mubr.bf16.mxu0 0
  %148 = vmatmul.mubr.bf16.gmra.mxu0 %v56
  %v149 = vpop.f32.mrf.mxu0
  %v150 = vadd.f32 0.0, %v149
  %v151 = vpop.f32.mrf.mxu0
  %v152 = vpop.f32.mrf.mxu0
  %v153 = vadd.f32 0.0, %v152
  %v154 = vpop.f32.mrf.mxu0
  %155 = vdwg.mxu0
  %v156 = vadd.f32 %v23, %v142
  %v157 = vadd.f32 %v24, %v145
  %v158 = vadd.f32 %v25, %v150
  %v159 = vadd.f32 %v26, %v153
  %160 = vst [vmem:[#allocation2] sm:$0xff] %v156
  %161 = vst [vmem:[#allocation2 + $0x8] sm:$0xff] %v157
  %162 = vst [vmem:[#allocation2 + $0x10] sm:$0xff] %v158
  %163 = vst [vmem:[#allocation2 + $0x18] sm:$0xff] %v159
  // Predicated region
  $region18: #{_lambda_.13} parent=0 // pred_check
    %p164 = pneg %p15
  $region19: #{_lambda_.13} parent=0 // pred_check_branch
    %166 = sbr.rel (%p164) target = $region21
  $region20: #{_lambda_.13} parent=0 // pred_region
    %v167 = vld [vmem:[#allocation2] sm:$0xff]
    %v168 = vld [vmem:[#allocation2 + $0x8] sm:$0xff]
    %v169 = vld [vmem:[#allocation2 + $0x10] sm:$0xff]
    %v170 = vld [vmem:[#allocation2 + $0x18] sm:$0xff]
    %v171 = vld [vmem:[%s2] sm:$0x1]
    %v173 = vlaneseq
    %v174 = vshrl.u32 %v173, 7
    %v175 = vsub.s32 0, %v174
    %v176 = vrot.slane %v171, %v175
    %v178 = vadd.f32 %v167, %v176
    %v179 = vadd.f32 %v168, %v176
    %v180 = vadd.f32 %v169, %v176
    %v181 = vadd.f32 %v170, %v176
    %v182 = vpack.c.bf16 %v179, %v178
    %v183 = vpack.c.bf16 %v181, %v180
    %v186 = vunpack.c.l.b16 %v182
    %v187 = vunpack.c.h.b16 %v182
    %v188 = vunpack.c.l.b16 %v183
    %v189 = vunpack.c.h.b16 %v183
    %v190 = vpack.c.b16 %v186, %v186
    %v191 = vpack.c.b16 %v187, %v187
    %v192 = vpack.c.b16 %v188, %v188
    %v193 = vpack.c.b16 %v189, %v189
    %198 = vst [vmem:[%s3] sm:$0xf] %v190
    %199 = vst [vmem:[%s3 + $0x4] sm:$0xf] %v191
    %200 = vst [vmem:[%s3 + $0x8] sm:$0xf] %v192
    %201 = vst [vmem:[%s3 + $0xc] sm:$0xf] %v193
  $region21: #{_lambda_.13} parent=0 // pred_fallthru
    _
  // Predicated region
  $region22: #{_lambda_.13} parent=0 // pred_check
    _
  $region23: #{_lambda_.13} parent=0 // pred_check_branch
    %203 = sbr.rel (0) target = $region25
  $region24: #{_lambda_.13} parent=0 // pred_region
    _
  $region25: #{_lambda_.13} parent=0 // pred_fallthru
    _
  // Predicated region
  $region26: #{_lambda_.13} parent=0 // pred_check
    _
  $region27: #{_lambda_.13} parent=0 // pred_check_branch
    %205 = sbr.rel (0) target = $region29
  $region28: #{_lambda_.13} parent=0 // pred_region
    _
  $region29: #{_lambda_.13} parent=0 // pred_fallthru
    _

// kernel: _lambda_.12
$region0: #{_lambda_.12}
  #allocation0 [shape = 'u32[]', space=smem, size = 0x4, offset = 0x4, fixed_abs, tag = 'smem constant byte address 0x4 - core index']
  #allocation1 [shape = 'u32[144,128]{1,0:T(1,128)}', space=vmem, size = 0x12000, scoped, tag = 'internal scratch']
  #allocation2 [shape = 'f32[32,128]{1,0:T(8,128)}', space=vmem, size = 0x4000, scoped, tag = 'scratch operand']
  %s0 = inlined_call_operand.vmem [shape: bf16[32,128], index: 0, kind: input, shape index: {}]
  %s1 = inlined_call_operand.vmem [shape: bf16[128,128], index: 1, kind: input, shape index: {}]
  %s2 = inlined_call_operand.vmem [shape: f32[1,128], index: 2, kind: input, shape index: {}]
  %s3 = inlined_call_operand.vmem [shape: bf16[32,128], index: 3, kind: output, shape index: {}]
  %s4 = sld [smem:[#allocation0]]
  $region30: #{_lambda_.12} parent=0
    _
  %s6 = ssub.s32 1, %s4
  %s7 = scalar_select 0, %s6, %s4
  // Predicated region
  $region2: #{_lambda_.12} parent=0 // pred_check
    _
  $region3: #{_lambda_.12} parent=0 // pred_check_branch
    %9 = sbr.rel (0) target = $region5
  $region4: #{_lambda_.12} parent=0 // pred_region
    _
  $region5: #{_lambda_.12} parent=0 // pred_fallthru
    _
  // Predicated region
  $region6: #{_lambda_.12} parent=0 // pred_check
    _
  $region7: #{_lambda_.12} parent=0 // pred_check_branch
    %11 = sbr.rel (0) target = $region9
  $region8: #{_lambda_.12} parent=0 // pred_region
    _
  $region9: #{_lambda_.12} parent=0 // pred_fallthru
    _
  // Predicated region
  $region10: #{_lambda_.12} parent=0 // pred_check
    _
  $region11: #{_lambda_.12} parent=0 // pred_check_branch
    %13 = sbr.rel (0) target = $region13
  $region12: #{_lambda_.12} parent=0 // pred_region
    _
  $region13: #{_lambda_.12} parent=0 // pred_fallthru
    _
  %p15 = scmp.eq.s32.totalorder 0, 0
  // Predicated region
  $region14: #{_lambda_.12} parent=0 // pred_check
    %p16 = pneg %p15
  $region15: #{_lambda_.12} parent=0 // pred_check_branch
    %18 = sbr.rel (%p16) target = $region17
  $region16: #{_lambda_.12} parent=0 // pred_region
    %19 = vst [vmem:[#allocation2] sm:$0xff] 0.0
    %20 = vst [vmem:[#allocation2 + $0x8] sm:$0xff] 0.0
    %21 = vst [vmem:[#allocation2 + $0x10] sm:$0xff] 0.0
    %22 = vst [vmem:[#allocation2 + $0x18] sm:$0xff] 0.0
  $region17: #{_lambda_.12} parent=0 // pred_fallthru
    _
  %v23 = vld [vmem:[#allocation2] sm:$0xff]
  %v24 = vld [vmem:[#allocation2 + $0x8] sm:$0xff]
  %v25 = vld [vmem:[#allocation2 + $0x10] sm:$0xff]
  %v26 = vld [vmem:[#allocation2 + $0x18] sm:$0xff]
  %v27 = vld [vmem:[%s0] sm:$0xf]
  %v28 = vld [vmem:[%s0 + $0x4] sm:$0xf]
  %v29 = vld [vmem:[%s0 + $0x8] sm:$0xf]
  %v30 = vld [vmem:[%s0 + $0xc] sm:$0xf]
  %v31 = vld [vmem:[%s1] sm:$0xf]
  %v32 = vld [vmem:[%s1 + $0x4] sm:$0xf]
  %v33 = vld [vmem:[%s1 + $0x8] sm:$0xf]
  %v34 = vld [vmem:[%s1 + $0xc] sm:$0xf]
  %v35 = vld [vmem:[%s1 + $0x10] sm:$0xf]
  %v36 = vld [vmem:[%s1 + $0x14] sm:$0xf]
  %v37 = vld [vmem:[%s1 + $0x18] sm:$0xf]
  %v38 = vld [vmem:[%s1 + $0x1c] sm:$0xf]
  %v39 = vld [vmem:[%s1 + $0x20] sm:$0xf]
  %v40 = vld [vmem:[%s1 + $0x24] sm:$0xf]
  %v41 = vld [vmem:[%s1 + $0x28] sm:$0xf]
  %v42 = vld [vmem:[%s1 + $0x2c] sm:$0xf]
  %v43 = vld [vmem:[%s1 + $0x30] sm:$0xf]
  %v44 = vld [vmem:[%s1 + $0x34] sm:$0xf]
  %v45 = vld [vmem:[%s1 + $0x38] sm:$0xf]
  %v46 = vld [vmem:[%s1 + $0x3c] sm:$0xf]
  %v51 = vunpack.c.l.b16 %v27
  %v52 = vunpack.c.l.b16 %v28
  %v53 = vunpack.c.l.b16 %v29
  %v54 = vunpack.c.l.b16 %v30
  %v55 = vpack.c.b16 %v52, %v51
  %v56 = vpack.c.b16 %v54, %v53
  %v75 = vunpack.c.l.b16 %v31
  %v76 = vunpack.c.l.b16 %v32
  %v77 = vunpack.c.l.b16 %v33
  %v78 = vunpack.c.l.b16 %v34
  %v79 = vunpack.c.l.b16 %v35
  %v80 = vunpack.c.l.b16 %v36
  %v81 = vunpack.c.l.b16 %v37
  %v82 = vunpack.c.l.b16 %v38
  %v83 = vunpack.c.l.b16 %v39
  %v84 = vunpack.c.l.b16 %v40
  %v85 = vunpack.c.l.b16 %v41
  %v86 = vunpack.c.l.b16 %v42
  %v87 = vunpack.c.l.b16 %v43
  %v88 = vunpack.c.l.b16 %v44
  %v89 = vunpack.c.l.b16 %v45
  %v90 = vunpack.c.l.b16 %v46
  %v91 = vpack.c.b16 %v76, %v75
  %v92 = vpack.c.b16 %v78, %v77
  %v93 = vpack.c.b16 %v80, %v79
  %v94 = vpack.c.b16 %v82, %v81
  %v95 = vpack.c.b16 %v84, %v83
  %v96 = vpack.c.b16 %v86, %v85
  %v97 = vpack.c.b16 %v88, %v87
  %v98 = vpack.c.b16 %v90, %v89
  %107 = vmatprep.subr.bf16.mxu0 0
  %108 = vmatpush1.bf16.msra.mxu0 %v98
  %109 = vmatprep.subr.bf16.mxu0 0
  %110 = vmatpush1.bf16.msra.mxu0 %v97
  %111 = vmatprep.subr.bf16.mxu0 0
  %112 = vmatpush1.bf16.msra.mxu0 %v96
  %113 = vmatprep.subr.bf16.mxu0 0
  %114 = vmatpush1.bf16.msra.mxu0 %v95
  %115 = vmatprep.subr.bf16.mxu0 0
  %116 = vmatpush1.bf16.msra.mxu0 %v94
  %117 = vmatprep.subr.bf16.mxu0 0
  %118 = vmatpush1.bf16.msra.mxu0 %v93
  %119 = vmatprep.subr.bf16.mxu0 0
  %120 = vmatpush1.bf16.msra.mxu0 %v92
  %121 = vmatprep.subr.bf16.mxu0 0
  %122 = vmatpush1.bf16.msra.mxu0 %v91
  %123 = vmatprep.subr.bf16.mxu0 0
  %124 = vmatpush2.bf16.msra.mxu0 0
  %125 = vmatprep.subr.bf16.mxu0 0
  %126 = vmatpush2.bf16.msra.mxu0 0
  %127 = vmatprep.subr.bf16.mxu0 0
  %128 = vmatpush2.bf16.msra.mxu0 0
  %129 = vmatprep.subr.bf16.mxu0 0
  %130 = vmatpush2.bf16.msra.mxu0 0
  %131 = vmatprep.subr.bf16.mxu0 0
  %132 = vmatpush2.bf16.msra.mxu0 0
  %133 = vmatprep.subr.bf16.mxu0 0
  %134 = vmatpush2.bf16.msra.mxu0 0
  %135 = vmatprep.subr.bf16.mxu0 0
  %136 = vmatpush2.bf16.msra.mxu0 0
  %137 = vmatprep.subr.bf16.mxu0 0
  %138 = vmatpush2.bf16.msra.mxu0 0
  %139 = vmatprep.mubr.bf16.mxu0 0
  %140 = vmatmul.mubr.bf16.gmra.mxu0 %v55
  %v141 = vpop.f32.mrf.mxu0
  %v142 = vadd.f32 0.0, %v141
  %v143 = vpop.f32.mrf.mxu0
  %v144 = vpop.f32.mrf.mxu0
  %v145 = vadd.f32 0.0, %v144
  %v146 = vpop.f32.mrf.mxu0
  %147 = vmatprep.mubr.bf16.mxu0 0
  %148 = vmatmul.mubr.bf16.gmra.mxu0 %v56
  %v149 = vpop.f32.mrf.mxu0
  %v150 = vadd.f32 0.0, %v149
  %v151 = vpop.f32.mrf.mxu0
  %v152 = vpop.f32.mrf.mxu0
  %v153 = vadd.f32 0.0, %v152
  %v154 = vpop.f32.mrf.mxu0
  %155 = vdwg.mxu0
  %v156 = vadd.f32 %v23, %v142
  %v157 = vadd.f32 %v24, %v145
  %v158 = vadd.f32 %v25, %v150
  %v159 = vadd.f32 %v26, %v153
  %160 = vst [vmem:[#allocation2] sm:$0xff] %v156
  %161 = vst [vmem:[#allocation2 + $0x8] sm:$0xff] %v157
  %162 = vst [vmem:[#allocation2 + $0x10] sm:$0xff] %v158
  %163 = vst [vmem:[#allocation2 + $0x18] sm:$0xff] %v159
  // Predicated region
  $region18: #{_lambda_.12} parent=0 // pred_check
    %p164 = pneg %p15
  $region19: #{_lambda_.12} parent=0 // pred_check_branch
    %166 = sbr.rel (%p164) target = $region21
  $region20: #{_lambda_.12} parent=0 // pred_region
    %v167 = vld [vmem:[#allocation2] sm:$0xff]
    %v168 = vld [vmem:[#allocation2 + $0x8] sm:$0xff]
    %v169 = vld [vmem:[#allocation2 + $0x10] sm:$0xff]
    %v170 = vld [vmem:[#allocation2 + $0x18] sm:$0xff]
    %v171 = vld [vmem:[%s2] sm:$0x1]
    %v173 = vlaneseq
    %v174 = vshrl.u32 %v173, 7
    %v175 = vsub.s32 0, %v174
    %v176 = vrot.slane %v171, %v175
    %v178 = vadd.f32 %v167, %v176
    %v179 = vadd.f32 %v168, %v176
    %v180 = vadd.f32 %v169, %v176
    %v181 = vadd.f32 %v170, %v176
    %v182 = vmul.f32 %v178, 0.5
    %v183 = vmul.f32 %v179, 0.5
    %v184 = vmul.f32 %v180, 0.5
    %v185 = vmul.f32 %v181, 0.5
    %v186 = vtanh.pop %v182
    %v187 = vtanh.pop %v183
    %v188 = vtanh.pop %v184
    %v189 = vtanh.pop %v185
    %v190 = vadd.f32 %v186, 1.0
    %v191 = vadd.f32 %v187, 1.0
    %v192 = vadd.f32 %v188, 1.0
    %v193 = vadd.f32 %v189, 1.0
    %v194 = vmul.f32 %v190, 0.5
    %v195 = vmul.f32 %v191, 0.5
    %v196 = vmul.f32 %v192, 0.5
    %v197 = vmul.f32 %v193, 0.5
    %v198 = vmul.f32 %v178, %v194
    %v199 = vmul.f32 %v179, %v195
    %v200 = vmul.f32 %v180, %v196
    %v201 = vmul.f32 %v181, %v197
    %v202 = vpack.c.bf16 %v199, %v198
    %v203 = vpack.c.bf16 %v201, %v200
    %v206 = vunpack.c.l.b16 %v202
    %v207 = vunpack.c.h.b16 %v202
    %v208 = vunpack.c.l.b16 %v203
    %v209 = vunpack.c.h.b16 %v203
    %v210 = vpack.c.b16 %v206, %v206
    %v211 = vpack.c.b16 %v207, %v207
    %v212 = vpack.c.b16 %v208, %v208
    %v213 = vpack.c.b16 %v209, %v209
    %218 = vst [vmem:[%s3] sm:$0xf] %v210
    %219 = vst [vmem:[%s3 + $0x4] sm:$0xf] %v211
    %220 = vst [vmem:[%s3 + $0x8] sm:$0xf] %v212
    %221 = vst [vmem:[%s3 + $0xc] sm:$0xf] %v213
  $region21: #{_lambda_.12} parent=0 // pred_fallthru
    _
  // Predicated region
  $region22: #{_lambda_.12} parent=0 // pred_check
    _
  $region23: #{_lambda_.12} parent=0 // pred_check_branch
    %223 = sbr.rel (0) target = $region25
  $region24: #{_lambda_.12} parent=0 // pred_region
    _
  $region25: #{_lambda_.12} parent=0 // pred_fallthru
    _
  // Predicated region
  $region26: #{_lambda_.12} parent=0 // pred_check
    _
  $region27: #{_lambda_.12} parent=0 // pred_check_branch
    %225 = sbr.rel (0) target = $region29
  $region28: #{_lambda_.12} parent=0 // pred_region
    _
  $region29: #{_lambda_.12} parent=0 // pred_fallthru
    _

// kernel: _lambda_.15
$region0: #{_lambda_.15}
  #allocation0 [shape = 'u32[]', space=smem, size = 0x4, offset = 0x4, fixed_abs, tag = 'smem constant byte address 0x4 - core index']
  #allocation1 [shape = 'u32[144,128]{1,0:T(1,128)}', space=vmem, size = 0x12000, scoped, tag = 'internal scratch']
  %s0 = inlined_call_operand.vmem [shape: bf16[2,6,6,128], index: 0, kind: input, shape index: {}]
  %s1 = inlined_call_operand.vmem [shape: f32[9,128], index: 1, kind: input, shape index: {}]
  %s2 = inlined_call_operand.vmem [shape: f32[1,128], index: 2, kind: input, shape index: {}]
  %s3 = inlined_call_operand.vmem [shape: bf16[2,4,4,128], index: 3, kind: output, shape index: {0}]
  %s4 = inlined_call_operand.vmem [shape: f32[2,1,128], index: 4, kind: output, shape index: {1}]
  %5 = xla_tuple %s3, %s4
  %s6 = sld [smem:[#allocation0]]
  $region53: #{_lambda_.15} parent=0
    _
  %s8 = ssub.s32 1, %s6
  %s9 = scalar_select 0, %s8, %s6
  loop: start=0, step=1, limit=4
  $region2: #{_lambda_.15} parent=0 // loop_pre_header
    _
  $region3: #{_lambda_.15} parent=0 // loop_header
    %s11 = sphi 0, %s15
    %p12 = scmp.ge.s32.totalorder %s11, 4
    %s21 = sphi 0, %s23
    %s24 = sphi 0, %s21
    %s25 = sphi 0, %s24
    %s41 = sphi 0, %s25
    %s45 = sphi 0, %s45
    %s47 = sphi 0, %s45
    %s48 = sphi 0, %s47
    %s62 = sphi 0, %s48
    %s66 = sphi 0, %s66
    %s68 = sphi 0, %s66
    %s69 = sphi 0, %s68
    %s83 = sphi 0, %s69
    %s89 = sphi 0, %s91
    %s92 = sphi 0, %s89
    %s93 = sphi 0, %s92
    %s109 = sphi 0, %s93
    %s115 = sphi 0, %s117
    %s118 = sphi 0, %s115
    %s119 = sphi 0, %s118
    %s135 = sphi 0, %s119
  $region4: #{_lambda_.15} parent=0 // loop_header_branch
    %14 = sbr.rel (%p12) target = $region8
  $region5: #{_lambda_.15} parent=0 // loop_body
    %s16 = ssub.s32 %s11, 1
    %s17 = ssub.s32 %s11, 2
    %s18 = sadd.s32 %s11, 1
    %s19 = ssub.s32 %s11, %s18
    %p20 = scmp.eq.s32.totalorder %s19, 0
    %s22 = sadd.s32 %s21, 1
    %s23 = scalar_select %p20, %s21, %s22
    %p26 = pneg %p20
    %p27 = scmp.eq.s32.totalorder %s11, 1
    %p28 = por %p26, %p27
    %p29 = scmp.ne.s32.totalorder %s21, %s24
    %p30 = scmp.eq.s32.totalorder %s11, 0
    %p31 = por %p29, %p30
    %p32 = scmp.ne.s32.totalorder %s21, %s24
    %p33 = scmp.eq.s32.totalorder %s16, 1
    %p34 = por %p32, %p33
    %p35 = scmp.ne.s32.totalorder %s24, %s25
    %p36 = scmp.eq.s32.totalorder %s16, 0
    %p37 = por %p35, %p36
    %p38 = scmp.ne.s32.totalorder %s24, %s25
    %p39 = scmp.eq.s32.totalorder %s17, 1
    %p40 = por %p38, %p39
    %p42 = scmp.ne.s32.totalorder %s25, %s41
    %p43 = scmp.eq.s32.totalorder %s17, 0
    %p44 = por %p42, %p43
    %s46 = sadd.s32 %s45, 1
    %p49 = scmp.eq.s32.totalorder %s11, 1
    %p50 = scmp.ne.s32.totalorder %s45, %s47
    %p51 = scmp.eq.s32.totalorder %s11, 0
    %p52 = por %p50, %p51
    %p53 = scmp.ne.s32.totalorder %s45, %s47
    %p54 = scmp.eq.s32.totalorder %s16, 1
    %p55 = por %p53, %p54
    %p56 = scmp.ne.s32.totalorder %s47, %s48
    %p57 = scmp.eq.s32.totalorder %s16, 0
    %p58 = por %p56, %p57
    %p59 = scmp.ne.s32.totalorder %s47, %s48
    %p60 = scmp.eq.s32.totalorder %s17, 1
    %p61 = por %p59, %p60
    %p63 = scmp.ne.s32.totalorder %s48, %s62
    %p64 = scmp.eq.s32.totalorder %s17, 0
    %p65 = por %p63, %p64
    %s67 = sadd.s32 %s66, 1
    %p70 = scmp.eq.s32.totalorder %s11, 1
    %p71 = scmp.ne.s32.totalorder %s66, %s68
    %p72 = scmp.eq.s32.totalorder %s11, 0
    %p73 = por %p71, %p72
    %p74 = scmp.ne.s32.totalorder %s66, %s68
    %p75 = scmp.eq.s32.totalorder %s16, 1
    %p76 = por %p74, %p75
    %p77 = scmp.ne.s32.totalorder %s68, %s69
    %p78 = scmp.eq.s32.totalorder %s16, 0
    %p79 = por %p77, %p78
    %p80 = scmp.ne.s32.totalorder %s68, %s69
    %p81 = scmp.eq.s32.totalorder %s17, 1
    %p82 = por %p80, %p81
    %p84 = scmp.ne.s32.totalorder %s69, %s83
    %p85 = scmp.eq.s32.totalorder %s17, 0
    %p86 = por %p84, %p85
    %s87 = ssub.s32 %s11, %s18
    %p88 = scmp.eq.s32.totalorder %s87, 0
    %s90 = sadd.s32 %s89, 1
    %s91 = scalar_select %p88, %s89, %s90
    %p94 = pneg %p88
    %p95 = scmp.eq.s32.totalorder %s11, 1
    %p96 = por %p94, %p95
    %p97 = scmp.ne.s32.totalorder %s89, %s92
    %p98 = scmp.eq.s32.totalorder %s11, 0
    %p99 = por %p97, %p98
    %p100 = scmp.ne.s32.totalorder %s89, %s92
    %p101 = scmp.eq.s32.totalorder %s16, 1
    %p102 = por %p100, %p101
    %p103 = scmp.ne.s32.totalorder %s92, %s93
    %p104 = scmp.eq.s32.totalorder %s16, 0
    %p105 = por %p103, %p104
    %p106 = scmp.ne.s32.totalorder %s92, %s93
    %p107 = scmp.eq.s32.totalorder %s17, 1
    %p108 = por %p106, %p107
    %p110 = scmp.ne.s32.totalorder %s93, %s109
    %p111 = scmp.eq.s32.totalorder %s17, 0
    %p112 = por %p110, %p111
    %s113 = ssub.s32 %s11, %s18
    %p114 = scmp.eq.s32.totalorder %s113, 0
    %s116 = sadd.s32 %s115, 1
    %s117 = scalar_select %p114, %s115, %s116
    %p120 = pneg %p114
    %p121 = scmp.eq.s32.totalorder %s11, 1
    %p122 = por %p120, %p121
    %p123 = scmp.ne.s32.totalorder %s115, %s118
    %p124 = scmp.eq.s32.totalorder %s11, 0
    %p125 = por %p123, %p124
    %p126 = scmp.ne.s32.totalorder %s115, %s118
    %p127 = scmp.eq.s32.totalorder %s16, 1
    %p128 = por %p126, %p127
    %p129 = scmp.ne.s32.totalorder %s118, %s119
    %p130 = scmp.eq.s32.totalorder %s16, 0
    %p131 = por %p129, %p130
    %p132 = scmp.ne.s32.totalorder %s118, %s119
    %p133 = scmp.eq.s32.totalorder %s17, 1
    %p134 = por %p132, %p133
    %p136 = scmp.ne.s32.totalorder %s119, %s135
    %p137 = scmp.eq.s32.totalorder %s17, 0
    %p138 = por %p136, %p137
    %p139 = scmp.le.s32.totalorder 1, %s11
    %p140 = scmp.lt.s32.totalorder %s11, 3
    %p141 = pnand %p139, %p140
    %p142 = pneg %p141
    // Predicated region
    $region9: #{_lambda_.15} parent=5 // pred_check
      _
    $region10: #{_lambda_.15} parent=5 // pred_check_branch
      %144 = sbr.rel (%p141) target = $region12
    $region11: #{_lambda_.15} parent=5 // pred_region
      %s145 = ssub.s32 %s11, 1
      // Predicated region
      $region13: #{_lambda_.15} parent=11 // pred_check
        %p146 = pneg %p58
      $region14: #{_lambda_.15} parent=11 // pred_check_branch
        %148 = sbr.rel (%p146) target = $region16
      $region15: #{_lambda_.15} parent=11 // pred_region
        _
      $region16: #{_lambda_.15} parent=11 // pred_fallthru
        _
      // Predicated region
      $region17: #{_lambda_.15} parent=11 // pred_check
        %p149 = pneg %p79
      $region18: #{_lambda_.15} parent=11 // pred_check_branch
        %151 = sbr.rel (%p149) target = $region20
      $region19: #{_lambda_.15} parent=11 // pred_region
        _
      $region20: #{_lambda_.15} parent=11 // pred_fallthru
        _
    $region12: #{_lambda_.15} parent=5 // pred_fallthru
      _
    %p152 = scmp.lt.s32.totalorder %s11, 2
    // Predicated region
    $region21: #{_lambda_.15} parent=5 // pred_check
      %p153 = pneg %p152
    $region22: #{_lambda_.15} parent=5 // pred_check_branch
      %155 = sbr.rel (%p153) target = $region24
    $region23: #{_lambda_.15} parent=5 // pred_region
      // Predicated region
      $region25: #{_lambda_.15} parent=23 // pred_check
        %p156 = pneg %p31
      $region26: #{_lambda_.15} parent=23 // pred_check_branch
        %158 = sbr.rel (%p156) target = $region28
      $region27: #{_lambda_.15} parent=23 // pred_region
        %p159 = scmp.lt.s32.totalorder %s11, 1
        %s160 = scalar_select %p159, %s11, 1
        %s161 = smul.addr %s160, 6
        %s162 = smul.addr %s161, 4
        %s163 = scalar_lea.vmem %s0, %s162
      $region28: #{_lambda_.15} parent=23 // pred_fallthru
        _
    $region24: #{_lambda_.15} parent=5 // pred_fallthru
      _
    %p164 = scmp.le.s32.totalorder 1, %s11
    %p165 = scmp.lt.s32.totalorder %s11, 3
    %p166 = pnand %p164, %p165
    %p167 = pneg %p166
    // Predicated region
    $region29: #{_lambda_.15} parent=5 // pred_check
      _
    $region30: #{_lambda_.15} parent=5 // pred_check_branch
      %169 = sbr.rel (%p166) target = $region32
    $region31: #{_lambda_.15} parent=5 // pred_region
      %s170 = ssub.s32 %s11, 1
      %p171 = scmp.lt.s32.totalorder %s16, 1
      %s172 = scalar_select %p171, %s16, 1
      %s173 = smul.addr %s172, 6
      %s174 = smul.addr %s173, 4
      %s175 = scalar_lea.vmem %s0, %s174
      %p176 = pneg %p37
      %p177 = pneg %p34
      %p178 = pneg %p58
      %p179 = pneg %p55
      %p180 = pneg %p79
      %p181 = pneg %p76
      %p182 = pneg %p105
      %p183 = pneg %p102
      %p184 = scmp.lt.s32.totalorder %s16, 1
      %s185 = scalar_select %p184, %s16, 1
      %s186 = smul.addr %s185, 4
      %s187 = smul.addr %s186, 2
      %s188 = scalar_lea.vmem %s3, %s187
      %p189 = pneg %p131
      %p190 = pneg %p128
      %p191 = scmp.lt.s32.totalorder %s16, 1
      %s192 = scalar_select %p191, %s16, 1
      %s193 = scalar_lea.vmem %s4, %s192
      %p194 = scmp.lt.s32.totalorder %s16, 1
      %s195 = scalar_select %p194, %s16, 1
      %s196 = smul.addr %s195, 6
      %s197 = smul.addr %s196, 4
      %s198 = scalar_lea.vmem %s0, %s197
      %p199 = scmp.lt.s32.totalorder %s16, 1
      %s200 = scalar_select %p199, %s16, 1
      %s201 = smul.addr %s200, 4
      %s202 = smul.addr %s201, 2
      %s203 = scalar_lea.vmem %s3, %s202
      %p204 = scmp.lt.s32.totalorder %s16, 1
      %s205 = scalar_select %p204, %s16, 1
      %s206 = scalar_lea.vmem %s4, %s205
      %v207 = vld [vmem:[%s198] sm:$0x7]
      %v208 = vld [vmem:[%s198 + $0x4] sm:$0x7]
      %v209 = vld [vmem:[%s198 + $0x8] sm:$0x7]
      %v210 = vld [vmem:[%s198 + $0xc] sm:$0x7]
      %v211 = vld [vmem:[%s198 + $0x10] sm:$0x7]
      %v212 = vld [vmem:[%s198 + $0x14] sm:$0x7]
      %v213 = vunpack.c.l.bf16 %v207
      %v214 = vunpack.c.l.bf16 %v208
      %v215 = vunpack.c.l.bf16 %v209
      %v216 = vunpack.c.l.bf16 %v210
      %v217 = vunpack.c.l.bf16 %v211
      %v218 = vunpack.c.l.bf16 %v212
      %v219 = vld [vmem:[%s1] sm:$0xff]
      %v220 = vld [vmem:[%s1 + $0x8] sm:$0x1]
      %v221 = vlaneseq
      %v222 = vshrl.u32 %v221, 7
      %v223 = vsub.s32 0, %v222
      %v224 = vrot.slane %v219, %v223
      %v225 = vmul.f32 %v213, %v224
      %v226 = vmul.f32 %v214, %v224
      %v227 = vmul.f32 %v215, %v224
      %v228 = vmul.f32 %v216, %v224
      %v229 = vadd.f32 %v225, 0.0
      %v230 = vadd.f32 %v226, 0.0
      %v231 = vadd.f32 %v227, 0.0
      %v232 = vadd.f32 %v228, 0.0
      %v233 = vlaneseq
      %v234 = vshrl.u32 %v233, 7
      %v235 = vsub.s32 1, %v234
      %v236 = vrot.slane %v219, %v235
      %v237 = vmul.f32 %v213, %v236
      %v238 = vmul.f32 %v214, %v236
      %v239 = vmul.f32 %v215, %v236
      %v240 = vmul.f32 %v216, %v236
      %v245 = vrot.slane %v237, 1
      %v246 = vrot.slane %v238, 1
      %v247 = vrot.slane %v239, 1
      %v248 = vrot.slane %v240, 1
      %v253 = vadd.f32 %v229, %v245
      %v254 = vadd.f32 %v230, %v246
      %v255 = vadd.f32 %v231, %v247
      %v256 = vadd.f32 %v232, %v248
      %v257 = vlaneseq
      %v258 = vshrl.u32 %v257, 7
      %v259 = vsub.s32 2, %v258
      %v260 = vrot.slane %v219, %v259
      %v261 = vmul.f32 %v213, %v260
      %v262 = vmul.f32 %v214, %v260
      %v263 = vmul.f32 %v215, %v260
      %v264 = vmul.f32 %v216, %v260
      %v269 = vrot.slane %v261, 2
      %v270 = vrot.slane %v262, 2
      %v271 = vrot.slane %v263, 2
      %v272 = vrot.slane %v264, 2
      %v277 = vadd.f32 %v253, %v269
      %v278 = vadd.f32 %v254, %v270
      %v279 = vadd.f32 %v255, %v271
      %v280 = vadd.f32 %v256, %v272
      %v281 = vlaneseq
      %v282 = vshrl.u32 %v281, 7
      %v283 = vsub.s32 3, %v282
      %v284 = vrot.slane %v219, %v283
      %v285 = vmul.f32 %v214, %v284
      %v286 = vmul.f32 %v215, %v284
      %v287 = vmul.f32 %v216, %v284
      %v288 = vmul.f32 %v217, %v284
      %v289 = vadd.f32 %v277, %v285
      %v290 = vadd.f32 %v278, %v286
      %v291 = vadd.f32 %v279, %v287
      %v292 = vadd.f32 %v280, %v288
      %v293 = vlaneseq
      %v294 = vshrl.u32 %v293, 7
      %v295 = vsub.s32 4, %v294
      %v296 = vrot.slane %v219, %v295
      %v297 = vmul.f32 %v214, %v296
      %v298 = vmul.f32 %v215, %v296
      %v299 = vmul.f32 %v216, %v296
      %v300 = vmul.f32 %v217, %v296
      %v305 = vrot.slane %v297, 1
      %v306 = vrot.slane %v298, 1
      %v307 = vrot.slane %v299, 1
      %v308 = vrot.slane %v300, 1
      %v313 = vadd.f32 %v289, %v305
      %v314 = vadd.f32 %v290, %v306
      %v315 = vadd.f32 %v291, %v307
      %v316 = vadd.f32 %v292, %v308
      %v317 = vlaneseq
      %v318 = vshrl.u32 %v317, 7
      %v319 = vsub.s32 5, %v318
      %v320 = vrot.slane %v219, %v319
      %v321 = vmul.f32 %v214, %v320
      %v322 = vmul.f32 %v215, %v320
      %v323 = vmul.f32 %v216, %v320
      %v324 = vmul.f32 %v217, %v320
      %v329 = vrot.slane %v321, 2
      %v330 = vrot.slane %v322, 2
      %v331 = vrot.slane %v323, 2
      %v332 = vrot.slane %v324, 2
      %v337 = vadd.f32 %v313, %v329
      %v338 = vadd.f32 %v314, %v330
      %v339 = vadd.f32 %v315, %v331
      %v340 = vadd.f32 %v316, %v332
      %v341 = vlaneseq
      %v342 = vshrl.u32 %v341, 7
      %v343 = vsub.s32 6, %v342
      %v344 = vrot.slane %v219, %v343
      %v345 = vmul.f32 %v215, %v344
      %v346 = vmul.f32 %v216, %v344
      %v347 = vmul.f32 %v217, %v344
      %v348 = vmul.f32 %v218, %v344
      %v349 = vadd.f32 %v337, %v345
      %v350 = vadd.f32 %v338, %v346
      %v351 = vadd.f32 %v339, %v347
      %v352 = vadd.f32 %v340, %v348
      %v353 = vlaneseq
      %v354 = vshrl.u32 %v353, 7
      %v355 = vsub.s32 7, %v354
      %v356 = vrot.slane %v219, %v355
      %v357 = vmul.f32 %v215, %v356
      %v358 = vmul.f32 %v216, %v356
      %v359 = vmul.f32 %v217, %v356
      %v360 = vmul.f32 %v218, %v356
      %v365 = vrot.slane %v357, 1
      %v366 = vrot.slane %v358, 1
      %v367 = vrot.slane %v359, 1
      %v368 = vrot.slane %v360, 1
      %v373 = vadd.f32 %v349, %v365
      %v374 = vadd.f32 %v350, %v366
      %v375 = vadd.f32 %v351, %v367
      %v376 = vadd.f32 %v352, %v368
      %v377 = vlaneseq
      %v378 = vshrl.u32 %v377, 7
      %v379 = vsub.s32 0, %v378
      %v380 = vrot.slane %v220, %v379
      %v381 = vmul.f32 %v215, %v380
      %v382 = vmul.f32 %v216, %v380
      %v383 = vmul.f32 %v217, %v380
      %v384 = vmul.f32 %v218, %v380
      %v389 = vrot.slane %v381, 2
      %v390 = vrot.slane %v382, 2
      %v391 = vrot.slane %v383, 2
      %v392 = vrot.slane %v384, 2
      %v397 = vadd.f32 %v373, %v389
      %v398 = vadd.f32 %v374, %v390
      %v399 = vadd.f32 %v375, %v391
      %v400 = vadd.f32 %v376, %v392
      %v401 = vld [vmem:[%s2] sm:$0x1]
      %v403 = vlaneseq
      %v404 = vshrl.u32 %v403, 7
      %v405 = vsub.s32 0, %v404
      %v406 = vrot.slane %v401, %v405
      %v408 = vadd.f32 %v397, %v406
      %v409 = vadd.f32 %v398, %v406
      %v410 = vadd.f32 %v399, %v406
      %v411 = vadd.f32 %v400, %v406
      %v412 = vmul.f32 %v408, 0.5
      %v413 = vmul.f32 %v409, 0.5
      %v414 = vmul.f32 %v410, 0.5
      %v415 = vmul.f32 %v411, 0.5
      %v416 = vtanh.pop %v412
      %v417 = vtanh.pop %v413
      %v418 = vtanh.pop %v414
      %v419 = vtanh.pop %v415
      %v420 = vadd.f32 %v416, 1.0
      %v421 = vadd.f32 %v417, 1.0
      %v422 = vadd.f32 %v418, 1.0
      %v423 = vadd.f32 %v419, 1.0
      %v424 = vmul.f32 %v420, 0.5
      %v425 = vmul.f32 %v421, 0.5
      %v426 = vmul.f32 %v422, 0.5
      %v427 = vmul.f32 %v423, 0.5
      %v428 = vmul.f32 %v408, %v424
      %v429 = vmul.f32 %v409, %v425
      %v430 = vmul.f32 %v410, %v426
      %v431 = vmul.f32 %v411, %v427
      %v432 = vpack.c.bf16 %v428, %v428
      %v433 = vpack.c.bf16 %v429, %v429
      %v434 = vpack.c.bf16 %v430, %v430
      %v435 = vpack.c.bf16 %v431, %v431
      %436 = vst [vmem:[%s203] sm:$0x3] %v432
      %437 = vst [vmem:[%s203 + $0x2] sm:$0x3] %v433
      %438 = vst [vmem:[%s203 + $0x4] sm:$0x3] %v434
      %439 = vst [vmem:[%s203 + $0x6] sm:$0x3] %v435
      %vm440 = vcmask 1043456
      %v441 = vsel %vm440, %v428, 0.0
      %v442 = vsel %vm440, %v429, 0.0
      %v443 = vadd.f32 %v441, %v442
      %v444 = vsel %vm440, %v430, 0.0
      %v445 = vadd.f32 %v443, %v444
      %v446 = vsel %vm440, %v431, 0.0
      %v447 = vadd.f32 %v445, %v446
      %v448 = vsel %vm440, %v447, 0.0
      %v449 = vrot.slane %v448, 4
      %v450 = vadd.f32 %v448, %v449
      %v451 = vrot.slane %v450, 2
      %v452 = vadd.f32 %v450, %v451
      %v453 = vrot.slane %v452, 1
      %v454 = vadd.f32 %v452, %v453
      %455 = vst [vmem:[%s206] sm:$0x1] %v454
      %p456 = scmp.lt.s32.totalorder %s16, 1
      %s457 = scalar_select %p456, %s16, 1
      %s458 = smul.addr %s457, 4
      %s459 = smul.addr %s458, 2
      %s460 = scalar_lea.vmem %s3, %s459
      %p461 = scmp.lt.s32.totalorder %s16, 1
      %s462 = scalar_select %p461, %s16, 1
      %s463 = scalar_lea.vmem %s4, %s462
      // Predicated region
      $region33: #{_lambda_.15} parent=31 // pred_check
        %p464 = pneg %p102
      $region34: #{_lambda_.15} parent=31 // pred_check_branch
        %466 = sbr.rel (%p464) target = $region36
      $region35: #{_lambda_.15} parent=31 // pred_region
        _
      $region36: #{_lambda_.15} parent=31 // pred_fallthru
        _
      // Predicated region
      $region37: #{_lambda_.15} parent=31 // pred_check
        %p467 = pneg %p128
      $region38: #{_lambda_.15} parent=31 // pred_check_branch
        %469 = sbr.rel (%p467) target = $region40
      $region39: #{_lambda_.15} parent=31 // pred_region
        _
      $region40: #{_lambda_.15} parent=31 // pred_fallthru
        _
    $region32: #{_lambda_.15} parent=5 // pred_fallthru
      _
    %p470 = scmp.le.s32.totalorder 2, %s11
    // Predicated region
    $region41: #{_lambda_.15} parent=5 // pred_check
      %p471 = pneg %p470
    $region42: #{_lambda_.15} parent=5 // pred_check_branch
      %473 = sbr.rel (%p471) target = $region44
    $region43: #{_lambda_.15} parent=5 // pred_region
      %s474 = ssub.s32 %s11, 2
      // Predicated region
      $region45: #{_lambda_.15} parent=43 // pred_check
        %p475 = pneg %p108
      $region46: #{_lambda_.15} parent=43 // pred_check_branch
        %477 = sbr.rel (%p475) target = $region48
      $region47: #{_lambda_.15} parent=43 // pred_region
        %p478 = scmp.lt.s32.totalorder %s17, 1
        %s479 = scalar_select %p478, %s17, 1
        %s480 = smul.addr %s479, 4
        %s481 = smul.addr %s480, 2
        %s482 = scalar_lea.vmem %s3, %s481
      $region48: #{_lambda_.15} parent=43 // pred_fallthru
        _
      // Predicated region
      $region49: #{_lambda_.15} parent=43 // pred_check
        %p483 = pneg %p134
      $region50: #{_lambda_.15} parent=43 // pred_check_branch
        %485 = sbr.rel (%p483) target = $region52
      $region51: #{_lambda_.15} parent=43 // pred_region
        %p486 = scmp.lt.s32.totalorder %s17, 1
        %s487 = scalar_select %p486, %s17, 1
        %s488 = scalar_lea.vmem %s4, %s487
      $region52: #{_lambda_.15} parent=43 // pred_fallthru
        _
    $region44: #{_lambda_.15} parent=5 // pred_fallthru
      _
  $region6: #{_lambda_.15} parent=0 // loop_footer
    %s15 = sadd.s32 1, %s11
  $region7: #{_lambda_.15} parent=0 // loop_footer_branch
    %10 = sbr.rel target = $region3
  $region8: #{_lambda_.15} parent=0 // loop_exit
    _

// kernel: _lambda_.18
$region0: #{_lambda_.18}
  #allocation0 [shape = 'u32[]', space=smem, size = 0x4, offset = 0x4, fixed_abs, tag = 'smem constant byte address 0x4 - core index']
  #allocation1 [shape = 'u32[144,128]{1,0:T(1,128)}', space=vmem, size = 0x12000, scoped, tag = 'internal scratch']
  #allocation2 [shape = 'f32[16,128]{1,0:T(8,128)}', space=vmem, size = 0x2000, scoped, tag = 'scratch operand']
  %s0 = inlined_call_operand.vmem [shape: bf16[2,16,128], index: 0, kind: input, shape index: {}]
  %s1 = inlined_call_operand.vmem [shape: bf16[128,128], index: 1, kind: input, shape index: {}]
  %s2 = inlined_call_operand.vmem [shape: f32[1,128], index: 2, kind: input, shape index: {}]
  %s3 = inlined_call_operand.vmem [shape: f32[2,1,128], index: 3, kind: output, shape index: {}]
  %s4 = sld [smem:[#allocation0]]
  $region53: #{_lambda_.18} parent=0
    _
  %s6 = ssub.s32 1, %s4
  %s7 = scalar_select 0, %s6, %s4
  loop: start=0, step=1, limit=4
  $region2: #{_lambda_.18} parent=0 // loop_pre_header
    _
  $region3: #{_lambda_.18} parent=0 // loop_header
    %s9 = sphi 0, %s13
    %p10 = scmp.ge.s32.totalorder %s9, 4
    %s16 = sphi 0, %s35
    %s17 = sphi 0, %s31
    %s18 = sphi 0, %s27
    %s19 = sphi 0, %s16
    %s20 = sphi 0, %s17
    %s21 = sphi 0, %s18
    %s22 = sphi 0, %s19
    %s23 = sphi 0, %s20
    %s24 = sphi 0, %s21
    %s40 = sphi 0, %s42
    %s43 = sphi 0, %s40
    %s44 = sphi 0, %s43
    %s60 = sphi 0, %s44
    %s68 = sphi 0, %s70
    %s71 = sphi 0, %s68
    %s72 = sphi 0, %s71
    %s88 = sphi 0, %s72
    %s94 = sphi 0, %s96
    %s97 = sphi 0, %s94
    %s98 = sphi 0, %s97
    %s114 = sphi 0, %s98
    %s122 = sphi 0, %s124
    %s125 = sphi 0, %s122
    %s126 = sphi 0, %s125
    %s142 = sphi 0, %s126
  $region4: #{_lambda_.18} parent=0 // loop_header_branch
    %12 = sbr.rel (%p10) target = $region8
  $region5: #{_lambda_.18} parent=0 // loop_body
    %s14 = ssub.s32 %s9, 1
    %s15 = ssub.s32 %s9, 2
    %s25 = sadd.s32 1, %s18
    %p26 = scmp.ge.s32.totalorder %s25, 1
    %s27 = scalar_select %p26, 0, %s25
    %s28 = sadd.s32 1, %s17
    %s29 = scalar_select %p26, %s28, %s17
    %p30 = scmp.ge.s32.totalorder %s29, 1
    %s31 = scalar_select %p30, 0, %s29
    %s32 = sadd.s32 1, %s16
    %s33 = scalar_select %p30, %s32, %s16
    %p34 = scmp.ge.s32.totalorder %s33, 2
    %s35 = scalar_select %p34, 0, %s33
    %s36 = ssub.s32 %s16, %s35
    %s37 = ssub.s32 %s18, %s27
    %s38 = sor.u32 %s36, %s37
    %p39 = scmp.eq.s32.totalorder %s38, 0
    %s41 = sadd.s32 %s40, 1
    %s42 = scalar_select %p39, %s40, %s41
    %p45 = pneg %p39
    %p46 = scmp.eq.s32.totalorder %s9, 1
    %p47 = por %p45, %p46
    %p48 = scmp.ne.s32.totalorder %s40, %s43
    %p49 = scmp.eq.s32.totalorder %s9, 0
    %p50 = por %p48, %p49
    %p51 = scmp.ne.s32.totalorder %s40, %s43
    %p52 = scmp.eq.s32.totalorder %s14, 1
    %p53 = por %p51, %p52
    %p54 = scmp.ne.s32.totalorder %s43, %s44
    %p55 = scmp.eq.s32.totalorder %s14, 0
    %p56 = por %p54, %p55
    %p57 = scmp.ne.s32.totalorder %s43, %s44
    %p58 = scmp.eq.s32.totalorder %s15, 1
    %p59 = por %p57, %p58
    %p61 = scmp.ne.s32.totalorder %s44, %s60
    %p62 = scmp.eq.s32.totalorder %s15, 0
    %p63 = por %p61, %p62
    %s64 = ssub.s32 %s18, %s27
    %s65 = ssub.s32 %s17, %s31
    %s66 = sor.u32 %s64, %s65
    %p67 = scmp.eq.s32.totalorder %s66, 0
    %s69 = sadd.s32 %s68, 1
    %s70 = scalar_select %p67, %s68, %s69
    %p73 = pneg %p67
    %p74 = scmp.eq.s32.totalorder %s9, 1
    %p75 = por %p73, %p74
    %p76 = scmp.ne.s32.totalorder %s68, %s71
    %p77 = scmp.eq.s32.totalorder %s9, 0
    %p78 = por %p76, %p77
    %p79 = scmp.ne.s32.totalorder %s68, %s71
    %p80 = scmp.eq.s32.totalorder %s14, 1
    %p81 = por %p79, %p80
    %p82 = scmp.ne.s32.totalorder %s71, %s72
    %p83 = scmp.eq.s32.totalorder %s14, 0
    %p84 = por %p82, %p83
    %p85 = scmp.ne.s32.totalorder %s71, %s72
    %p86 = scmp.eq.s32.totalorder %s15, 1
    %p87 = por %p85, %p86
    %p89 = scmp.ne.s32.totalorder %s72, %s88
    %p90 = scmp.eq.s32.totalorder %s15, 0
    %p91 = por %p89, %p90
    %s92 = ssub.s32 %s17, %s31
    %p93 = scmp.eq.s32.totalorder %s92, 0
    %s95 = sadd.s32 %s94, 1
    %s96 = scalar_select %p93, %s94, %s95
    %p99 = pneg %p93
    %p100 = scmp.eq.s32.totalorder %s9, 1
    %p101 = por %p99, %p100
    %p102 = scmp.ne.s32.totalorder %s94, %s97
    %p103 = scmp.eq.s32.totalorder %s9, 0
    %p104 = por %p102, %p103
    %p105 = scmp.ne.s32.totalorder %s94, %s97
    %p106 = scmp.eq.s32.totalorder %s14, 1
    %p107 = por %p105, %p106
    %p108 = scmp.ne.s32.totalorder %s97, %s98
    %p109 = scmp.eq.s32.totalorder %s14, 0
    %p110 = por %p108, %p109
    %p111 = scmp.ne.s32.totalorder %s97, %s98
    %p112 = scmp.eq.s32.totalorder %s15, 1
    %p113 = por %p111, %p112
    %p115 = scmp.ne.s32.totalorder %s98, %s114
    %p116 = scmp.eq.s32.totalorder %s15, 0
    %p117 = por %p115, %p116
    %s118 = ssub.s32 %s16, %s35
    %s119 = ssub.s32 %s17, %s31
    %s120 = sor.u32 %s118, %s119
    %p121 = scmp.eq.s32.totalorder %s120, 0
    %s123 = sadd.s32 %s122, 1
    %s124 = scalar_select %p121, %s122, %s123
    %p127 = pneg %p121
    %p128 = scmp.eq.s32.totalorder %s9, 1
    %p129 = por %p127, %p128
    %p130 = scmp.ne.s32.totalorder %s122, %s125
    %p131 = scmp.eq.s32.totalorder %s9, 0
    %p132 = por %p130, %p131
    %p133 = scmp.ne.s32.totalorder %s122, %s125
    %p134 = scmp.eq.s32.totalorder %s14, 1
    %p135 = por %p133, %p134
    %p136 = scmp.ne.s32.totalorder %s125, %s126
    %p137 = scmp.eq.s32.totalorder %s14, 0
    %p138 = por %p136, %p137
    %p139 = scmp.ne.s32.totalorder %s125, %s126
    %p140 = scmp.eq.s32.totalorder %s15, 1
    %p141 = por %p139, %p140
    %p143 = scmp.ne.s32.totalorder %s126, %s142
    %p144 = scmp.eq.s32.totalorder %s15, 0
    %p145 = por %p143, %p144
    %p146 = scmp.le.s32.totalorder 1, %s9
    %p147 = scmp.lt.s32.totalorder %s9, 3
    %p148 = pnand %p146, %p147
    %p149 = pneg %p148
    // Predicated region
    $region9: #{_lambda_.18} parent=5 // pred_check
      _
    $region10: #{_lambda_.18} parent=5 // pred_check_branch
      %151 = sbr.rel (%p148) target = $region12
    $region11: #{_lambda_.18} parent=5 // pred_region
      %s152 = ssub.s32 %s9, 1
      // Predicated region
      $region13: #{_lambda_.18} parent=11 // pred_check
        %p153 = pneg %p84
      $region14: #{_lambda_.18} parent=11 // pred_check_branch
        %155 = sbr.rel (%p153) target = $region16
      $region15: #{_lambda_.18} parent=11 // pred_region
        %s156 = smul.u32 16, %s21
        %p157 = scmp.lt.s32.totalorder %s156, 15
        %s158 = scalar_select %p157, %s156, 15
        %p159 = scmp.lt.s32.totalorder %s20, 0
        %s160 = scalar_select %p159, %s20, 0
        %s161 = sadd.s32 %s160, %s158
        %s162 = smul.addr %s161, 4
        %s163 = scalar_lea.vmem %s1, %s162
        %s164 = smul.u32 16, %s21
      $region16: #{_lambda_.18} parent=11 // pred_fallthru
        _
      // Predicated region
      $region17: #{_lambda_.18} parent=11 // pred_check
        %p165 = pneg %p110
      $region18: #{_lambda_.18} parent=11 // pred_check_branch
        %167 = sbr.rel (%p165) target = $region20
      $region19: #{_lambda_.18} parent=11 // pred_region
        %p168 = scmp.lt.s32.totalorder %s20, 0
        %s169 = scalar_select %p168, %s20, 0
        %s170 = scalar_lea.vmem %s2, %s169
      $region20: #{_lambda_.18} parent=11 // pred_fallthru
        _
    $region12: #{_lambda_.18} parent=5 // pred_fallthru
      _
    %p171 = scmp.lt.s32.totalorder %s9, 2
    // Predicated region
    $region21: #{_lambda_.18} parent=5 // pred_check
      %p172 = pneg %p171
    $region22: #{_lambda_.18} parent=5 // pred_check_branch
      %174 = sbr.rel (%p172) target = $region24
    $region23: #{_lambda_.18} parent=5 // pred_region
      // Predicated region
      $region25: #{_lambda_.18} parent=23 // pred_check
        %p175 = pneg %p50
      $region26: #{_lambda_.18} parent=23 // pred_check_branch
        %177 = sbr.rel (%p175) target = $region28
      $region27: #{_lambda_.18} parent=23 // pred_region
        %p178 = scmp.lt.s32.totalorder %s16, 1
        %s179 = scalar_select %p178, %s16, 1
        %p180 = scmp.lt.s32.totalorder %s18, 0
        %s181 = scalar_select %p180, %s18, 0
        %s182 = smul.addr %s179, 2
        %s183 = sadd.s32 %s181, %s182
        %s184 = smul.addr %s183, 4
        %s185 = scalar_lea.vmem %s0, %s184
      $region28: #{_lambda_.18} parent=23 // pred_fallthru
        _
    $region24: #{_lambda_.18} parent=5 // pred_fallthru
      _
    %p186 = scmp.le.s32.totalorder 1, %s9
    %p187 = scmp.lt.s32.totalorder %s9, 3
    %p188 = pnand %p186, %p187
    %p189 = pneg %p188
    // Predicated region
    $region29: #{_lambda_.18} parent=5 // pred_check
      _
    $region30: #{_lambda_.18} parent=5 // pred_check_branch
      %191 = sbr.rel (%p188) target = $region32
    $region31: #{_lambda_.18} parent=5 // pred_region
      %s192 = ssub.s32 %s9, 1
      %p193 = scmp.lt.s32.totalorder %s19, 1
      %s194 = scalar_select %p193, %s19, 1
      %p195 = scmp.lt.s32.totalorder %s21, 0
      %s196 = scalar_select %p195, %s21, 0
      %s197 = smul.addr %s194, 2
      %s198 = sadd.s32 %s196, %s197
      %s199 = smul.addr %s198, 4
      %s200 = scalar_lea.vmem %s0, %s199
      %p201 = pneg %p56
      %p202 = pneg %p53
      %s203 = smul.u32 16, %s21
      %p204 = scmp.lt.s32.totalorder %s203, 15
      %s205 = scalar_select %p204, %s203, 15
      %p206 = scmp.lt.s32.totalorder %s20, 0
      %s207 = scalar_select %p206, %s20, 0
      %s208 = sadd.s32 %s207, %s205
      %s209 = smul.addr %s208, 4
      %s210 = scalar_lea.vmem %s1, %s209
      %p211 = pneg %p84
      %p212 = pneg %p81
      %p213 = scmp.lt.s32.totalorder %s20, 0
      %s214 = scalar_select %p213, %s20, 0
      %s215 = scalar_lea.vmem %s2, %s214
      %p216 = pneg %p110
      %p217 = pneg %p107
      %p218 = pneg %p138
      %p219 = pneg %p135
      %p220 = scmp.lt.s32.totalorder %s19, 1
      %s221 = scalar_select %p220, %s19, 1
      %p222 = scmp.lt.s32.totalorder %s20, 0
      %s223 = scalar_select %p222, %s20, 0
      %s224 = sadd.s32 %s223, %s221
      %s225 = scalar_lea.vmem %s3, %s224
      %p226 = scmp.lt.s32.totalorder %s19, 1
      %s227 = scalar_select %p226, %s19, 1
      %p228 = scmp.lt.s32.totalorder %s21, 0
      %s229 = scalar_select %p228, %s21, 0
      %s230 = smul.addr %s227, 2
      %s231 = sadd.s32 %s229, %s230
      %s232 = smul.addr %s231, 4
      %s233 = scalar_lea.vmem %s0, %s232
      %s234 = smul.u32 16, %s21
      %p235 = scmp.lt.s32.totalorder %s234, 15
      %s236 = scalar_select %p235, %s234, 15
      %p237 = scmp.lt.s32.totalorder %s20, 0
      %s238 = scalar_select %p237, %s20, 0
      %s239 = sadd.s32 %s238, %s236
      %s240 = smul.addr %s239, 4
      %s241 = scalar_lea.vmem %s1, %s240
      %s242 = smul.u32 16, %s21
      %p243 = scmp.lt.s32.totalorder %s20, 0
      %s244 = scalar_select %p243, %s20, 0
      %s245 = scalar_lea.vmem %s2, %s244
      %p246 = scmp.lt.s32.totalorder %s19, 1
      %s247 = scalar_select %p246, %s19, 1
      %p248 = scmp.lt.s32.totalorder %s20, 0
      %s249 = scalar_select %p248, %s20, 0
      %s250 = sadd.s32 %s249, %s247
      %s251 = scalar_lea.vmem %s3, %s250
      %p253 = scmp.eq.s32.totalorder %s21, 0
      // Predicated region
      $region33: #{_lambda_.18} parent=31 // pred_check
        %p254 = pneg %p253
      $region34: #{_lambda_.18} parent=31 // pred_check_branch
        %256 = sbr.rel (%p254) target = $region36
      $region35: #{_lambda_.18} parent=31 // pred_region
        %257 = vst [vmem:[#allocation2] sm:$0xff] 0.0
        %258 = vst [vmem:[#allocation2 + $0x8] sm:$0xff] 0.0
      $region36: #{_lambda_.18} parent=31 // pred_fallthru
        _
      %v259 = vld [vmem:[#allocation2] sm:$0xff]
      %v260 = vld [vmem:[#allocation2 + $0x8] sm:$0xff]
      %v261 = vld [vmem:[%s233] sm:$0xf]
      %v262 = vld [vmem:[%s233 + $0x4] sm:$0xf]
      %v263 = vld [vmem:[%s241] sm:$0xf]
      %v264 = vld [vmem:[%s241 + $0x4] sm:$0xf]
      %v265 = vld [vmem:[%s241 + $0x8] sm:$0xf]
      %v266 = vld [vmem:[%s241 + $0xc] sm:$0xf]
      %v267 = vld [vmem:[%s241 + $0x10] sm:$0xf]
      %v268 = vld [vmem:[%s241 + $0x14] sm:$0xf]
      %v269 = vld [vmem:[%s241 + $0x18] sm:$0xf]
      %v270 = vld [vmem:[%s241 + $0x1c] sm:$0xf]
      %v271 = vld [vmem:[%s241 + $0x20] sm:$0xf]
      %v272 = vld [vmem:[%s241 + $0x24] sm:$0xf]
      %v273 = vld [vmem:[%s241 + $0x28] sm:$0xf]
      %v274 = vld [vmem:[%s241 + $0x2c] sm:$0xf]
      %v275 = vld [vmem:[%s241 + $0x30] sm:$0xf]
      %v276 = vld [vmem:[%s241 + $0x34] sm:$0xf]
      %v277 = vld [vmem:[%s241 + $0x38] sm:$0xf]
      %v278 = vld [vmem:[%s241 + $0x3c] sm:$0xf]
      %v281 = vunpack.c.l.b16 %v261
      %v282 = vunpack.c.l.b16 %v262
      %v283 = vpack.c.b16 %v282, %v281
      %v301 = vunpack.c.l.b16 %v263
      %v302 = vunpack.c.l.b16 %v264
      %v303 = vunpack.c.l.b16 %v265
      %v304 = vunpack.c.l.b16 %v266
      %v305 = vunpack.c.l.b16 %v267
      %v306 = vunpack.c.l.b16 %v268
      %v307 = vunpack.c.l.b16 %v269
      %v308 = vunpack.c.l.b16 %v270
      %v309 = vunpack.c.l.b16 %v271
      %v310 = vunpack.c.l.b16 %v272
      %v311 = vunpack.c.l.b16 %v273
      %v312 = vunpack.c.l.b16 %v274
      %v313 = vunpack.c.l.b16 %v275
      %v314 = vunpack.c.l.b16 %v276
      %v315 = vunpack.c.l.b16 %v277
      %v316 = vunpack.c.l.b16 %v278
      %v317 = vpack.c.b16 %v302, %v301
      %v318 = vpack.c.b16 %v304, %v303
      %v319 = vpack.c.b16 %v306, %v305
      %v320 = vpack.c.b16 %v308, %v307
      %v321 = vpack.c.b16 %v310, %v309
      %v322 = vpack.c.b16 %v312, %v311
      %v323 = vpack.c.b16 %v314, %v313
      %v324 = vpack.c.b16 %v316, %v315
      %333 = vmatprep.subr.bf16.mxu0 0
      %334 = vmatpush1.bf16.msra.mxu0 %v324
      %335 = vmatprep.subr.bf16.mxu0 0
      %336 = vmatpush1.bf16.msra.mxu0 %v323
      %337 = vmatprep.subr.bf16.mxu0 0
      %338 = vmatpush1.bf16.msra.mxu0 %v322
      %339 = vmatprep.subr.bf16.mxu0 0
      %340 = vmatpush1.bf16.msra.mxu0 %v321
      %341 = vmatprep.subr.bf16.mxu0 0
      %342 = vmatpush1.bf16.msra.mxu0 %v320
      %343 = vmatprep.subr.bf16.mxu0 0
      %344 = vmatpush1.bf16.msra.mxu0 %v319
      %345 = vmatprep.subr.bf16.mxu0 0
      %346 = vmatpush1.bf16.msra.mxu0 %v318
      %347 = vmatprep.subr.bf16.mxu0 0
      %348 = vmatpush1.bf16.msra.mxu0 %v317
      %349 = vmatprep.subr.bf16.mxu0 0
      %350 = vmatpush2.bf16.msra.mxu0 0
      %351 = vmatprep.subr.bf16.mxu0 0
      %352 = vmatpush2.bf16.msra.mxu0 0
      %353 = vmatprep.subr.bf16.mxu0 0
      %354 = vmatpush2.bf16.msra.mxu0 0
      %355 = vmatprep.subr.bf16.mxu0 0
      %356 = vmatpush2.bf16.msra.mxu0 0
      %357 = vmatprep.subr.bf16.mxu0 0
      %358 = vmatpush2.bf16.msra.mxu0 0
      %359 = vmatprep.subr.bf16.mxu0 0
      %360 = vmatpush2.bf16.msra.mxu0 0
      %361 = vmatprep.subr.bf16.mxu0 0
      %362 = vmatpush2.bf16.msra.mxu0 0
      %363 = vmatprep.subr.bf16.mxu0 0
      %364 = vmatpush2.bf16.msra.mxu0 0
      %365 = vmatprep.mubr.bf16.mxu0 0
      %366 = vmatmul.mubr.bf16.gmra.mxu0 %v283
      %v367 = vpop.f32.mrf.mxu0
      %v368 = vadd.f32 0.0, %v367
      %v369 = vpop.f32.mrf.mxu0
      %v370 = vpop.f32.mrf.mxu0
      %v371 = vadd.f32 0.0, %v370
      %v372 = vpop.f32.mrf.mxu0
      %373 = vdwg.mxu0
      %v374 = vadd.f32 %v259, %v368
      %v375 = vadd.f32 %v260, %v371
      %376 = vst [vmem:[#allocation2] sm:$0xff] %v374
      %377 = vst [vmem:[#allocation2 + $0x8] sm:$0xff] %v375
      // Predicated region
      $region37: #{_lambda_.18} parent=31 // pred_check
        %p378 = pneg %p253
      $region38: #{_lambda_.18} parent=31 // pred_check_branch
        %380 = sbr.rel (%p378) target = $region40
      $region39: #{_lambda_.18} parent=31 // pred_region
        %v381 = vld [vmem:[#allocation2] sm:$0xff]
        %v382 = vld [vmem:[#allocation2 + $0x8] sm:$0xff]
        %v383 = vld [vmem:[%s245] sm:$0x1]
        %v385 = vlaneseq
        %v386 = vshrl.u32 %v385, 7
        %v387 = vsub.s32 0, %v386
        %v388 = vrot.slane %v383, %v387
        %v390 = vadd.f32 %v381, %v388
        %v391 = vadd.f32 %v382, %v388
        %v392 = vmul.f32 %v390, 0.5
        %v393 = vmul.f32 %v391, 0.5
        %v394 = vtanh.pop %v392
        %v395 = vtanh.pop %v393
        %v396 = vadd.f32 %v394, 1.0
        %v397 = vadd.f32 %v395, 1.0
        %v398 = vmul.f32 %v396, 0.5
        %v399 = vmul.f32 %v397, 0.5
        %v400 = vmul.f32 %v390, %v398
        %v401 = vmul.f32 %v391, %v399
        %v402 = vadd.f32 %v400, %v401
        %v403 = vrot.slane %v402, 4
        %v404 = vadd.f32 %v402, %v403
        %v405 = vrot.slane %v404, 2
        %v406 = vadd.f32 %v404, %v405
        %v407 = vrot.slane %v406, 1
        %v408 = vadd.f32 %v406, %v407
        %v409 = vmul.f32 %v408, 0.0625
        %410 = vst [vmem:[%s251] sm:$0x1] %v409
      $region40: #{_lambda_.18} parent=31 // pred_fallthru
        _
      %p411 = scmp.lt.s32.totalorder %s19, 1
      %s412 = scalar_select %p411, %s19, 1
      %p413 = scmp.lt.s32.totalorder %s20, 0
      %s414 = scalar_select %p413, %s20, 0
      %s415 = sadd.s32 %s414, %s412
      %s416 = scalar_lea.vmem %s3, %s415
      // Predicated region
      $region41: #{_lambda_.18} parent=31 // pred_check
        %p417 = pneg %p135
      $region42: #{_lambda_.18} parent=31 // pred_check_branch
        %419 = sbr.rel (%p417) target = $region44
      $region43: #{_lambda_.18} parent=31 // pred_region
        _
      $region44: #{_lambda_.18} parent=31 // pred_fallthru
        _
    $region32: #{_lambda_.18} parent=5 // pred_fallthru
      _
    %p420 = scmp.le.s32.totalorder 2, %s9
    // Predicated region
    $region45: #{_lambda_.18} parent=5 // pred_check
      %p421 = pneg %p420
    $region46: #{_lambda_.18} parent=5 // pred_check_branch
      %423 = sbr.rel (%p421) target = $region48
    $region47: #{_lambda_.18} parent=5 // pred_region
      %s424 = ssub.s32 %s9, 2
      // Predicated region
      $region49: #{_lambda_.18} parent=47 // pred_check
        %p425 = pneg %p141
      $region50: #{_lambda_.18} parent=47 // pred_check_branch
        %427 = sbr.rel (%p425) target = $region52
      $region51: #{_lambda_.18} parent=47 // pred_region
        %p428 = scmp.lt.s32.totalorder %s22, 1
        %s429 = scalar_select %p428, %s22, 1
        %p430 = scmp.lt.s32.totalorder %s23, 0
        %s431 = scalar_select %p430, %s23, 0
        %s432 = sadd.s32 %s431, %s429
        %s433 = scalar_lea.vmem %s3, %s432
      $region52: #{_lambda_.18} parent=47 // pred_fallthru
        _
    $region48: #{_lambda_.18} parent=5 // pred_fallthru
      _
  $region6: #{_lambda_.18} parent=0 // loop_footer
    %s13 = sadd.s32 1, %s9
  $region7: #{_lambda_.18} parent=0 // loop_footer_branch
    %8 = sbr.rel target = $region3
  $region8: #{_lambda_.18} parent=0 // loop_exit
    _

// kernel: _lambda_.16
$region0: #{_lambda_.16}
  #allocation0 [shape = 'u32[]', space=smem, size = 0x4, offset = 0x4, fixed_abs, tag = 'smem constant byte address 0x4 - core index']
  #allocation1 [shape = 'u32[144,128]{1,0:T(1,128)}', space=vmem, size = 0x12000, scoped, tag = 'internal scratch']
  %s0 = inlined_call_operand.vmem [shape: f32[2,128], index: 0, kind: input, shape index: {}]
  %s1 = inlined_call_operand.vmem [shape: f32[128,128], index: 1, kind: input, shape index: {}]
  %s2 = inlined_call_operand.vmem [shape: f32[1,128], index: 2, kind: input, shape index: {}]
  %s3 = inlined_call_operand.vmem [shape: f32[128,128], index: 3, kind: input, shape index: {}]
  %s4 = inlined_call_operand.vmem [shape: f32[1,128], index: 4, kind: input, shape index: {}]
  %s5 = inlined_call_operand.vmem [shape: bf16[2,128], index: 5, kind: output, shape index: {}]
  %s6 = sld [smem:[#allocation0]]
  $region30: #{_lambda_.16} parent=0
    _
  %s8 = ssub.s32 1, %s6
  %s9 = scalar_select 0, %s8, %s6
  // Predicated region
  $region2: #{_lambda_.16} parent=0 // pred_check
    _
  $region3: #{_lambda_.16} parent=0 // pred_check_branch
    %11 = sbr.rel (0) target = $region5
  $region4: #{_lambda_.16} parent=0 // pred_region
    _
  $region5: #{_lambda_.16} parent=0 // pred_fallthru
    _
  // Predicated region
  $region6: #{_lambda_.16} parent=0 // pred_check
    _
  $region7: #{_lambda_.16} parent=0 // pred_check_branch
    %13 = sbr.rel (0) target = $region9
  $region8: #{_lambda_.16} parent=0 // pred_region
    _
  $region9: #{_lambda_.16} parent=0 // pred_fallthru
    _
  // Predicated region
  $region10: #{_lambda_.16} parent=0 // pred_check
    _
  $region11: #{_lambda_.16} parent=0 // pred_check_branch
    %15 = sbr.rel (0) target = $region13
  $region12: #{_lambda_.16} parent=0 // pred_region
    _
  $region13: #{_lambda_.16} parent=0 // pred_fallthru
    _
  // Predicated region
  $region14: #{_lambda_.16} parent=0 // pred_check
    _
  $region15: #{_lambda_.16} parent=0 // pred_check_branch
    %17 = sbr.rel (0) target = $region17
  $region16: #{_lambda_.16} parent=0 // pred_region
    _
  $region17: #{_lambda_.16} parent=0 // pred_fallthru
    _
  // Predicated region
  $region18: #{_lambda_.16} parent=0 // pred_check
    _
  $region19: #{_lambda_.16} parent=0 // pred_check_branch
    %19 = sbr.rel (0) target = $region21
  $region20: #{_lambda_.16} parent=0 // pred_region
    _
  $region21: #{_lambda_.16} parent=0 // pred_fallthru
    _
  %v20 = vld [vmem:[%s0] sm:$0x3]
  %v21 = vmul.f32 %v20, 0.0625
  %v22 = vld [vmem:[%s1] sm:$0xff]
  %v23 = vld [vmem:[%s1 + $0x8] sm:$0xff]
  %v24 = vld [vmem:[%s1 + $0x10] sm:$0xff]
  %v25 = vld [vmem:[%s1 + $0x18] sm:$0xff]
  %v26 = vld [vmem:[%s1 + $0x20] sm:$0xff]
  %v27 = vld [vmem:[%s1 + $0x28] sm:$0xff]
  %v28 = vld [vmem:[%s1 + $0x30] sm:$0xff]
  %v29 = vld [vmem:[%s1 + $0x38] sm:$0xff]
  %v30 = vld [vmem:[%s1 + $0x40] sm:$0xff]
  %v31 = vld [vmem:[%s1 + $0x48] sm:$0xff]
  %v32 = vld [vmem:[%s1 + $0x50] sm:$0xff]
  %v33 = vld [vmem:[%s1 + $0x58] sm:$0xff]
  %v34 = vld [vmem:[%s1 + $0x60] sm:$0xff]
  %v35 = vld [vmem:[%s1 + $0x68] sm:$0xff]
  %v36 = vld [vmem:[%s1 + $0x70] sm:$0xff]
  %v37 = vld [vmem:[%s1 + $0x78] sm:$0xff]
  %v38 = vld [vmem:[%s2] sm:$0x1]
  %v40 = vlaneseq
  %v41 = vshrl.u32 %v40, 7
  %v42 = vsub.s32 0, %v41
  %v43 = vrot.slane %v38, %v42
  %45 = vmatprep.subr.mxu0 0.0
  %46 = vmatpush1.msra.mxu0 %v37
  %47 = vmatprep.subr.mxu0 0.0
  %48 = vmatpush1.msra.mxu0 %v36
  %49 = vmatprep.subr.mxu0 0.0
  %50 = vmatpush1.msra.mxu0 %v35
  %51 = vmatprep.subr.mxu0 0.0
  %52 = vmatpush1.msra.mxu0 %v34
  %53 = vmatprep.subr.mxu0 0.0
  %54 = vmatpush1.msra.mxu0 %v33
  %55 = vmatprep.subr.mxu0 0.0
  %56 = vmatpush1.msra.mxu0 %v32
  %57 = vmatprep.subr.mxu0 0.0
  %58 = vmatpush1.msra.mxu0 %v31
  %59 = vmatprep.subr.mxu0 0.0
  %60 = vmatpush1.msra.mxu0 %v30
  %61 = vmatprep.subr.mxu0 0.0
  %62 = vmatpush1.msra.mxu0 %v29
  %63 = vmatprep.subr.mxu0 0.0
  %64 = vmatpush1.msra.mxu0 %v28
  %65 = vmatprep.subr.mxu0 0.0
  %66 = vmatpush1.msra.mxu0 %v27
  %67 = vmatprep.subr.mxu0 0.0
  %68 = vmatpush1.msra.mxu0 %v26
  %69 = vmatprep.subr.mxu0 0.0
  %70 = vmatpush1.msra.mxu0 %v25
  %71 = vmatprep.subr.mxu0 0.0
  %72 = vmatpush1.msra.mxu0 %v24
  %73 = vmatprep.subr.mxu0 0.0
  %74 = vmatpush1.msra.mxu0 %v23
  %75 = vmatprep.subr.mxu0 0.0
  %76 = vmatpush1.msra.mxu0 %v22
  %77 = vmatprep.subr.mxu0 0.0
  %78 = vmatpush2.msra.mxu0 0.0
  %79 = vmatprep.subr.mxu0 0.0
  %80 = vmatpush2.msra.mxu0 0.0
  %81 = vmatprep.subr.mxu0 0.0
  %82 = vmatpush2.msra.mxu0 0.0
  %83 = vmatprep.subr.mxu0 0.0
  %84 = vmatpush2.msra.mxu0 0.0
  %85 = vmatprep.subr.mxu0 0.0
  %86 = vmatpush2.msra.mxu0 0.0
  %87 = vmatprep.subr.mxu0 0.0
  %88 = vmatpush2.msra.mxu0 0.0
  %89 = vmatprep.subr.mxu0 0.0
  %90 = vmatpush2.msra.mxu0 0.0
  %91 = vmatprep.subr.mxu0 0.0
  %92 = vmatpush2.msra.mxu0 0.0
  %93 = vmatprep.subr.mxu0 0.0
  %94 = vmatpush2.msra.mxu0 0.0
  %95 = vmatprep.subr.mxu0 0.0
  %96 = vmatpush2.msra.mxu0 0.0
  %97 = vmatprep.subr.mxu0 0.0
  %98 = vmatpush2.msra.mxu0 0.0
  %99 = vmatprep.subr.mxu0 0.0
  %100 = vmatpush2.msra.mxu0 0.0
  %101 = vmatprep.subr.mxu0 0.0
  %102 = vmatpush2.msra.mxu0 0.0
  %103 = vmatprep.subr.mxu0 0.0
  %104 = vmatpush2.msra.mxu0 0.0
  %105 = vmatprep.subr.mxu0 0.0
  %106 = vmatpush2.msra.mxu0 0.0
  %107 = vmatprep.subr.mxu0 0.0
  %108 = vmatpush2.msra.mxu0 0.0
  %109 = vmatprep.mubr.f32.mxu0 0.0
  %110 = vmatmul.mubr.f32.gmra.mxu0 %v21
  %v111 = vpop.f32.mrf.mxu0
  %v112 = vadd.f32 %v43, %v111
  %v113 = vpop.f32.mrf.mxu0
  %114 = vdwg.mxu0
  %v115 = vmul.f32 %v112, 0.5
  %v116 = vtanh.pop %v115
  %v117 = vadd.f32 %v116, 1.0
  %v118 = vmul.f32 %v117, 0.5
  %v119 = vmul.f32 %v112, %v118
  %v120 = vld [vmem:[%s3] sm:$0xff]
  %v121 = vld [vmem:[%s3 + $0x8] sm:$0xff]
  %v122 = vld [vmem:[%s3 + $0x10] sm:$0xff]
  %v123 = vld [vmem:[%s3 + $0x18] sm:$0xff]
  %v124 = vld [vmem:[%s3 + $0x20] sm:$0xff]
  %v125 = vld [vmem:[%s3 + $0x28] sm:$0xff]
  %v126 = vld [vmem:[%s3 + $0x30] sm:$0xff]
  %v127 = vld [vmem:[%s3 + $0x38] sm:$0xff]
  %v128 = vld [vmem:[%s3 + $0x40] sm:$0xff]
  %v129 = vld [vmem:[%s3 + $0x48] sm:$0xff]
  %v130 = vld [vmem:[%s3 + $0x50] sm:$0xff]
  %v131 = vld [vmem:[%s3 + $0x58] sm:$0xff]
  %v132 = vld [vmem:[%s3 + $0x60] sm:$0xff]
  %v133 = vld [vmem:[%s3 + $0x68] sm:$0xff]
  %v134 = vld [vmem:[%s3 + $0x70] sm:$0xff]
  %v135 = vld [vmem:[%s3 + $0x78] sm:$0xff]
  %v136 = vld [vmem:[%s4] sm:$0x1]
  %v138 = vlaneseq
  %v139 = vshrl.u32 %v138, 7
  %v140 = vsub.s32 0, %v139
  %v141 = vrot.slane %v136, %v140
  %143 = vmatprep.subr.mxu0 0.0
  %144 = vmatpush1.msra.mxu0 %v135
  %145 = vmatprep.subr.mxu0 0.0
  %146 = vmatpush1.msra.mxu0 %v134
  %147 = vmatprep.subr.mxu0 0.0
  %148 = vmatpush1.msra.mxu0 %v133
  %149 = vmatprep.subr.mxu0 0.0
  %150 = vmatpush1.msra.mxu0 %v132
  %151 = vmatprep.subr.mxu0 0.0
  %152 = vmatpush1.msra.mxu0 %v131
  %153 = vmatprep.subr.mxu0 0.0
  %154 = vmatpush1.msra.mxu0 %v130
  %155 = vmatprep.subr.mxu0 0.0
  %156 = vmatpush1.msra.mxu0 %v129
  %157 = vmatprep.subr.mxu0 0.0
  %158 = vmatpush1.msra.mxu0 %v128
  %159 = vmatprep.subr.mxu0 0.0
  %160 = vmatpush1.msra.mxu0 %v127
  %161 = vmatprep.subr.mxu0 0.0
  %162 = vmatpush1.msra.mxu0 %v126
  %163 = vmatprep.subr.mxu0 0.0
  %164 = vmatpush1.msra.mxu0 %v125
  %165 = vmatprep.subr.mxu0 0.0
  %166 = vmatpush1.msra.mxu0 %v124
  %167 = vmatprep.subr.mxu0 0.0
  %168 = vmatpush1.msra.mxu0 %v123
  %169 = vmatprep.subr.mxu0 0.0
  %170 = vmatpush1.msra.mxu0 %v122
  %171 = vmatprep.subr.mxu0 0.0
  %172 = vmatpush1.msra.mxu0 %v121
  %173 = vmatprep.subr.mxu0 0.0
  %174 = vmatpush1.msra.mxu0 %v120
  %175 = vmatprep.subr.mxu0 0.0
  %176 = vmatpush2.msra.mxu0 0.0
  %177 = vmatprep.subr.mxu0 0.0
  %178 = vmatpush2.msra.mxu0 0.0
  %179 = vmatprep.subr.mxu0 0.0
  %180 = vmatpush2.msra.mxu0 0.0
  %181 = vmatprep.subr.mxu0 0.0
  %182 = vmatpush2.msra.mxu0 0.0
  %183 = vmatprep.subr.mxu0 0.0
  %184 = vmatpush2.msra.mxu0 0.0
  %185 = vmatprep.subr.mxu0 0.0
  %186 = vmatpush2.msra.mxu0 0.0
  %187 = vmatprep.subr.mxu0 0.0
  %188 = vmatpush2.msra.mxu0 0.0
  %189 = vmatprep.subr.mxu0 0.0
  %190 = vmatpush2.msra.mxu0 0.0
  %191 = vmatprep.subr.mxu0 0.0
  %192 = vmatpush2.msra.mxu0 0.0
  %193 = vmatprep.subr.mxu0 0.0
  %194 = vmatpush2.msra.mxu0 0.0
  %195 = vmatprep.subr.mxu0 0.0
  %196 = vmatpush2.msra.mxu0 0.0
  %197 = vmatprep.subr.mxu0 0.0
  %198 = vmatpush2.msra.mxu0 0.0
  %199 = vmatprep.subr.mxu0 0.0
  %200 = vmatpush2.msra.mxu0 0.0
  %201 = vmatprep.subr.mxu0 0.0
  %202 = vmatpush2.msra.mxu0 0.0
  %203 = vmatprep.subr.mxu0 0.0
  %204 = vmatpush2.msra.mxu0 0.0
  %205 = vmatprep.subr.mxu0 0.0
  %206 = vmatpush2.msra.mxu0 0.0
  %207 = vmatprep.mubr.f32.mxu0 0.0
  %208 = vmatmul.mubr.f32.gmra.mxu0 %v119
  %v209 = vpop.f32.mrf.mxu0
  %v210 = vadd.f32 %v141, %v209
  %v211 = vpop.f32.mrf.mxu0
  %212 = vdwg.mxu0
  %v213 = vmul.f32 %v210, 0.5
  %v214 = vtanh.pop %v213
  %v215 = vadd.f32 %v214, 1.0
  %v216 = vmul.f32 %v215, 0.5
  %v217 = vpack.c.bf16 %v216, %v216
  %218 = vst [vmem:[%s5] sm:$0x1] %v217
  // Predicated region
  $region22: #{_lambda_.16} parent=0 // pred_check
    _
  $region23: #{_lambda_.16} parent=0 // pred_check_branch
    %220 = sbr.rel (0) target = $region25
  $region24: #{_lambda_.16} parent=0 // pred_region
    _
  $region25: #{_lambda_.16} parent=0 // pred_fallthru
    _
  // Predicated region
  $region26: #{_lambda_.16} parent=0 // pred_check
    _
  $region27: #{_lambda_.16} parent=0 // pred_check_branch
    %222 = sbr.rel (0) target = $region29
  $region28: #{_lambda_.16} parent=0 // pred_region
    _
  $region29: #{_lambda_.16} parent=0 // pred_fallthru
    _

// kernel: _lambda_.17
$region0: #{_lambda_.17}
  #allocation0 [shape = 'u32[]', space=smem, size = 0x4, offset = 0x4, fixed_abs, tag = 'smem constant byte address 0x4 - core index']
  #allocation1 [shape = 'u32[144,128]{1,0:T(1,128)}', space=vmem, size = 0x12000, scoped, tag = 'internal scratch']
  #allocation2 [shape = 'f32[16,128]{1,0:T(8,128)}', space=vmem, size = 0x2000, scoped, tag = 'scratch operand']
  %s0 = inlined_call_operand.vmem [shape: bf16[2,16,128], index: 0, kind: input, shape index: {}]
  %s1 = inlined_call_operand.vmem [shape: bf16[2,1,128], index: 1, kind: input, shape index: {}]
  %s2 = inlined_call_operand.vmem [shape: bf16[128,128], index: 2, kind: input, shape index: {}]
  %s3 = inlined_call_operand.vmem [shape: f32[1,128], index: 3, kind: input, shape index: {}]
  %s4 = inlined_call_operand.vmem [shape: bf16[2,16,128], index: 4, kind: input, shape index: {}]
  %s5 = inlined_call_operand.vmem [shape: bf16[2,16,128], index: 5, kind: output, shape index: {}]
  %s6 = sld [smem:[#allocation0]]
  $region61: #{_lambda_.17} parent=0
    _
  %s8 = ssub.s32 1, %s6
  %s9 = scalar_select 0, %s8, %s6
  loop: start=0, step=1, limit=4
  $region2: #{_lambda_.17} parent=0 // loop_pre_header
    _
  $region3: #{_lambda_.17} parent=0 // loop_header
    %s11 = sphi 0, %s15
    %p12 = scmp.ge.s32.totalorder %s11, 4
    %s18 = sphi 0, %s44
    %s19 = sphi 0, %s40
    %s20 = sphi 0, %s36
    %s21 = sphi 0, %s32
    %s22 = sphi 0, %s18
    %s23 = sphi 0, %s19
    %s24 = sphi 0, %s20
    %s25 = sphi 0, %s21
    %s26 = sphi 0, %s22
    %s27 = sphi 0, %s23
    %s28 = sphi 0, %s24
    %s29 = sphi 0, %s25
    %s51 = sphi 0, %s53
    %s54 = sphi 0, %s51
    %s55 = sphi 0, %s54
    %s71 = sphi 0, %s55
    %s79 = sphi 0, %s81
    %s82 = sphi 0, %s79
    %s83 = sphi 0, %s82
    %s99 = sphi 0, %s83
    %s107 = sphi 0, %s109
    %s110 = sphi 0, %s107
    %s111 = sphi 0, %s110
    %s127 = sphi 0, %s111
    %s133 = sphi 0, %s135
    %s136 = sphi 0, %s133
    %s137 = sphi 0, %s136
    %s153 = sphi 0, %s137
    %s163 = sphi 0, %s165
    %s166 = sphi 0, %s163
    %s167 = sphi 0, %s166
    %s183 = sphi 0, %s167
    %s193 = sphi 0, %s195
    %s196 = sphi 0, %s193
    %s197 = sphi 0, %s196
    %s213 = sphi 0, %s197
  $region4: #{_lambda_.17} parent=0 // loop_header_branch
    %14 = sbr.rel (%p12) target = $region8
  $region5: #{_lambda_.17} parent=0 // loop_body
    %s16 = ssub.s32 %s11, 1
    %s17 = ssub.s32 %s11, 2
    %s30 = sadd.s32 1, %s21
    %p31 = scmp.ge.s32.totalorder %s30, 1
    %s32 = scalar_select %p31, 0, %s30
    %s33 = sadd.s32 1, %s20
    %s34 = scalar_select %p31, %s33, %s20
    %p35 = scmp.ge.s32.totalorder %s34, 1
    %s36 = scalar_select %p35, 0, %s34
    %s37 = sadd.s32 1, %s19
    %s38 = scalar_select %p35, %s37, %s19
    %p39 = scmp.ge.s32.totalorder %s38, 1
    %s40 = scalar_select %p39, 0, %s38
    %s41 = sadd.s32 1, %s18
    %s42 = scalar_select %p39, %s41, %s18
    %p43 = scmp.ge.s32.totalorder %s42, 2
    %s44 = scalar_select %p43, 0, %s42
    %s45 = ssub.s32 %s18, %s44
    %s46 = ssub.s32 %s19, %s40
    %s47 = sor.u32 %s45, %s46
    %s48 = ssub.s32 %s21, %s32
    %s49 = sor.u32 %s47, %s48
    %p50 = scmp.eq.s32.totalorder %s49, 0
    %s52 = sadd.s32 %s51, 1
    %s53 = scalar_select %p50, %s51, %s52
    %p56 = pneg %p50
    %p57 = scmp.eq.s32.totalorder %s11, 1
    %p58 = por %p56, %p57
    %p59 = scmp.ne.s32.totalorder %s51, %s54
    %p60 = scmp.eq.s32.totalorder %s11, 0
    %p61 = por %p59, %p60
    %p62 = scmp.ne.s32.totalorder %s51, %s54
    %p63 = scmp.eq.s32.totalorder %s16, 1
    %p64 = por %p62, %p63
    %p65 = scmp.ne.s32.totalorder %s54, %s55
    %p66 = scmp.eq.s32.totalorder %s16, 0
    %p67 = por %p65, %p66
    %p68 = scmp.ne.s32.totalorder %s54, %s55
    %p69 = scmp.eq.s32.totalorder %s17, 1
    %p70 = por %p68, %p69
    %p72 = scmp.ne.s32.totalorder %s55, %s71
    %p73 = scmp.eq.s32.totalorder %s17, 0
    %p74 = por %p72, %p73
    %s75 = ssub.s32 %s18, %s44
    %s76 = ssub.s32 %s21, %s32
    %s77 = sor.u32 %s75, %s76
    %p78 = scmp.eq.s32.totalorder %s77, 0
    %s80 = sadd.s32 %s79, 1
    %s81 = scalar_select %p78, %s79, %s80
    %p84 = pneg %p78
    %p85 = scmp.eq.s32.totalorder %s11, 1
    %p86 = por %p84, %p85
    %p87 = scmp.ne.s32.totalorder %s79, %s82
    %p88 = scmp.eq.s32.totalorder %s11, 0
    %p89 = por %p87, %p88
    %p90 = scmp.ne.s32.totalorder %s79, %s82
    %p91 = scmp.eq.s32.totalorder %s16, 1
    %p92 = por %p90, %p91
    %p93 = scmp.ne.s32.totalorder %s82, %s83
    %p94 = scmp.eq.s32.totalorder %s16, 0
    %p95 = por %p93, %p94
    %p96 = scmp.ne.s32.totalorder %s82, %s83
    %p97 = scmp.eq.s32.totalorder %s17, 1
    %p98 = por %p96, %p97
    %p100 = scmp.ne.s32.totalorder %s83, %s99
    %p101 = scmp.eq.s32.totalorder %s17, 0
    %p102 = por %p100, %p101
    %s103 = ssub.s32 %s21, %s32
    %s104 = ssub.s32 %s20, %s36
    %s105 = sor.u32 %s103, %s104
    %p106 = scmp.eq.s32.totalorder %s105, 0
    %s108 = sadd.s32 %s107, 1
    %s109 = scalar_select %p106, %s107, %s108
    %p112 = pneg %p106
    %p113 = scmp.eq.s32.totalorder %s11, 1
    %p114 = por %p112, %p113
    %p115 = scmp.ne.s32.totalorder %s107, %s110
    %p116 = scmp.eq.s32.totalorder %s11, 0
    %p117 = por %p115, %p116
    %p118 = scmp.ne.s32.totalorder %s107, %s110
    %p119 = scmp.eq.s32.totalorder %s16, 1
    %p120 = por %p118, %p119
    %p121 = scmp.ne.s32.totalorder %s110, %s111
    %p122 = scmp.eq.s32.totalorder %s16, 0
    %p123 = por %p121, %p122
    %p124 = scmp.ne.s32.totalorder %s110, %s111
    %p125 = scmp.eq.s32.totalorder %s17, 1
    %p126 = por %p124, %p125
    %p128 = scmp.ne.s32.totalorder %s111, %s127
    %p129 = scmp.eq.s32.totalorder %s17, 0
    %p130 = por %p128, %p129
    %s131 = ssub.s32 %s20, %s36
    %p132 = scmp.eq.s32.totalorder %s131, 0
    %s134 = sadd.s32 %s133, 1
    %s135 = scalar_select %p132, %s133, %s134
    %p138 = pneg %p132
    %p139 = scmp.eq.s32.totalorder %s11, 1
    %p140 = por %p138, %p139
    %p141 = scmp.ne.s32.totalorder %s133, %s136
    %p142 = scmp.eq.s32.totalorder %s11, 0
    %p143 = por %p141, %p142
    %p144 = scmp.ne.s32.totalorder %s133, %s136
    %p145 = scmp.eq.s32.totalorder %s16, 1
    %p146 = por %p144, %p145
    %p147 = scmp.ne.s32.totalorder %s136, %s137
    %p148 = scmp.eq.s32.totalorder %s16, 0
    %p149 = por %p147, %p148
    %p150 = scmp.ne.s32.totalorder %s136, %s137
    %p151 = scmp.eq.s32.totalorder %s17, 1
    %p152 = por %p150, %p151
    %p154 = scmp.ne.s32.totalorder %s137, %s153
    %p155 = scmp.eq.s32.totalorder %s17, 0
    %p156 = por %p154, %p155
    %s157 = ssub.s32 %s18, %s44
    %s158 = ssub.s32 %s19, %s40
    %s159 = sor.u32 %s157, %s158
    %s160 = ssub.s32 %s20, %s36
    %s161 = sor.u32 %s159, %s160
    %p162 = scmp.eq.s32.totalorder %s161, 0
    %s164 = sadd.s32 %s163, 1
    %s165 = scalar_select %p162, %s163, %s164
    %p168 = pneg %p162
    %p169 = scmp.eq.s32.totalorder %s11, 1
    %p170 = por %p168, %p169
    %p171 = scmp.ne.s32.totalorder %s163, %s166
    %p172 = scmp.eq.s32.totalorder %s11, 0
    %p173 = por %p171, %p172
    %p174 = scmp.ne.s32.totalorder %s163, %s166
    %p175 = scmp.eq.s32.totalorder %s16, 1
    %p176 = por %p174, %p175
    %p177 = scmp.ne.s32.totalorder %s166, %s167
    %p178 = scmp.eq.s32.totalorder %s16, 0
    %p179 = por %p177, %p178
    %p180 = scmp.ne.s32.totalorder %s166, %s167
    %p181 = scmp.eq.s32.totalorder %s17, 1
    %p182 = por %p180, %p181
    %p184 = scmp.ne.s32.totalorder %s167, %s183
    %p185 = scmp.eq.s32.totalorder %s17, 0
    %p186 = por %p184, %p185
    %s187 = ssub.s32 %s18, %s44
    %s188 = ssub.s32 %s19, %s40
    %s189 = sor.u32 %s187, %s188
    %s190 = ssub.s32 %s20, %s36
    %s191 = sor.u32 %s189, %s190
    %p192 = scmp.eq.s32.totalorder %s191, 0
    %s194 = sadd.s32 %s193, 1
    %s195 = scalar_select %p192, %s193, %s194
    %p198 = pneg %p192
    %p199 = scmp.eq.s32.totalorder %s11, 1
    %p200 = por %p198, %p199
    %p201 = scmp.ne.s32.totalorder %s193, %s196
    %p202 = scmp.eq.s32.totalorder %s11, 0
    %p203 = por %p201, %p202
    %p204 = scmp.ne.s32.totalorder %s193, %s196
    %p205 = scmp.eq.s32.totalorder %s16, 1
    %p206 = por %p204, %p205
    %p207 = scmp.ne.s32.totalorder %s196, %s197
    %p208 = scmp.eq.s32.totalorder %s16, 0
    %p209 = por %p207, %p208
    %p210 = scmp.ne.s32.totalorder %s196, %s197
    %p211 = scmp.eq.s32.totalorder %s17, 1
    %p212 = por %p210, %p211
    %p214 = scmp.ne.s32.totalorder %s197, %s213
    %p215 = scmp.eq.s32.totalorder %s17, 0
    %p216 = por %p214, %p215
    %p217 = scmp.le.s32.totalorder 1, %s11
    %p218 = scmp.lt.s32.totalorder %s11, 3
    %p219 = pnand %p217, %p218
    %p220 = pneg %p219
    // Predicated region
    $region9: #{_lambda_.17} parent=5 // pred_check
      _
    $region10: #{_lambda_.17} parent=5 // pred_check_branch
      %222 = sbr.rel (%p219) target = $region12
    $region11: #{_lambda_.17} parent=5 // pred_region
      %s223 = ssub.s32 %s11, 1
      // Predicated region
      $region13: #{_lambda_.17} parent=11 // pred_check
        %p224 = pneg %p123
      $region14: #{_lambda_.17} parent=11 // pred_check_branch
        %226 = sbr.rel (%p224) target = $region16
      $region15: #{_lambda_.17} parent=11 // pred_region
        %s227 = smul.u32 16, %s25
        %p228 = scmp.lt.s32.totalorder %s227, 15
        %s229 = scalar_select %p228, %s227, 15
        %p230 = scmp.lt.s32.totalorder %s24, 0
        %s231 = scalar_select %p230, %s24, 0
        %s232 = sadd.s32 %s231, %s229
        %s233 = smul.addr %s232, 4
        %s234 = scalar_lea.vmem %s2, %s233
        %s235 = smul.u32 16, %s25
      $region16: #{_lambda_.17} parent=11 // pred_fallthru
        _
      // Predicated region
      $region17: #{_lambda_.17} parent=11 // pred_check
        %p236 = pneg %p149
      $region18: #{_lambda_.17} parent=11 // pred_check_branch
        %238 = sbr.rel (%p236) target = $region20
      $region19: #{_lambda_.17} parent=11 // pred_region
        %p239 = scmp.lt.s32.totalorder %s24, 0
        %s240 = scalar_select %p239, %s24, 0
        %s241 = scalar_lea.vmem %s3, %s240
      $region20: #{_lambda_.17} parent=11 // pred_fallthru
        _
    $region12: #{_lambda_.17} parent=5 // pred_fallthru
      _
    %p242 = scmp.lt.s32.totalorder %s11, 2
    // Predicated region
    $region21: #{_lambda_.17} parent=5 // pred_check
      %p243 = pneg %p242
    $region22: #{_lambda_.17} parent=5 // pred_check_branch
      %245 = sbr.rel (%p243) target = $region24
    $region23: #{_lambda_.17} parent=5 // pred_region
      // Predicated region
      $region25: #{_lambda_.17} parent=23 // pred_check
        %p246 = pneg %p61
      $region26: #{_lambda_.17} parent=23 // pred_check_branch
        %248 = sbr.rel (%p246) target = $region28
      $region27: #{_lambda_.17} parent=23 // pred_region
        %s249 = smul.u32 2, %s19
        %p250 = scmp.lt.s32.totalorder %s18, 1
        %s251 = scalar_select %p250, %s18, 1
        %p252 = scmp.lt.s32.totalorder %s249, 1
        %s253 = scalar_select %p252, %s249, 1
        %p254 = scmp.lt.s32.totalorder %s21, 0
        %s255 = scalar_select %p254, %s21, 0
        %s256 = sadd.s32 %s255, %s253
        %s257 = smul.addr %s251, 2
        %s258 = sadd.s32 %s256, %s257
        %s259 = smul.addr %s258, 4
        %s260 = scalar_lea.vmem %s0, %s259
        %s261 = smul.u32 2, %s19
      $region28: #{_lambda_.17} parent=23 // pred_fallthru
        _
      // Predicated region
      $region29: #{_lambda_.17} parent=23 // pred_check
        %p262 = pneg %p89
      $region30: #{_lambda_.17} parent=23 // pred_check_branch
        %264 = sbr.rel (%p262) target = $region32
      $region31: #{_lambda_.17} parent=23 // pred_region
        %p265 = scmp.lt.s32.totalorder %s18, 1
        %s266 = scalar_select %p265, %s18, 1
        %p267 = scmp.lt.s32.totalorder %s21, 0
        %s268 = scalar_select %p267, %s21, 0
        %s269 = sadd.s32 %s268, %s266
        %s270 = scalar_lea.vmem %s1, %s269
      $region32: #{_lambda_.17} parent=23 // pred_fallthru
        _
      // Predicated region
      $region33: #{_lambda_.17} parent=23 // pred_check
        %p271 = pneg %p173
      $region34: #{_lambda_.17} parent=23 // pred_check_branch
        %273 = sbr.rel (%p271) target = $region36
      $region35: #{_lambda_.17} parent=23 // pred_region
        %s274 = smul.u32 2, %s19
        %p275 = scmp.lt.s32.totalorder %s18, 1
        %s276 = scalar_select %p275, %s18, 1
        %p277 = scmp.lt.s32.totalorder %s274, 1
        %s278 = scalar_select %p277, %s274, 1
        %p279 = scmp.lt.s32.totalorder %s20, 0
        %s280 = scalar_select %p279, %s20, 0
        %s281 = sadd.s32 %s280, %s278
        %s282 = smul.addr %s276, 2
        %s283 = sadd.s32 %s281, %s282
        %s284 = smul.addr %s283, 4
        %s285 = scalar_lea.vmem %s4, %s284
        %s286 = smul.u32 2, %s19
      $region36: #{_lambda_.17} parent=23 // pred_fallthru
        _
    $region24: #{_lambda_.17} parent=5 // pred_fallthru
      _
    %p287 = scmp.le.s32.totalorder 1, %s11
    %p288 = scmp.lt.s32.totalorder %s11, 3
    %p289 = pnand %p287, %p288
    %p290 = pneg %p289
    // Predicated region
    $region37: #{_lambda_.17} parent=5 // pred_check
      _
    $region38: #{_lambda_.17} parent=5 // pred_check_branch
      %292 = sbr.rel (%p289) target = $region40
    $region39: #{_lambda_.17} parent=5 // pred_region
      %s293 = ssub.s32 %s11, 1
      %s294 = smul.u32 2, %s23
      %p295 = scmp.lt.s32.totalorder %s22, 1
      %s296 = scalar_select %p295, %s22, 1
      %p297 = scmp.lt.s32.totalorder %s294, 1
      %s298 = scalar_select %p297, %s294, 1
      %p299 = scmp.lt.s32.totalorder %s25, 0
      %s300 = scalar_select %p299, %s25, 0
      %s301 = sadd.s32 %s300, %s298
      %s302 = smul.addr %s296, 2
      %s303 = sadd.s32 %s301, %s302
      %s304 = smul.addr %s303, 4
      %s305 = scalar_lea.vmem %s0, %s304
      %p306 = pneg %p67
      %p307 = pneg %p64
      %p308 = scmp.lt.s32.totalorder %s22, 1
      %s309 = scalar_select %p308, %s22, 1
      %p310 = scmp.lt.s32.totalorder %s25, 0
      %s311 = scalar_select %p310, %s25, 0
      %s312 = sadd.s32 %s311, %s309
      %s313 = scalar_lea.vmem %s1, %s312
      %p314 = pneg %p95
      %p315 = pneg %p92
      %s316 = smul.u32 16, %s25
      %p317 = scmp.lt.s32.totalorder %s316, 15
      %s318 = scalar_select %p317, %s316, 15
      %p319 = scmp.lt.s32.totalorder %s24, 0
      %s320 = scalar_select %p319, %s24, 0
      %s321 = sadd.s32 %s320, %s318
      %s322 = smul.addr %s321, 4
      %s323 = scalar_lea.vmem %s2, %s322
      %p324 = pneg %p123
      %p325 = pneg %p120
      %p326 = scmp.lt.s32.totalorder %s24, 0
      %s327 = scalar_select %p326, %s24, 0
      %s328 = scalar_lea.vmem %s3, %s327
      %p329 = pneg %p149
      %p330 = pneg %p146
      %s331 = smul.u32 2, %s23
      %p332 = scmp.lt.s32.totalorder %s22, 1
      %s333 = scalar_select %p332, %s22, 1
      %p334 = scmp.lt.s32.totalorder %s331, 1
      %s335 = scalar_select %p334, %s331, 1
      %p336 = scmp.lt.s32.totalorder %s24, 0
      %s337 = scalar_select %p336, %s24, 0
      %s338 = sadd.s32 %s337, %s335
      %s339 = smul.addr %s333, 2
      %s340 = sadd.s32 %s338, %s339
      %s341 = smul.addr %s340, 4
      %s342 = scalar_lea.vmem %s4, %s341
      %p343 = pneg %p179
      %p344 = pneg %p176
      %p345 = pneg %p209
      %p346 = pneg %p206
      %s347 = smul.u32 2, %s23
      %p348 = scmp.lt.s32.totalorder %s22, 1
      %s349 = scalar_select %p348, %s22, 1
      %p350 = scmp.lt.s32.totalorder %s347, 1
      %s351 = scalar_select %p350, %s347, 1
      %p352 = scmp.lt.s32.totalorder %s24, 0
      %s353 = scalar_select %p352, %s24, 0
      %s354 = sadd.s32 %s353, %s351
      %s355 = smul.addr %s349, 2
      %s356 = sadd.s32 %s354, %s355
      %s357 = smul.addr %s356, 4
      %s358 = scalar_lea.vmem %s5, %s357
      %s359 = smul.u32 2, %s23
      %p360 = scmp.lt.s32.totalorder %s22, 1
      %s361 = scalar_select %p360, %s22, 1
      %p362 = scmp.lt.s32.totalorder %s359, 1
      %s363 = scalar_select %p362, %s359, 1
      %p364 = scmp.lt.s32.totalorder %s25, 0
      %s365 = scalar_select %p364, %s25, 0
      %s366 = sadd.s32 %s365, %s363
      %s367 = smul.addr %s361, 2
      %s368 = sadd.s32 %s366, %s367
      %s369 = smul.addr %s368, 4
      %s370 = scalar_lea.vmem %s0, %s369
      %s371 = smul.u32 2, %s23
      %p372 = scmp.lt.s32.totalorder %s22, 1
      %s373 = scalar_select %p372, %s22, 1
      %p374 = scmp.lt.s32.totalorder %s25, 0
      %s375 = scalar_select %p374, %s25, 0
      %s376 = sadd.s32 %s375, %s373
      %s377 = scalar_lea.vmem %s1, %s376
      %s378 = smul.u32 16, %s25
      %p379 = scmp.lt.s32.totalorder %s378, 15
      %s380 = scalar_select %p379, %s378, 15
      %p381 = scmp.lt.s32.totalorder %s24, 0
      %s382 = scalar_select %p381, %s24, 0
      %s383 = sadd.s32 %s382, %s380
      %s384 = smul.addr %s383, 4
      %s385 = scalar_lea.vmem %s2, %s384
      %s386 = smul.u32 16, %s25
      %p387 = scmp.lt.s32.totalorder %s24, 0
      %s388 = scalar_select %p387, %s24, 0
      %s389 = scalar_lea.vmem %s3, %s388
      %s390 = smul.u32 2, %s23
      %p391 = scmp.lt.s32.totalorder %s22, 1
      %s392 = scalar_select %p391, %s22, 1
      %p393 = scmp.lt.s32.totalorder %s390, 1
      %s394 = scalar_select %p393, %s390, 1
      %p395 = scmp.lt.s32.totalorder %s24, 0
      %s396 = scalar_select %p395, %s24, 0
      %s397 = sadd.s32 %s396, %s394
      %s398 = smul.addr %s392, 2
      %s399 = sadd.s32 %s397, %s398
      %s400 = smul.addr %s399, 4
      %s401 = scalar_lea.vmem %s4, %s400
      %s402 = smul.u32 2, %s23
      %s403 = smul.u32 2, %s23
      %p404 = scmp.lt.s32.totalorder %s22, 1
      %s405 = scalar_select %p404, %s22, 1
      %p406 = scmp.lt.s32.totalorder %s403, 1
      %s407 = scalar_select %p406, %s403, 1
      %p408 = scmp.lt.s32.totalorder %s24, 0
      %s409 = scalar_select %p408, %s24, 0
      %s410 = sadd.s32 %s409, %s407
      %s411 = smul.addr %s405, 2
      %s412 = sadd.s32 %s410, %s411
      %s413 = smul.addr %s412, 4
      %s414 = scalar_lea.vmem %s5, %s413
      %s415 = smul.u32 2, %s23
      %p417 = scmp.eq.s32.totalorder %s25, 0
      // Predicated region
      $region41: #{_lambda_.17} parent=39 // pred_check
        %p418 = pneg %p417
      $region42: #{_lambda_.17} parent=39 // pred_check_branch
        %420 = sbr.rel (%p418) target = $region44
      $region43: #{_lambda_.17} parent=39 // pred_region
        %421 = vst [vmem:[#allocation2] sm:$0xff] 0.0
        %422 = vst [vmem:[#allocation2 + $0x8] sm:$0xff] 0.0
      $region44: #{_lambda_.17} parent=39 // pred_fallthru
        _
      %v423 = vld [vmem:[%s370] sm:$0xf]
      %v424 = vld [vmem:[%s370 + $0x4] sm:$0xf]
      %v425 = vld [vmem:[%s377] sm:$0x1]
      %v427 = vpack.i.b16 %v425, %v425
      %v429 = vlaneseq
      %v430 = vshrl.u32 %v429, 7
      %v431 = vsub.s32 0, %v430
      %v432 = vrot.slane %v427, %v431
      %v434 = vunpack.c.l.b16 %v432
      %v435 = vpack.c.b16 %v434, %v434
      %v437 = vmul.bf16 %v423, %v435
      %v438 = vmul.bf16 %v424, %v435
      %v439 = vld [vmem:[#allocation2] sm:$0xff]
      %v440 = vld [vmem:[#allocation2 + $0x8] sm:$0xff]
      %v441 = vld [vmem:[%s385] sm:$0xf]
      %v442 = vld [vmem:[%s385 + $0x4] sm:$0xf]
      %v443 = vld [vmem:[%s385 + $0x8] sm:$0xf]
      %v444 = vld [vmem:[%s385 + $0xc] sm:$0xf]
      %v445 = vld [vmem:[%s385 + $0x10] sm:$0xf]
      %v446 = vld [vmem:[%s385 + $0x14] sm:$0xf]
      %v447 = vld [vmem:[%s385 + $0x18] sm:$0xf]
      %v448 = vld [vmem:[%s385 + $0x1c] sm:$0xf]
      %v449 = vld [vmem:[%s385 + $0x20] sm:$0xf]
      %v450 = vld [vmem:[%s385 + $0x24] sm:$0xf]
      %v451 = vld [vmem:[%s385 + $0x28] sm:$0xf]
      %v452 = vld [vmem:[%s385 + $0x2c] sm:$0xf]
      %v453 = vld [vmem:[%s385 + $0x30] sm:$0xf]
      %v454 = vld [vmem:[%s385 + $0x34] sm:$0xf]
      %v455 = vld [vmem:[%s385 + $0x38] sm:$0xf]
      %v456 = vld [vmem:[%s385 + $0x3c] sm:$0xf]
      %v459 = vunpack.c.l.b16 %v437
      %v460 = vunpack.c.l.b16 %v438
      %v461 = vpack.c.b16 %v460, %v459
      %v479 = vunpack.c.l.b16 %v441
      %v480 = vunpack.c.l.b16 %v442
      %v481 = vunpack.c.l.b16 %v443
      %v482 = vunpack.c.l.b16 %v444
      %v483 = vunpack.c.l.b16 %v445
      %v484 = vunpack.c.l.b16 %v446
      %v485 = vunpack.c.l.b16 %v447
      %v486 = vunpack.c.l.b16 %v448
      %v487 = vunpack.c.l.b16 %v449
      %v488 = vunpack.c.l.b16 %v450
      %v489 = vunpack.c.l.b16 %v451
      %v490 = vunpack.c.l.b16 %v452
      %v491 = vunpack.c.l.b16 %v453
      %v492 = vunpack.c.l.b16 %v454
      %v493 = vunpack.c.l.b16 %v455
      %v494 = vunpack.c.l.b16 %v456
      %v495 = vpack.c.b16 %v480, %v479
      %v496 = vpack.c.b16 %v482, %v481
      %v497 = vpack.c.b16 %v484, %v483
      %v498 = vpack.c.b16 %v486, %v485
      %v499 = vpack.c.b16 %v488, %v487
      %v500 = vpack.c.b16 %v490, %v489
      %v501 = vpack.c.b16 %v492, %v491
      %v502 = vpack.c.b16 %v494, %v493
      %511 = vmatprep.subr.bf16.mxu0 0
      %512 = vmatpush1.bf16.msra.mxu0 %v502
      %513 = vmatprep.subr.bf16.mxu0 0
      %514 = vmatpush1.bf16.msra.mxu0 %v501
      %515 = vmatprep.subr.bf16.mxu0 0
      %516 = vmatpush1.bf16.msra.mxu0 %v500
      %517 = vmatprep.subr.bf16.mxu0 0
      %518 = vmatpush1.bf16.msra.mxu0 %v499
      %519 = vmatprep.subr.bf16.mxu0 0
      %520 = vmatpush1.bf16.msra.mxu0 %v498
      %521 = vmatprep.subr.bf16.mxu0 0
      %522 = vmatpush1.bf16.msra.mxu0 %v497
      %523 = vmatprep.subr.bf16.mxu0 0
      %524 = vmatpush1.bf16.msra.mxu0 %v496
      %525 = vmatprep.subr.bf16.mxu0 0
      %526 = vmatpush1.bf16.msra.mxu0 %v495
      %527 = vmatprep.subr.bf16.mxu0 0
      %528 = vmatpush2.bf16.msra.mxu0 0
      %529 = vmatprep.subr.bf16.mxu0 0
      %530 = vmatpush2.bf16.msra.mxu0 0
      %531 = vmatprep.subr.bf16.mxu0 0
      %532 = vmatpush2.bf16.msra.mxu0 0
      %533 = vmatprep.subr.bf16.mxu0 0
      %534 = vmatpush2.bf16.msra.mxu0 0
      %535 = vmatprep.subr.bf16.mxu0 0
      %536 = vmatpush2.bf16.msra.mxu0 0
      %537 = vmatprep.subr.bf16.mxu0 0
      %538 = vmatpush2.bf16.msra.mxu0 0
      %539 = vmatprep.subr.bf16.mxu0 0
      %540 = vmatpush2.bf16.msra.mxu0 0
      %541 = vmatprep.subr.bf16.mxu0 0
      %542 = vmatpush2.bf16.msra.mxu0 0
      %543 = vmatprep.mubr.bf16.mxu0 0
      %544 = vmatmul.mubr.bf16.gmra.mxu0 %v461
      %v545 = vpop.f32.mrf.mxu0
      %v546 = vadd.f32 0.0, %v545
      %v547 = vpop.f32.mrf.mxu0
      %v548 = vpop.f32.mrf.mxu0
      %v549 = vadd.f32 0.0, %v548
      %v550 = vpop.f32.mrf.mxu0
      %551 = vdwg.mxu0
      %v552 = vadd.f32 %v439, %v546
      %v553 = vadd.f32 %v440, %v549
      %554 = vst [vmem:[#allocation2] sm:$0xff] %v552
      %555 = vst [vmem:[#allocation2 + $0x8] sm:$0xff] %v553
      // Predicated region
      $region45: #{_lambda_.17} parent=39 // pred_check
        %p556 = pneg %p417
      $region46: #{_lambda_.17} parent=39 // pred_check_branch
        %558 = sbr.rel (%p556) target = $region48
      $region47: #{_lambda_.17} parent=39 // pred_region
        %v559 = vld [vmem:[#allocation2] sm:$0xff]
        %v560 = vld [vmem:[#allocation2 + $0x8] sm:$0xff]
        %v561 = vld [vmem:[%s389] sm:$0x1]
        %v563 = vlaneseq
        %v564 = vshrl.u32 %v563, 7
        %v565 = vsub.s32 0, %v564
        %v566 = vrot.slane %v561, %v565
        %v568 = vadd.f32 %v559, %v566
        %v569 = vadd.f32 %v560, %v566
        %v570 = vld [vmem:[%s401] sm:$0xf]
        %v571 = vld [vmem:[%s401 + $0x4] sm:$0xf]
        %v572 = vunpack.c.l.bf16 %v570
        %v573 = vunpack.c.l.bf16 %v571
        %v574 = vadd.f32 %v568, %v572
        %v575 = vadd.f32 %v569, %v573
        %v576 = vpack.c.bf16 %v575, %v574
        %v578 = vunpack.c.l.b16 %v576
        %v579 = vunpack.c.h.b16 %v576
        %v580 = vpack.c.b16 %v578, %v578
        %v581 = vpack.c.b16 %v579, %v579
        %584 = vst [vmem:[%s414] sm:$0xf] %v580
        %585 = vst [vmem:[%s414 + $0x4] sm:$0xf] %v581
      $region48: #{_lambda_.17} parent=39 // pred_fallthru
        _
      %s586 = smul.u32 2, %s23
      %p587 = scmp.lt.s32.totalorder %s22, 1
      %s588 = scalar_select %p587, %s22, 1
      %p589 = scmp.lt.s32.totalorder %s586, 1
      %s590 = scalar_select %p589, %s586, 1
      %p591 = scmp.lt.s32.totalorder %s24, 0
      %s592 = scalar_select %p591, %s24, 0
      %s593 = sadd.s32 %s592, %s590
      %s594 = smul.addr %s588, 2
      %s595 = sadd.s32 %s593, %s594
      %s596 = smul.addr %s595, 4
      %s597 = scalar_lea.vmem %s5, %s596
      // Predicated region
      $region49: #{_lambda_.17} parent=39 // pred_check
        %p598 = pneg %p206
      $region50: #{_lambda_.17} parent=39 // pred_check_branch
        %600 = sbr.rel (%p598) target = $region52
      $region51: #{_lambda_.17} parent=39 // pred_region
        %s601 = smul.u32 2, %s23
      $region52: #{_lambda_.17} parent=39 // pred_fallthru
        _
    $region40: #{_lambda_.17} parent=5 // pred_fallthru
      _
    %p602 = scmp.le.s32.totalorder 2, %s11
    // Predicated region
    $region53: #{_lambda_.17} parent=5 // pred_check
      %p603 = pneg %p602
    $region54: #{_lambda_.17} parent=5 // pred_check_branch
      %605 = sbr.rel (%p603) target = $region56
    $region55: #{_lambda_.17} parent=5 // pred_region
      %s606 = ssub.s32 %s11, 2
      // Predicated region
      $region57: #{_lambda_.17} parent=55 // pred_check
        %p607 = pneg %p212
      $region58: #{_lambda_.17} parent=55 // pred_check_branch
        %609 = sbr.rel (%p607) target = $region60
      $region59: #{_lambda_.17} parent=55 // pred_region
        %s610 = smul.u32 2, %s27
        %p611 = scmp.lt.s32.totalorder %s26, 1
        %s612 = scalar_select %p611, %s26, 1
        %p613 = scmp.lt.s32.totalorder %s610, 1
        %s614 = scalar_select %p613, %s610, 1
        %p615 = scmp.lt.s32.totalorder %s28, 0
        %s616 = scalar_select %p615, %s28, 0
        %s617 = sadd.s32 %s616, %s614
        %s618 = smul.addr %s612, 2
        %s619 = sadd.s32 %s617, %s618
        %s620 = smul.addr %s619, 4
        %s621 = scalar_lea.vmem %s5, %s620
      $region60: #{_lambda_.17} parent=55 // pred_fallthru
        _
    $region56: #{_lambda_.17} parent=5 // pred_fallthru
      _
  $region6: #{_lambda_.17} parent=0 // loop_footer
    %s15 = sadd.s32 1, %s11
  $region7: #{_lambda_.17} parent=0 // loop_footer_branch
    %10 = sbr.rel target = $region3
  $region8: #{_lambda_.17} parent=0 // loop_exit
    _

// kernel: _lambda_.19
$region0: #{_lambda_.19}
  #allocation0 [shape = 'u32[]', space=smem, size = 0x4, offset = 0x4, fixed_abs, tag = 'smem constant byte address 0x4 - core index']
  #allocation1 [shape = 'u32[144,128]{1,0:T(1,128)}', space=vmem, size = 0x12000, scoped, tag = 'internal scratch']
  #allocation2 [shape = 'f32[16,128]{1,0:T(8,128)}', space=vmem, size = 0x2000, scoped, tag = 'scratch operand']
  %s0 = inlined_call_operand.vmem [shape: bf16[16,128], index: 0, kind: input, shape index: {}]
  %s1 = inlined_call_operand.vmem [shape: bf16[128,128], index: 1, kind: input, shape index: {}]
  %s2 = inlined_call_operand.vmem [shape: f32[1,128], index: 2, kind: input, shape index: {}]
  %s3 = inlined_call_operand.vmem [shape: f32[16,128], index: 3, kind: output, shape index: {}]
  %s4 = sld [smem:[#allocation0]]
  $region30: #{_lambda_.19} parent=0
    _
  %s6 = ssub.s32 1, %s4
  %s7 = scalar_select 0, %s6, %s4
  // Predicated region
  $region2: #{_lambda_.19} parent=0 // pred_check
    _
  $region3: #{_lambda_.19} parent=0 // pred_check_branch
    %9 = sbr.rel (0) target = $region5
  $region4: #{_lambda_.19} parent=0 // pred_region
    _
  $region5: #{_lambda_.19} parent=0 // pred_fallthru
    _
  // Predicated region
  $region6: #{_lambda_.19} parent=0 // pred_check
    _
  $region7: #{_lambda_.19} parent=0 // pred_check_branch
    %11 = sbr.rel (0) target = $region9
  $region8: #{_lambda_.19} parent=0 // pred_region
    _
  $region9: #{_lambda_.19} parent=0 // pred_fallthru
    _
  // Predicated region
  $region10: #{_lambda_.19} parent=0 // pred_check
    _
  $region11: #{_lambda_.19} parent=0 // pred_check_branch
    %13 = sbr.rel (0) target = $region13
  $region12: #{_lambda_.19} parent=0 // pred_region
    _
  $region13: #{_lambda_.19} parent=0 // pred_fallthru
    _
  %p15 = scmp.eq.s32.totalorder 0, 0
  // Predicated region
  $region14: #{_lambda_.19} parent=0 // pred_check
    %p16 = pneg %p15
  $region15: #{_lambda_.19} parent=0 // pred_check_branch
    %18 = sbr.rel (%p16) target = $region17
  $region16: #{_lambda_.19} parent=0 // pred_region
    %19 = vst [vmem:[#allocation2] sm:$0xff] 0.0
    %20 = vst [vmem:[#allocation2 + $0x8] sm:$0xff] 0.0
  $region17: #{_lambda_.19} parent=0 // pred_fallthru
    _
  %v21 = vld [vmem:[#allocation2] sm:$0xff]
  %v22 = vld [vmem:[#allocation2 + $0x8] sm:$0xff]
  %v23 = vld [vmem:[%s0] sm:$0xf]
  %v24 = vld [vmem:[%s0 + $0x4] sm:$0xf]
  %v25 = vld [vmem:[%s1] sm:$0xf]
  %v26 = vld [vmem:[%s1 + $0x4] sm:$0xf]
  %v27 = vld [vmem:[%s1 + $0x8] sm:$0xf]
  %v28 = vld [vmem:[%s1 + $0xc] sm:$0xf]
  %v29 = vld [vmem:[%s1 + $0x10] sm:$0xf]
  %v30 = vld [vmem:[%s1 + $0x14] sm:$0xf]
  %v31 = vld [vmem:[%s1 + $0x18] sm:$0xf]
  %v32 = vld [vmem:[%s1 + $0x1c] sm:$0xf]
  %v33 = vld [vmem:[%s1 + $0x20] sm:$0xf]
  %v34 = vld [vmem:[%s1 + $0x24] sm:$0xf]
  %v35 = vld [vmem:[%s1 + $0x28] sm:$0xf]
  %v36 = vld [vmem:[%s1 + $0x2c] sm:$0xf]
  %v37 = vld [vmem:[%s1 + $0x30] sm:$0xf]
  %v38 = vld [vmem:[%s1 + $0x34] sm:$0xf]
  %v39 = vld [vmem:[%s1 + $0x38] sm:$0xf]
  %v40 = vld [vmem:[%s1 + $0x3c] sm:$0xf]
  %v43 = vunpack.c.l.b16 %v23
  %v44 = vunpack.c.l.b16 %v24
  %v45 = vpack.c.b16 %v44, %v43
  %v63 = vunpack.c.l.b16 %v25
  %v64 = vunpack.c.l.b16 %v26
  %v65 = vunpack.c.l.b16 %v27
  %v66 = vunpack.c.l.b16 %v28
  %v67 = vunpack.c.l.b16 %v29
  %v68 = vunpack.c.l.b16 %v30
  %v69 = vunpack.c.l.b16 %v31
  %v70 = vunpack.c.l.b16 %v32
  %v71 = vunpack.c.l.b16 %v33
  %v72 = vunpack.c.l.b16 %v34
  %v73 = vunpack.c.l.b16 %v35
  %v74 = vunpack.c.l.b16 %v36
  %v75 = vunpack.c.l.b16 %v37
  %v76 = vunpack.c.l.b16 %v38
  %v77 = vunpack.c.l.b16 %v39
  %v78 = vunpack.c.l.b16 %v40
  %v79 = vpack.c.b16 %v64, %v63
  %v80 = vpack.c.b16 %v66, %v65
  %v81 = vpack.c.b16 %v68, %v67
  %v82 = vpack.c.b16 %v70, %v69
  %v83 = vpack.c.b16 %v72, %v71
  %v84 = vpack.c.b16 %v74, %v73
  %v85 = vpack.c.b16 %v76, %v75
  %v86 = vpack.c.b16 %v78, %v77
  %95 = vmatprep.subr.bf16.mxu0 0
  %96 = vmatpush1.bf16.msra.mxu0 %v86
  %97 = vmatprep.subr.bf16.mxu0 0
  %98 = vmatpush1.bf16.msra.mxu0 %v85
  %99 = vmatprep.subr.bf16.mxu0 0
  %100 = vmatpush1.bf16.msra.mxu0 %v84
  %101 = vmatprep.subr.bf16.mxu0 0
  %102 = vmatpush1.bf16.msra.mxu0 %v83
  %103 = vmatprep.subr.bf16.mxu0 0
  %104 = vmatpush1.bf16.msra.mxu0 %v82
  %105 = vmatprep.subr.bf16.mxu0 0
  %106 = vmatpush1.bf16.msra.mxu0 %v81
  %107 = vmatprep.subr.bf16.mxu0 0
  %108 = vmatpush1.bf16.msra.mxu0 %v80
  %109 = vmatprep.subr.bf16.mxu0 0
  %110 = vmatpush1.bf16.msra.mxu0 %v79
  %111 = vmatprep.subr.bf16.mxu0 0
  %112 = vmatpush2.bf16.msra.mxu0 0
  %113 = vmatprep.subr.bf16.mxu0 0
  %114 = vmatpush2.bf16.msra.mxu0 0
  %115 = vmatprep.subr.bf16.mxu0 0
  %116 = vmatpush2.bf16.msra.mxu0 0
  %117 = vmatprep.subr.bf16.mxu0 0
  %118 = vmatpush2.bf16.msra.mxu0 0
  %119 = vmatprep.subr.bf16.mxu0 0
  %120 = vmatpush2.bf16.msra.mxu0 0
  %121 = vmatprep.subr.bf16.mxu0 0
  %122 = vmatpush2.bf16.msra.mxu0 0
  %123 = vmatprep.subr.bf16.mxu0 0
  %124 = vmatpush2.bf16.msra.mxu0 0
  %125 = vmatprep.subr.bf16.mxu0 0
  %126 = vmatpush2.bf16.msra.mxu0 0
  %127 = vmatprep.mubr.bf16.mxu0 0
  %128 = vmatmul.mubr.bf16.gmra.mxu0 %v45
  %v129 = vpop.f32.mrf.mxu0
  %v130 = vadd.f32 0.0, %v129
  %v131 = vpop.f32.mrf.mxu0
  %v132 = vpop.f32.mrf.mxu0
  %v133 = vadd.f32 0.0, %v132
  %v134 = vpop.f32.mrf.mxu0
  %135 = vdwg.mxu0
  %v136 = vadd.f32 %v21, %v130
  %v137 = vadd.f32 %v22, %v133
  %138 = vst [vmem:[#allocation2] sm:$0xff] %v136
  %139 = vst [vmem:[#allocation2 + $0x8] sm:$0xff] %v137
  // Predicated region
  $region18: #{_lambda_.19} parent=0 // pred_check
    %p140 = pneg %p15
  $region19: #{_lambda_.19} parent=0 // pred_check_branch
    %142 = sbr.rel (%p140) target = $region21
  $region20: #{_lambda_.19} parent=0 // pred_region
    %v143 = vld [vmem:[#allocation2] sm:$0xff]
    %v144 = vld [vmem:[#allocation2 + $0x8] sm:$0xff]
    %v145 = vld [vmem:[%s2] sm:$0x1]
    %v147 = vlaneseq
    %v148 = vshrl.u32 %v147, 7
    %v149 = vsub.s32 0, %v148
    %v150 = vrot.slane %v145, %v149
    %v152 = vadd.f32 %v143, %v150
    %v153 = vadd.f32 %v144, %v150
    %154 = vst [vmem:[%s3] sm:$0xff] %v152
    %155 = vst [vmem:[%s3 + $0x8] sm:$0xff] %v153
  $region21: #{_lambda_.19} parent=0 // pred_fallthru
    _
  // Predicated region
  $region22: #{_lambda_.19} parent=0 // pred_check
    _
  $region23: #{_lambda_.19} parent=0 // pred_check_branch
    %157 = sbr.rel (0) target = $region25
  $region24: #{_lambda_.19} parent=0 // pred_region
    _
  $region25: #{_lambda_.19} parent=0 // pred_fallthru
    _
  // Predicated region
  $region26: #{_lambda_.19} parent=0 // pred_check
    _
  $region27: #{_lambda_.19} parent=0 // pred_check_branch
    %159 = sbr.rel (0) target = $region29
  $region28: #{_lambda_.19} parent=0 // pred_region
    _
  $region29: #{_lambda_.19} parent=0 // pred_fallthru
    _

</llo_original>
